<compile_context>
chip_gen: v6e
topology: v6e:2x2x1
jax: 0.10.0
libtpu: 0.0.40
codegen_flags: <defaults>
</compile_context>

<pallas_src>
import jax
import jax.numpy as jnp
from jax.experimental import pallas as pl
from jax.experimental.pallas import tpu as pltpu

# --- hyperparameters (stand-ins for argparse args) --------------------------
LATENT_DIM = 10
N_CLASSES = 10
CHANNELS = 1
IMG_SIZE = 16
IN_DIM = LATENT_DIM + N_CLASSES                  # 20
HIDDEN = 512
OUT_DIM = CHANNELS * IMG_SIZE * IMG_SIZE         # 256
BN_EPS = 1e-5
NEG_SLOPE = 0.2

# Largest batch handled by the fully fused single-kernel path (full batch
# resident in VMEM).  Above this, fall back to the tiled two-stage path.
FUSED_MAX_B = 1024


def _leaky_relu(x):
    # max(x, 0.2*x) == LeakyReLU(0.2) for all x; one VPU op cheaper than where().
    return jnp.maximum(x, NEG_SLOPE * x)


# ------------------------- fused single-pass kernel --------------------------
def _fused_decoder_kernel(z_ref, w1_ref, b1_ref, w2_ref, b2_ref,
                          gamma_ref, beta_ref, w3_ref, b3_ref, out_ref):
    """Whole Decoder forward for the full batch (resident in VMEM)."""
    z = z_ref[...].astype(jnp.bfloat16)                        # bf16 MXU operand
    h1 = jnp.dot(z, w1_ref[...], preferred_element_type=jnp.float32) + b1_ref[...]
    h1 = _leaky_relu(h1)
    h2 = (jnp.dot(h1.astype(jnp.bfloat16), w2_ref[...],
                  preferred_element_type=jnp.float32)
          + b2_ref[...])                                       # (B, 512) f32

    # BatchNorm1d (train mode): full-batch biased statistics, computed in-kernel.
    mean = jnp.mean(h2, axis=0, keepdims=True)                 # (1, 512)
    var = jnp.mean(jnp.square(h2 - mean), axis=0, keepdims=True)
    inv = jax.lax.rsqrt(var + BN_EPS)
    scale = gamma_ref[...] * inv                               # folded BN: 1 FMA/elem
    shift = beta_ref[...] - mean * scale

    h = _leaky_relu(h2 * scale + shift)
    o = (jnp.dot(h.astype(jnp.bfloat16), w3_ref[...],
                 preferred_element_type=jnp.float32)
         + b3_ref[...])
    out_ref[...] = jnp.tanh(o)


# --------------------- two-stage fallback kernels (huge B) -------------------
def _pre_bn_kernel(z_ref, w1_ref, b1_ref, w2_ref, b2_ref, h2_ref, stats_ref):
    """Linear1 + LeakyReLU + Linear2 for one batch tile.

    Emits h2 in bf16 (halves HBM traffic of the intermediate) plus per-tile
    partial sums Σh2 and Σh2² so the BN statistics can be combined from a tiny
    O(nt) array instead of re-reading all of h2.
    """
    z = z_ref[...].astype(jnp.bfloat16)
    h1 = jnp.dot(z, w1_ref[...], preferred_element_type=jnp.float32) + b1_ref[...]
    h1 = _leaky_relu(h1)
    h2 = (jnp.dot(h1.astype(jnp.bfloat16), w2_ref[...],
                  preferred_element_type=jnp.float32)
          + b2_ref[...])                                       # (tile_b, 512) f32
    h2_ref[...] = h2.astype(jnp.bfloat16)

    row_sum = jnp.sum(h2, axis=0, keepdims=True)               # (1, 512)
    row_sumsq = jnp.sum(h2 * h2, axis=0, keepdims=True)        # (1, 512)
    # Pack the two stat rows into an 8-sublane-aligned block (rows 2..7 = 0).
    stats = jnp.concatenate(
        [row_sum, row_sumsq, jnp.zeros((6, HIDDEN), jnp.float32)], axis=0)
    stats_ref[...] = stats[None]                               # (1, 8, 512)


def _post_bn_kernel(h2_ref, scale_ref, shift_ref, w3_ref, b3_ref, out_ref):
    """Folded BatchNorm + LeakyReLU + Linear3 + Tanh for one batch tile."""
    h2 = h2_ref[...].astype(jnp.float32)
    h = _leaky_relu(h2 * scale_ref[...] + shift_ref[...])
    o = (jnp.dot(h.astype(jnp.bfloat16), w3_ref[...],
                 preferred_element_type=jnp.float32)
         + b3_ref[...])
    out_ref[...] = jnp.tanh(o)


def _pick_tile(b):
    """Largest MXU-friendly batch tile that divides b with >= 2 grid steps.

    Multiples of 256 fill the v6e/v7x MXU M dimension (128 is the v5e unit);
    capping at b // 2 keeps the "parallel" batch axis >= 2 steps so both v7x
    TensorCores get work.  Falls back to a single full-batch tile otherwise.
    """
    for t in (1024, 512, 256, 128, 64, 32, 16, 8):
        if b % t == 0 and (b // t) >= 2:
            return t
    return b


# ------------------------------ wrappers --------------------------------------
@jax.jit
def _decoder_forward_fused(z, params):
    """Fully fused path: one pallas_call, full batch resident in VMEM."""
    w1, b1, w2, b2, gamma, beta, w3, b3 = params
    B = z.shape[0]
    full2d = lambda i: (0, 0)

    img_flat = pl.pallas_call(
        _fused_decoder_kernel,
        out_shape=jax.ShapeDtypeStruct((B, OUT_DIM), jnp.float32),
        grid=(1,),
        in_specs=[
            pl.BlockSpec((B, IN_DIM), full2d),
            pl.BlockSpec((IN_DIM, HIDDEN), full2d),
            pl.BlockSpec((1, HIDDEN), full2d),
            pl.BlockSpec((HIDDEN, HIDDEN), full2d),
            pl.BlockSpec((1, HIDDEN), full2d),
            pl.BlockSpec((1, HIDDEN), full2d),
            pl.BlockSpec((1, HIDDEN), full2d),
            pl.BlockSpec((HIDDEN, OUT_DIM), full2d),
            pl.BlockSpec((1, OUT_DIM), full2d),
        ],
        out_specs=pl.BlockSpec((B, OUT_DIM), full2d),
        compiler_params=pltpu.CompilerParams(
            dimension_semantics=("arbitrary",),
            vmem_limit_bytes=32 * 1024 * 1024),
        cost_estimate=pl.CostEstimate(
            flops=2 * B * (IN_DIM * HIDDEN + HIDDEN * HIDDEN + HIDDEN * OUT_DIM),
            transcendentals=B * OUT_DIM + HIDDEN,
            bytes_accessed=(B * IN_DIM * 4
                            + (IN_DIM * HIDDEN + HIDDEN * HIDDEN
                               + HIDDEN * OUT_DIM) * 2
                            + (4 * HIDDEN + OUT_DIM) * 4
                            + B * OUT_DIM * 4),
        ),
    )(z, w1, b1, w2, b2, gamma, beta, w3, b3)

    # PyTorch: img_flat.view(B, *img_shape)  (NCHW) — metadata-only reshape.
    return img_flat.reshape(B, CHANNELS, IMG_SIZE, IMG_SIZE)


@jax.jit
def _decoder_forward_two_stage(z, params):
    """Tiled two-stage path for batches too large to hold fully in VMEM."""
    w1, b1, w2, b2, gamma, beta, w3, b3 = params
    B = z.shape[0]
    tile_b = _pick_tile(B)
    nt = B // tile_b
    const = lambda i: (0, 0)          # weights: same block every grid step
    row = lambda i: (i, 0)            # activations: tile along the batch axis

    # ---- stage A: Linear1 -> LeakyReLU -> Linear2 (+ per-tile BN partial sums)
    h2, stats = pl.pallas_call(
        _pre_bn_kernel,
        out_shape=(jax.ShapeDtypeStruct((B, HIDDEN), jnp.bfloat16),
                   jax.ShapeDtypeStruct((nt, 8, HIDDEN), jnp.float32)),
        grid=(nt,),
        in_specs=[
            pl.BlockSpec((tile_b, IN_DIM), row),
            pl.BlockSpec((IN_DIM, HIDDEN), const),
            pl.BlockSpec((1, HIDDEN), const),
            pl.BlockSpec((HIDDEN, HIDDEN), const),
            pl.BlockSpec((1, HIDDEN), const),
        ],
        out_specs=(pl.BlockSpec((tile_b, HIDDEN), row),
                   pl.BlockSpec((1, 8, HIDDEN), lambda i: (i, 0, 0))),
        compiler_params=pltpu.CompilerParams(
            dimension_semantics=("parallel",)),
        cost_estimate=pl.CostEstimate(
            flops=2 * B * (IN_DIM + HIDDEN) * HIDDEN,
            transcendentals=0,
            bytes_accessed=(B * IN_DIM * 4
                            + (IN_DIM + HIDDEN) * HIDDEN * 2
                            + 2 * HIDDEN * 4
                            + B * HIDDEN * 2
                            + nt * 8 * HIDDEN * 4),
        ),
    )(z, w1, b1, w2, b2)

    # ---- combine tiny O(nt) partial sums; fold BN into scale/shift -----------
    totals = jnp.sum(stats, axis=0)                            # (8, 512)
    mean = totals[0] / B                                       # (512,)
    ex2 = totals[1] / B
    var = jnp.maximum(ex2 - mean * mean, 0.0)                  # biased (train mode)
    inv = jax.lax.rsqrt(var + BN_EPS)
    scale = (gamma[0] * inv)[None, :]                          # (1, 512)
    shift = (beta[0] - mean * gamma[0] * inv)[None, :]         # (1, 512)

    # ---- stage B: folded BN -> LeakyReLU -> Linear3 -> Tanh ------------------
    img_flat = pl.pallas_call(
        _post_bn_kernel,
        out_shape=jax.ShapeDtypeStruct((B, OUT_DIM), jnp.float32),
        grid=(nt,),
        in_specs=[
            pl.BlockSpec((tile_b, HIDDEN), row),
            pl.BlockSpec((1, HIDDEN), const),
            pl.BlockSpec((1, HIDDEN), const),
            pl.BlockSpec((HIDDEN, OUT_DIM), const),
            pl.BlockSpec((1, OUT_DIM), const),
        ],
        out_specs=pl.BlockSpec((tile_b, OUT_DIM), row),
        compiler_params=pltpu.CompilerParams(
            dimension_semantics=("parallel",)),
        cost_estimate=pl.CostEstimate(
            flops=2 * B * HIDDEN * OUT_DIM,
            transcendentals=B * OUT_DIM,
            bytes_accessed=(B * HIDDEN * 2
                            + 2 * HIDDEN * 4
                            + HIDDEN * OUT_DIM * 2 + OUT_DIM * 4
                            + B * OUT_DIM * 4),
        ),
    )(h2, scale, shift, w3, b3)

    return img_flat.reshape(B, CHANNELS, IMG_SIZE, IMG_SIZE)


def decoder_forward(z, params):
    """z: (B, IN_DIM) float32 -> img: (B, CHANNELS, IMG_SIZE, IMG_SIZE)."""
    if z.shape[0] <= FUSED_MAX_B:
        return _decoder_forward_fused(z, params)
    return _decoder_forward_two_stage(z, params)


# --------------------------- params / reference ------------------------------
def init_params(key):
    """nn.Linear-style U(-1/sqrt(fan_in), +) init; weights stored in bf16."""
    ks = jax.random.split(key, 6)

    def linear(kw, kb, fan_in, fan_out):
        bound = 1.0 / jnp.sqrt(jnp.float32(fan_in))
        w = jax.random.uniform(kw, (fan_in, fan_out), jnp.float32, -bound, bound)
        b = jax.random.uniform(kb, (1, fan_out), jnp.float32, -bound, bound)
        return w.astype(jnp.bfloat16), b                       # bf16 weights, f32 bias

    w1, b1 = linear(ks[0], ks[1], IN_DIM, HIDDEN)
    w2, b2 = linear(ks[2], ks[3], HIDDEN, HIDDEN)
    w3, b3 = linear(ks[4], ks[5], HIDDEN, OUT_DIM)
    gamma = jnp.ones((1, HIDDEN), jnp.float32)                 # BatchNorm1d weight
    beta = jnp.zeros((1, HIDDEN), jnp.float32)                 # BatchNorm1d bias
    return (w1, b1, w2, b2, gamma, beta, w3, b3)


def decoder_reference(z, params):
    """Pure-JAX reference mirroring the kernel's bf16-matmul / f32-acc math."""
    w1, b1, w2, b2, gamma, beta, w3, b3 = params
    h1 = jnp.dot(z.astype(jnp.bfloat16), w1, preferred_element_type=jnp.float32) + b1
    h1 = _leaky_relu(h1)
    h2 = jnp.dot(h1.astype(jnp.bfloat16), w2, preferred_element_type=jnp.float32) + b2
    mean = jnp.mean(h2, axis=0, keepdims=True)
    var = jnp.mean(jnp.square(h2 - mean), axis=0, keepdims=True)
    h2n = (h2 - mean) * jax.lax.rsqrt(var + BN_EPS) * gamma + beta
    h2a = _leaky_relu(h2n)
    o = jnp.dot(h2a.astype(jnp.bfloat16), w3, preferred_element_type=jnp.float32) + b3
    return jnp.tanh(o).reshape(z.shape[0], CHANNELS, IMG_SIZE, IMG_SIZE)


if __name__ == "__main__":
    key = jax.random.PRNGKey(0)
    k_params, k_z = jax.random.split(key)

    B = 256
    params = init_params(k_params)
    z = jax.random.normal(k_z, (B, IN_DIM), jnp.float32)

    # --- primary: fully fused single-kernel path -----------------------------
    img = decoder_forward(z, params)
    jax.block_until_ready(img)

    assert img.shape == (B, CHANNELS, IMG_SIZE, IMG_SIZE), img.shape
    assert bool(jnp.all(jnp.isfinite(img)))
    assert bool(jnp.all(jnp.abs(img) <= 1.0 + 1e-6))          # tanh range

    ref = decoder_reference(z, params)
    err_fused = float(jnp.max(jnp.abs(img - ref)))
    assert err_fused < 2e-2, f"fused mismatch vs reference: {err_fused}"

    # --- also exercise the tiled two-stage fallback (used when B > FUSED_MAX_B)
    img2 = _decoder_forward_two_stage(z, params)
    jax.block_until_ready(img2)
    err_two_stage = float(jnp.max(jnp.abs(img2 - ref)))
    assert err_two_stage < 3e-2, f"two-stage mismatch vs reference: {err_two_stage}"

    print("KERNEL_OK")
</pallas_src>

<mosaic_0001>
module attributes {stable_mosaic.version = 11 : i64} {
  func.func @_fused_decoder_kernel(%arg0: i32, %arg1: memref<256x20xf32, #tpu.memory_space<vmem>>, %arg2: memref<20x512xbf16, #tpu.memory_space<vmem>>, %arg3: memref<1x512xf32, #tpu.memory_space<vmem>>, %arg4: memref<512x512xbf16, #tpu.memory_space<vmem>>, %arg5: memref<1x512xf32, #tpu.memory_space<vmem>>, %arg6: memref<1x512xf32, #tpu.memory_space<vmem>>, %arg7: memref<1x512xf32, #tpu.memory_space<vmem>>, %arg8: memref<512x256xbf16, #tpu.memory_space<vmem>>, %arg9: memref<1x256xf32, #tpu.memory_space<vmem>>, %arg10: memref<256x256xf32, #tpu.memory_space<vmem>>) attributes {dimension_semantics = [#tpu.dimension_semantics<arbitrary>], iteration_bounds = array<i64: 1>, scalar_prefetch = 0 : i64, scratch_operands = 0 : i64, tpu.core_type = #tpu.core_type<tc>, window_params = [{pipeline_mode = #tpu.pipeline_mode<synchronous>, transform_indices = @transform_0, window_bounds = array<i64: 256, 20>}, {pipeline_mode = #tpu.pipeline_mode<synchronous>, transform_indices = @transform_1, window_bounds = array<i64: 20, 512>}, {pipeline_mode = #tpu.pipeline_mode<synchronous>, transform_indices = @transform_2, window_bounds = array<i64: 1, 512>}, {pipeline_mode = #tpu.pipeline_mode<synchronous>, transform_indices = @transform_3, window_bounds = array<i64: 512, 512>}, {pipeline_mode = #tpu.pipeline_mode<synchronous>, transform_indices = @transform_4, window_bounds = array<i64: 1, 512>}, {pipeline_mode = #tpu.pipeline_mode<synchronous>, transform_indices = @transform_5, window_bounds = array<i64: 1, 512>}, {pipeline_mode = #tpu.pipeline_mode<synchronous>, transform_indices = @transform_6, window_bounds = array<i64: 1, 512>}, {pipeline_mode = #tpu.pipeline_mode<synchronous>, transform_indices = @transform_7, window_bounds = array<i64: 512, 256>}, {pipeline_mode = #tpu.pipeline_mode<synchronous>, transform_indices = @transform_8, window_bounds = array<i64: 1, 256>}, {pipeline_mode = #tpu.pipeline_mode<synchronous>, transform_indices = @transform_9, window_bounds = array<i64: 256, 256>}]} {
    %c0 = arith.constant 0 : index
    %c0_0 = arith.constant 0 : index
    %0 = vector.load %arg1[%c0, %c0_0] : memref<256x20xf32, #tpu.memory_space<vmem>>, vector<256x20xf32>
    %1 = arith.truncf %0 : vector<256x20xf32> to vector<256x20xbf16>
    %c0_1 = arith.constant 0 : index
    %c0_2 = arith.constant 0 : index
    %2 = vector.load %arg2[%c0_1, %c0_2] : memref<20x512xbf16, #tpu.memory_space<vmem>>, vector<20x512xbf16>
    %cst = arith.constant dense<0.000000e+00> : vector<256x512xf32>
    %3 = tpu.matmul %1, %2, %cst {dimension_numbers = #tpu.dot_dimension_numbers<[1], [0], [0], [1], [0, 0, 1, 1], [], []>} : vector<256x20xbf16>, vector<20x512xbf16>, vector<256x512xf32> -> vector<256x512xf32>
    %c0_3 = arith.constant 0 : index
    %c0_4 = arith.constant 0 : index
    %4 = vector.load %arg3[%c0_3, %c0_4] : memref<1x512xf32, #tpu.memory_space<vmem>>, vector<1x512xf32>
    %5 = vector.broadcast %4 : vector<1x512xf32> to vector<256x512xf32>
    %6 = arith.addf %3, %5 : vector<256x512xf32>
    %cst_5 = arith.constant 2.000000e-01 : f32
    %7 = vector.broadcast %cst_5 : f32 to vector<256x512xf32>
    %8 = arith.mulf %7, %6 : vector<256x512xf32>
    %9 = arith.maximumf %6, %8 : vector<256x512xf32>
    %10 = arith.truncf %9 : vector<256x512xf32> to vector<256x512xbf16>
    %c0_6 = arith.constant 0 : index
    %c0_7 = arith.constant 0 : index
    %11 = vector.load %arg4[%c0_6, %c0_7] : memref<512x512xbf16, #tpu.memory_space<vmem>>, vector<512x512xbf16>
    %cst_8 = arith.constant dense<0.000000e+00> : vector<256x512xf32>
    %12 = tpu.matmul %10, %11, %cst_8 {dimension_numbers = #tpu.dot_dimension_numbers<[1], [0], [0], [1], [0, 0, 1, 1], [], []>} : vector<256x512xbf16>, vector<512x512xbf16>, vector<256x512xf32> -> vector<256x512xf32>
    %c0_9 = arith.constant 0 : index
    %c0_10 = arith.constant 0 : index
    %13 = vector.load %arg5[%c0_9, %c0_10] : memref<1x512xf32, #tpu.memory_space<vmem>>, vector<1x512xf32>
    %14 = vector.broadcast %13 : vector<1x512xf32> to vector<256x512xf32>
    %15 = arith.addf %12, %14 : vector<256x512xf32>
    %cst_11 = arith.constant dense<0.000000e+00> : vector<512xf32>
    %16 = vector.multi_reduction <add>, %15, %cst_11 [0] : vector<256x512xf32> to vector<512xf32>
    %17 = vector.shape_cast %16 : vector<512xf32> to vector<1x512xf32>
    %cst_12 = arith.constant 2.560000e+02 : f32
    %18 = vector.broadcast %cst_12 : f32 to vector<1x512xf32>
    %19 = arith.divf %17, %18 : vector<1x512xf32>
    %20 = vector.broadcast %19 : vector<1x512xf32> to vector<256x512xf32>
    %21 = arith.subf %15, %20 : vector<256x512xf32>
    %22 = arith.mulf %21, %21 : vector<256x512xf32>
    %cst_13 = arith.constant dense<0.000000e+00> : vector<512xf32>
    %23 = vector.multi_reduction <add>, %22, %cst_13 [0] : vector<256x512xf32> to vector<512xf32>
    %24 = vector.shape_cast %23 : vector<512xf32> to vector<1x512xf32>
    %cst_14 = arith.constant 2.560000e+02 : f32
    %25 = vector.broadcast %cst_14 : f32 to vector<1x512xf32>
    %26 = arith.divf %24, %25 : vector<1x512xf32>
    %cst_15 = arith.constant 9.99999974E-6 : f32
    %27 = vector.broadcast %cst_15 : f32 to vector<1x512xf32>
    %28 = arith.addf %26, %27 : vector<1x512xf32>
    %29 = math.rsqrt %28 : vector<1x512xf32>
    %c0_16 = arith.constant 0 : index
    %c0_17 = arith.constant 0 : index
    %30 = vector.load %arg6[%c0_16, %c0_17] : memref<1x512xf32, #tpu.memory_space<vmem>>, vector<1x512xf32>
    %31 = arith.mulf %30, %29 : vector<1x512xf32>
    %c0_18 = arith.constant 0 : index
    %c0_19 = arith.constant 0 : index
    %32 = vector.load %arg7[%c0_18, %c0_19] : memref<1x512xf32, #tpu.memory_space<vmem>>, vector<1x512xf32>
    %33 = arith.mulf %19, %31 : vector<1x512xf32>
    %34 = arith.subf %32, %33 : vector<1x512xf32>
    %35 = vector.broadcast %31 : vector<1x512xf32> to vector<256x512xf32>
    %36 = arith.mulf %15, %35 : vector<256x512xf32>
    %37 = vector.broadcast %34 : vector<1x512xf32> to vector<256x512xf32>
    %38 = arith.addf %36, %37 : vector<256x512xf32>
    %cst_20 = arith.constant 2.000000e-01 : f32
    %39 = vector.broadcast %cst_20 : f32 to vector<256x512xf32>
    %40 = arith.mulf %39, %38 : vector<256x512xf32>
    %41 = arith.maximumf %38, %40 : vector<256x512xf32>
    %42 = arith.truncf %41 : vector<256x512xf32> to vector<256x512xbf16>
    %c0_21 = arith.constant 0 : index
    %c0_22 = arith.constant 0 : index
    %43 = vector.load %arg8[%c0_21, %c0_22] : memref<512x256xbf16, #tpu.memory_space<vmem>>, vector<512x256xbf16>
    %cst_23 = arith.constant dense<0.000000e+00> : vector<256x256xf32>
    %44 = tpu.matmul %42, %43, %cst_23 {dimension_numbers = #tpu.dot_dimension_numbers<[1], [0], [0], [1], [0, 0, 1, 1], [], []>} : vector<256x512xbf16>, vector<512x256xbf16>, vector<256x256xf32> -> vector<256x256xf32>
    %c0_24 = arith.constant 0 : index
    %c0_25 = arith.constant 0 : index
    %45 = vector.load %arg9[%c0_24, %c0_25] : memref<1x256xf32, #tpu.memory_space<vmem>>, vector<1x256xf32>
    %46 = vector.broadcast %45 : vector<1x256xf32> to vector<256x256xf32>
    %47 = arith.addf %44, %46 : vector<256x256xf32>
    %48 = math.tanh %47 : vector<256x256xf32>
    %c0_26 = arith.constant 0 : index
    %c0_27 = arith.constant 0 : index
    %49 = vector.load %arg10[%c0_26, %c0_27] : memref<256x256xf32, #tpu.memory_space<vmem>>, vector<256x256xf32>
    tpu.vector_store %arg10[%c0_26, %c0_27], %48 {strides = array<i32>} : memref<256x256xf32, #tpu.memory_space<vmem>>, vector<256x256xf32>,
    return
  }
  func.func @transform_0(%arg0: i32) -> (i32, i32) {
    %c0_i32 = arith.constant 0 : i32
    %c0_i32_0 = arith.constant 0 : i32
    %c0_i32_1 = arith.constant 0 : i32
    return %c0_i32, %c0_i32_0 : i32, i32
  }
  func.func @transform_1(%arg0: i32) -> (i32, i32) {
    %c0_i32 = arith.constant 0 : i32
    %c0_i32_0 = arith.constant 0 : i32
    %c0_i32_1 = arith.constant 0 : i32
    return %c0_i32, %c0_i32_0 : i32, i32
  }
  func.func @transform_2(%arg0: i32) -> (i32, i32) {
    %c0_i32 = arith.constant 0 : i32
    %c0_i32_0 = arith.constant 0 : i32
    %c0_i32_1 = arith.constant 0 : i32
    return %c0_i32, %c0_i32_0 : i32, i32
  }
  func.func @transform_3(%arg0: i32) -> (i32, i32) {
    %c0_i32 = arith.constant 0 : i32
    %c0_i32_0 = arith.constant 0 : i32
    %c0_i32_1 = arith.constant 0 : i32
    return %c0_i32, %c0_i32_0 : i32, i32
  }
  func.func @transform_4(%arg0: i32) -> (i32, i32) {
    %c0_i32 = arith.constant 0 : i32
    %c0_i32_0 = arith.constant 0 : i32
    %c0_i32_1 = arith.constant 0 : i32
    return %c0_i32, %c0_i32_0 : i32, i32
  }
  func.func @transform_5(%arg0: i32) -> (i32, i32) {
    %c0_i32 = arith.constant 0 : i32
    %c0_i32_0 = arith.constant 0 : i32
    %c0_i32_1 = arith.constant 0 : i32
    return %c0_i32, %c0_i32_0 : i32, i32
  }
  func.func @transform_6(%arg0: i32) -> (i32, i32) {
    %c0_i32 = arith.constant 0 : i32
    %c0_i32_0 = arith.constant 0 : i32
    %c0_i32_1 = arith.constant 0 : i32
    return %c0_i32, %c0_i32_0 : i32, i32
  }
  func.func @transform_7(%arg0: i32) -> (i32, i32) {
    %c0_i32 = arith.constant 0 : i32
    %c0_i32_0 = arith.constant 0 : i32
    %c0_i32_1 = arith.constant 0 : i32
    return %c0_i32, %c0_i32_0 : i32, i32
  }
  func.func @transform_8(%arg0: i32) -> (i32, i32) {
    %c0_i32 = arith.constant 0 : i32
    %c0_i32_0 = arith.constant 0 : i32
    %c0_i32_1 = arith.constant 0 : i32
    return %c0_i32, %c0_i32_0 : i32, i32
  }
  func.func @transform_9(%arg0: i32) -> (i32, i32) {
    %c0_i32 = arith.constant 0 : i32
    %c0_i32_0 = arith.constant 0 : i32
    %c0_i32_1 = arith.constant 0 : i32
    return %c0_i32, %c0_i32_0 : i32, i32
  }
}

</mosaic_0001>

<llo_original>
// kernel: _decoder_forward_fused.1
$region0: #{_decoder_forward_fused.1}
  #allocation0 [shape = 'u32[]', space=smem, size = 0x4, offset = 0x4, fixed_abs, tag = 'smem constant byte address 0x4 - core index']
  #allocation1 [shape = 'u32[144,128]{1,0:T(1,128)}', space=vmem, size = 0x12000, scoped, tag = 'internal scratch']
  %s0 = inlined_call_operand.vmem [shape: f32[256,20], index: 0, kind: input, shape index: {}]
  %s1 = inlined_call_operand.vmem [shape: bf16[20,512], index: 1, kind: input, shape index: {}]
  %s2 = inlined_call_operand.vmem [shape: f32[1,512], index: 2, kind: input, shape index: {}]
  %s3 = inlined_call_operand.hbm [shape: bf16[512,512], index: 3, kind: input, shape index: {}]
  %s4 = inlined_call_operand.vmem [shape: f32[1,512], index: 4, kind: input, shape index: {}]
  %s5 = inlined_call_operand.vmem [shape: f32[1,512], index: 5, kind: input, shape index: {}]
  %s6 = inlined_call_operand.vmem [shape: f32[1,512], index: 6, kind: input, shape index: {}]
  %s7 = inlined_call_operand.hbm [shape: bf16[512,256], index: 7, kind: input, shape index: {}]
  %s8 = inlined_call_operand.vmem [shape: f32[1,256], index: 8, kind: input, shape index: {}]
  %s9 = inlined_call_operand.vmem [shape: f32[256,256], index: 9, kind: output, shape index: {}]
  %s10 = sld [smem:[#allocation0]]
  $region54: #{_decoder_forward_fused.1} parent=0
    _
  %s12 = ssub.s32 1, %s10
  %s13 = scalar_select 0, %s12, %s10
  $region1: #{_decoder_forward_fused.1} parent=0
    #allocation2 [shape = 'u8[524288]{0}', space=vmem, size = 0x80000, scoped, tag = 'input window, operand 3, single buffered']
    #allocation3 [shape = 's32[1]{0}', space=sflag, size = 0x4, scoped, tag = 'scoped memory for _decoder_forward_fused.1']
    #allocation4 [shape = 'u8[262144]{0}', space=vmem, size = 0x40000, scoped, tag = 'input window, operand 7, single buffered']
    #allocation5 [shape = 's32[1]{0}', space=sflag, size = 0x4, scoped, tag = 'scoped memory for _decoder_forward_fused.1']
    %14 = vsyncpa [#allocation3], 0
    %15 = vsyncpa [#allocation5], 0
    // Predicated region
    $region2: #{_decoder_forward_fused.1} parent=1 // pred_check
      _
    $region3: #{_decoder_forward_fused.1} parent=1 // pred_check_branch
      %17 = sbr.rel (0) target = $region5
    $region4: #{_decoder_forward_fused.1} parent=1 // pred_region
      _
    $region5: #{_decoder_forward_fused.1} parent=1 // pred_fallthru
      _
    // Predicated region
    $region6: #{_decoder_forward_fused.1} parent=1 // pred_check
      _
    $region7: #{_decoder_forward_fused.1} parent=1 // pred_check_branch
      %19 = sbr.rel (0) target = $region9
    $region8: #{_decoder_forward_fused.1} parent=1 // pred_region
      _
    $region9: #{_decoder_forward_fused.1} parent=1 // pred_fallthru
      _
    // Predicated region
    $region10: #{_decoder_forward_fused.1} parent=1 // pred_check
      _
    $region11: #{_decoder_forward_fused.1} parent=1 // pred_check_branch
      %21 = sbr.rel (0) target = $region13
    $region12: #{_decoder_forward_fused.1} parent=1 // pred_region
      _
    $region13: #{_decoder_forward_fused.1} parent=1 // pred_fallthru
      _
    // Predicated region
    $region14: #{_decoder_forward_fused.1} parent=1 // pred_check
      _
    $region15: #{_decoder_forward_fused.1} parent=1 // pred_check_branch
      %23 = sbr.rel (0) target = $region17
    $region16: #{_decoder_forward_fused.1} parent=1 // pred_region
      %s25 = ssub.s32 16384, 16384
      %26 = vsyncadd [#allocation3], %s25
      %s27 = sshll.u32 [#allocation2], 4
      %s28 = int_to_ptr.vmem [resolvable:$true] %s27
      %33 = dma.hbm_to_vmem [thread:$0]  %s3, 16384, %s28, [#allocation3], 256, 256, 16
    $region17: #{_decoder_forward_fused.1} parent=1 // pred_fallthru
      _
    // Predicated region
    $region18: #{_decoder_forward_fused.1} parent=1 // pred_check
      _
    $region19: #{_decoder_forward_fused.1} parent=1 // pred_check_branch
      %35 = sbr.rel (0) target = $region21
    $region20: #{_decoder_forward_fused.1} parent=1 // pred_region
      _
    $region21: #{_decoder_forward_fused.1} parent=1 // pred_fallthru
      _
    // Predicated region
    $region22: #{_decoder_forward_fused.1} parent=1 // pred_check
      _
    $region23: #{_decoder_forward_fused.1} parent=1 // pred_check_branch
      %37 = sbr.rel (0) target = $region25
    $region24: #{_decoder_forward_fused.1} parent=1 // pred_region
      _
    $region25: #{_decoder_forward_fused.1} parent=1 // pred_fallthru
      _
    // Predicated region
    $region26: #{_decoder_forward_fused.1} parent=1 // pred_check
      _
    $region27: #{_decoder_forward_fused.1} parent=1 // pred_check_branch
      %39 = sbr.rel (0) target = $region29
    $region28: #{_decoder_forward_fused.1} parent=1 // pred_region
      _
    $region29: #{_decoder_forward_fused.1} parent=1 // pred_fallthru
      _
    // Predicated region
    $region30: #{_decoder_forward_fused.1} parent=1 // pred_check
      _
    $region31: #{_decoder_forward_fused.1} parent=1 // pred_check_branch
      %41 = sbr.rel (0) target = $region33
    $region32: #{_decoder_forward_fused.1} parent=1 // pred_region
      %s43 = ssub.s32 8192, 8192
      %44 = vsyncadd [#allocation5], %s43
      %s45 = sshll.u32 [#allocation4], 4
      %s46 = int_to_ptr.vmem [resolvable:$true] %s45
      %51 = dma.hbm_to_vmem [thread:$0]  %s7, 8192, %s46, [#allocation5], 128, 128, 8
    $region33: #{_decoder_forward_fused.1} parent=1 // pred_fallthru
      _
    // Predicated region
    $region34: #{_decoder_forward_fused.1} parent=1 // pred_check
      _
    $region35: #{_decoder_forward_fused.1} parent=1 // pred_check_branch
      %53 = sbr.rel (0) target = $region37
    $region36: #{_decoder_forward_fused.1} parent=1 // pred_region
      _
    $region37: #{_decoder_forward_fused.1} parent=1 // pred_fallthru
      _
    // Predicated region
    $region38: #{_decoder_forward_fused.1} parent=1 // pred_check
      _
    $region39: #{_decoder_forward_fused.1} parent=1 // pred_check_branch
      %55 = sbr.rel (0) target = $region41
    $region40: #{_decoder_forward_fused.1} parent=1 // pred_region
      %56 = dma.done [#allocation3], 16384
    $region41: #{_decoder_forward_fused.1} parent=1 // pred_fallthru
      _
    // Predicated region
    $region42: #{_decoder_forward_fused.1} parent=1 // pred_check
      _
    $region43: #{_decoder_forward_fused.1} parent=1 // pred_check_branch
      %58 = sbr.rel (0) target = $region45
    $region44: #{_decoder_forward_fused.1} parent=1 // pred_region
      %59 = dma.done [#allocation5], 8192
    $region45: #{_decoder_forward_fused.1} parent=1 // pred_fallthru
      _
    %v61 = vld [vmem:[%s0] sm:$0xff]
    %v62 = vld [vmem:[%s0 + $0x8] sm:$0xff]
    %v63 = vld [vmem:[%s0 + $0x10] sm:$0xff]
    %v64 = vld [vmem:[%s0 + $0x18] sm:$0xff]
    %v65 = vld [vmem:[%s0 + $0x20] sm:$0xff]
    %v66 = vld [vmem:[%s0 + $0x28] sm:$0xff]
    %v67 = vld [vmem:[%s0 + $0x30] sm:$0xff]
    %v68 = vld [vmem:[%s0 + $0x38] sm:$0xff]
    %v69 = vld [vmem:[%s0 + $0x40] sm:$0xff]
    %v70 = vld [vmem:[%s0 + $0x48] sm:$0xff]
    %v71 = vld [vmem:[%s0 + $0x50] sm:$0xff]
    %v72 = vld [vmem:[%s0 + $0x58] sm:$0xff]
    %v73 = vld [vmem:[%s0 + $0x60] sm:$0xff]
    %v74 = vld [vmem:[%s0 + $0x68] sm:$0xff]
    %v75 = vld [vmem:[%s0 + $0x70] sm:$0xff]
    %v76 = vld [vmem:[%s0 + $0x78] sm:$0xff]
    %v77 = vld [vmem:[%s0 + $0x80] sm:$0xff]
    %v78 = vld [vmem:[%s0 + $0x88] sm:$0xff]
    %v79 = vld [vmem:[%s0 + $0x90] sm:$0xff]
    %v80 = vld [vmem:[%s0 + $0x98] sm:$0xff]
    %v81 = vld [vmem:[%s0 + $0xa0] sm:$0xff]
    %v82 = vld [vmem:[%s0 + $0xa8] sm:$0xff]
    %v83 = vld [vmem:[%s0 + $0xb0] sm:$0xff]
    %v84 = vld [vmem:[%s0 + $0xb8] sm:$0xff]
    %v85 = vld [vmem:[%s0 + $0xc0] sm:$0xff]
    %v86 = vld [vmem:[%s0 + $0xc8] sm:$0xff]
    %v87 = vld [vmem:[%s0 + $0xd0] sm:$0xff]
    %v88 = vld [vmem:[%s0 + $0xd8] sm:$0xff]
    %v89 = vld [vmem:[%s0 + $0xe0] sm:$0xff]
    %v90 = vld [vmem:[%s0 + $0xe8] sm:$0xff]
    %v91 = vld [vmem:[%s0 + $0xf0] sm:$0xff]
    %v92 = vld [vmem:[%s0 + $0xf8] sm:$0xff]
    %v93 = vpack.c.bf16 %v62, %v61
    %v94 = vpack.c.bf16 %v64, %v63
    %v95 = vpack.c.bf16 %v66, %v65
    %v96 = vpack.c.bf16 %v68, %v67
    %v97 = vpack.c.bf16 %v70, %v69
    %v98 = vpack.c.bf16 %v72, %v71
    %v99 = vpack.c.bf16 %v74, %v73
    %v100 = vpack.c.bf16 %v76, %v75
    %v101 = vpack.c.bf16 %v78, %v77
    %v102 = vpack.c.bf16 %v80, %v79
    %v103 = vpack.c.bf16 %v82, %v81
    %v104 = vpack.c.bf16 %v84, %v83
    %v105 = vpack.c.bf16 %v86, %v85
    %v106 = vpack.c.bf16 %v88, %v87
    %v107 = vpack.c.bf16 %v90, %v89
    %v108 = vpack.c.bf16 %v92, %v91
    %v109 = vld [vmem:[%s1] sm:$0xff]
    %v110 = vld [vmem:[%s1 + $0x8] sm:$0xff]
    %v111 = vld [vmem:[%s1 + $0x10] sm:$0xff]
    %v112 = vld [vmem:[%s1 + $0x18] sm:$0xff]
    %v113 = vld [vmem:[%s1 + $0x20] sm:$0x33]
    %v114 = vld [vmem:[%s1 + $0x28] sm:$0x33]
    %v115 = vld [vmem:[%s2] sm:$0xf]
    %v117 = vlaneseq
    %v118 = vshrl.u32 %v117, 7
    %v119 = vsub.s32 0, %v118
    %v120 = vrot.slane %v115, %v119
    %v121 = vlaneseq
    %v122 = vshrl.u32 %v121, 7
    %v123 = vsub.s32 1, %v122
    %v124 = vrot.slane %v115, %v123
    %v125 = vlaneseq
    %v126 = vshrl.u32 %v125, 7
    %v127 = vsub.s32 2, %v126
    %v128 = vrot.slane %v115, %v127
    %v129 = vlaneseq
    %v130 = vshrl.u32 %v129, 7
    %v131 = vsub.s32 3, %v130
    %v132 = vrot.slane %v115, %v131
    %v143 = vunpack.c.l.b16 %v109
    %v144 = vunpack.c.h.b16 %v109
    %v145 = vunpack.c.l.b16 %v110
    %v146 = vunpack.c.h.b16 %v110
    %v147 = vunpack.c.l.b16 %v111
    %v148 = vunpack.c.h.b16 %v111
    %v149 = vunpack.c.l.b16 %v112
    %v150 = vunpack.c.h.b16 %v112
    %v151 = vunpack.c.l.b16 %v113
    %v152 = vunpack.c.h.b16 %v113
    %v153 = vunpack.c.l.b16 %v114
    %v154 = vunpack.c.h.b16 %v114
    %v155 = vpack.c.b16 %v147, %v143
    %v156 = vpack.c.b16 %v148, %v144
    %v157 = vpack.c.b16 %v149, %v145
    %v158 = vpack.c.b16 %v150, %v146
    %v159 = vpack.c.b16 %v151, %v151
    %v160 = vpack.c.b16 %v152, %v152
    %v161 = vpack.c.b16 %v153, %v153
    %v162 = vpack.c.b16 %v154, %v154
    %vm167 = vcmask 162816
    %v169 = vsel %vm167, %v93, 0
    %v172 = vsel %vm167, %v94, 0
    %v175 = vsel %vm167, %v95, 0
    %v178 = vsel %vm167, %v96, 0
    %v181 = vsel %vm167, %v97, 0
    %v184 = vsel %vm167, %v98, 0
    %v187 = vsel %vm167, %v99, 0
    %v190 = vsel %vm167, %v100, 0
    %v193 = vsel %vm167, %v101, 0
    %v196 = vsel %vm167, %v102, 0
    %v199 = vsel %vm167, %v103, 0
    %v202 = vsel %vm167, %v104, 0
    %v205 = vsel %vm167, %v105, 0
    %v208 = vsel %vm167, %v106, 0
    %v211 = vsel %vm167, %v107, 0
    %v214 = vsel %vm167, %v108, 0
    %vm216 = vcmask 1041408
    %v218 = vsel %vm216, %v159, 0
    %v221 = vsel %vm216, %v160, 0
    %v224 = vsel %vm216, %v161, 0
    %v227 = vsel %vm216, %v162, 0
    %229 = vmatprep.subr.bf16.mxu0 0
    %230 = vmatpush1.bf16.msra.mxu0 0
    %231 = vmatprep.subr.bf16.mxu0 0
    %232 = vmatpush1.bf16.msra.mxu0 0
    %233 = vmatprep.subr.bf16.mxu0 0
    %234 = vmatpush1.bf16.msra.mxu0 0
    %235 = vmatprep.subr.bf16.mxu0 0
    %236 = vmatpush1.bf16.msra.mxu0 0
    %237 = vmatprep.subr.bf16.mxu0 0
    %238 = vmatpush1.bf16.msra.mxu0 0
    %239 = vmatprep.subr.bf16.mxu0 0
    %240 = vmatpush1.bf16.msra.mxu0 0
    %241 = vmatprep.subr.bf16.mxu0 %v221
    %242 = vmatpush1.bf16.msra.mxu0 %v218
    %243 = vmatprep.subr.bf16.mxu0 %v156
    %244 = vmatpush1.bf16.msra.mxu0 %v155
    %245 = vmatprep.subr.bf16.mxu0 0
    %246 = vmatpush2.bf16.msra.mxu0 0
    %247 = vmatprep.subr.bf16.mxu0 0
    %248 = vmatpush2.bf16.msra.mxu0 0
    %249 = vmatprep.subr.bf16.mxu0 0
    %250 = vmatpush2.bf16.msra.mxu0 0
    %251 = vmatprep.subr.bf16.mxu0 0
    %252 = vmatpush2.bf16.msra.mxu0 0
    %253 = vmatprep.subr.bf16.mxu0 0
    %254 = vmatpush2.bf16.msra.mxu0 0
    %255 = vmatprep.subr.bf16.mxu0 0
    %256 = vmatpush2.bf16.msra.mxu0 0
    %257 = vmatprep.subr.bf16.mxu0 0
    %258 = vmatpush2.bf16.msra.mxu0 0
    %259 = vmatprep.subr.bf16.mxu0 0
    %260 = vmatpush2.bf16.msra.mxu0 0
    %261 = vmatprep.mubr.bf16.mxu0 0
    %262 = vmatmul.mubr.bf16.gmra.mxu0 %v169
    %v263 = vpop.f32.mrf.mxu0
    %v264 = vadd.f32 %v120, %v263
    %v265 = vpop.f32.mrf.mxu0
    %v266 = vadd.f32 %v124, %v265
    %v267 = vpop.f32.mrf.mxu0
    %v268 = vadd.f32 %v120, %v267
    %v269 = vpop.f32.mrf.mxu0
    %v270 = vadd.f32 %v124, %v269
    %271 = vmatprep.mubr.bf16.mxu0 0
    %272 = vmatmul.mubr.bf16.gmra.mxu0 %v172
    %v273 = vpop.f32.mrf.mxu0
    %v274 = vadd.f32 %v120, %v273
    %v275 = vpop.f32.mrf.mxu0
    %v276 = vadd.f32 %v124, %v275
    %v277 = vpop.f32.mrf.mxu0
    %v278 = vadd.f32 %v120, %v277
    %v279 = vpop.f32.mrf.mxu0
    %v280 = vadd.f32 %v124, %v279
    %281 = vmatprep.mubr.bf16.mxu0 0
    %282 = vmatmul.mubr.bf16.gmra.mxu0 %v175
    %v283 = vpop.f32.mrf.mxu0
    %v284 = vadd.f32 %v120, %v283
    %v285 = vpop.f32.mrf.mxu0
    %v286 = vadd.f32 %v124, %v285
    %v287 = vpop.f32.mrf.mxu0
    %v288 = vadd.f32 %v120, %v287
    %v289 = vpop.f32.mrf.mxu0
    %v290 = vadd.f32 %v124, %v289
    %291 = vmatprep.mubr.bf16.mxu0 0
    %292 = vmatmul.mubr.bf16.gmra.mxu0 %v178
    %v293 = vpop.f32.mrf.mxu0
    %v294 = vadd.f32 %v120, %v293
    %v295 = vpop.f32.mrf.mxu0
    %v296 = vadd.f32 %v124, %v295
    %v297 = vpop.f32.mrf.mxu0
    %v298 = vadd.f32 %v120, %v297
    %v299 = vpop.f32.mrf.mxu0
    %v300 = vadd.f32 %v124, %v299
    %301 = vmatprep.mubr.bf16.mxu0 0
    %302 = vmatmul.mubr.bf16.gmra.mxu0 %v181
    %v303 = vpop.f32.mrf.mxu0
    %v304 = vadd.f32 %v120, %v303
    %v305 = vpop.f32.mrf.mxu0
    %v306 = vadd.f32 %v124, %v305
    %v307 = vpop.f32.mrf.mxu0
    %v308 = vadd.f32 %v120, %v307
    %v309 = vpop.f32.mrf.mxu0
    %v310 = vadd.f32 %v124, %v309
    %311 = vmatprep.mubr.bf16.mxu0 0
    %312 = vmatmul.mubr.bf16.gmra.mxu0 %v184
    %v313 = vpop.f32.mrf.mxu0
    %v314 = vadd.f32 %v120, %v313
    %v315 = vpop.f32.mrf.mxu0
    %v316 = vadd.f32 %v124, %v315
    %v317 = vpop.f32.mrf.mxu0
    %v318 = vadd.f32 %v120, %v317
    %v319 = vpop.f32.mrf.mxu0
    %v320 = vadd.f32 %v124, %v319
    %321 = vmatprep.mubr.bf16.mxu0 0
    %322 = vmatmul.mubr.bf16.gmra.mxu0 %v187
    %v323 = vpop.f32.mrf.mxu0
    %v324 = vadd.f32 %v120, %v323
    %v325 = vpop.f32.mrf.mxu0
    %v326 = vadd.f32 %v124, %v325
    %v327 = vpop.f32.mrf.mxu0
    %v328 = vadd.f32 %v120, %v327
    %v329 = vpop.f32.mrf.mxu0
    %v330 = vadd.f32 %v124, %v329
    %331 = vmatprep.mubr.bf16.mxu0 0
    %332 = vmatmul.mubr.bf16.gmra.mxu0 %v190
    %v333 = vpop.f32.mrf.mxu0
    %v334 = vadd.f32 %v120, %v333
    %v335 = vpop.f32.mrf.mxu0
    %v336 = vadd.f32 %v124, %v335
    %v337 = vpop.f32.mrf.mxu0
    %v338 = vadd.f32 %v120, %v337
    %v339 = vpop.f32.mrf.mxu0
    %v340 = vadd.f32 %v124, %v339
    %341 = vmatprep.mubr.bf16.mxu0 0
    %342 = vmatmul.mubr.bf16.gmra.mxu0 %v193
    %v343 = vpop.f32.mrf.mxu0
    %v344 = vadd.f32 %v120, %v343
    %v345 = vpop.f32.mrf.mxu0
    %v346 = vadd.f32 %v124, %v345
    %v347 = vpop.f32.mrf.mxu0
    %v348 = vadd.f32 %v120, %v347
    %v349 = vpop.f32.mrf.mxu0
    %v350 = vadd.f32 %v124, %v349
    %351 = vmatprep.mubr.bf16.mxu0 0
    %352 = vmatmul.mubr.bf16.gmra.mxu0 %v196
    %v353 = vpop.f32.mrf.mxu0
    %v354 = vadd.f32 %v120, %v353
    %v355 = vpop.f32.mrf.mxu0
    %v356 = vadd.f32 %v124, %v355
    %v357 = vpop.f32.mrf.mxu0
    %v358 = vadd.f32 %v120, %v357
    %v359 = vpop.f32.mrf.mxu0
    %v360 = vadd.f32 %v124, %v359
    %361 = vmatprep.mubr.bf16.mxu0 0
    %362 = vmatmul.mubr.bf16.gmra.mxu0 %v199
    %v363 = vpop.f32.mrf.mxu0
    %v364 = vadd.f32 %v120, %v363
    %v365 = vpop.f32.mrf.mxu0
    %v366 = vadd.f32 %v124, %v365
    %v367 = vpop.f32.mrf.mxu0
    %v368 = vadd.f32 %v120, %v367
    %v369 = vpop.f32.mrf.mxu0
    %v370 = vadd.f32 %v124, %v369
    %371 = vmatprep.mubr.bf16.mxu0 0
    %372 = vmatmul.mubr.bf16.gmra.mxu0 %v202
    %v373 = vpop.f32.mrf.mxu0
    %v374 = vadd.f32 %v120, %v373
    %v375 = vpop.f32.mrf.mxu0
    %v376 = vadd.f32 %v124, %v375
    %v377 = vpop.f32.mrf.mxu0
    %v378 = vadd.f32 %v120, %v377
    %v379 = vpop.f32.mrf.mxu0
    %v380 = vadd.f32 %v124, %v379
    %381 = vmatprep.mubr.bf16.mxu0 0
    %382 = vmatmul.mubr.bf16.gmra.mxu0 %v205
    %v383 = vpop.f32.mrf.mxu0
    %v384 = vadd.f32 %v120, %v383
    %v385 = vpop.f32.mrf.mxu0
    %v386 = vadd.f32 %v124, %v385
    %v387 = vpop.f32.mrf.mxu0
    %v388 = vadd.f32 %v120, %v387
    %v389 = vpop.f32.mrf.mxu0
    %v390 = vadd.f32 %v124, %v389
    %391 = vmatprep.mubr.bf16.mxu0 0
    %392 = vmatmul.mubr.bf16.gmra.mxu0 %v208
    %v393 = vpop.f32.mrf.mxu0
    %v394 = vadd.f32 %v120, %v393
    %v395 = vpop.f32.mrf.mxu0
    %v396 = vadd.f32 %v124, %v395
    %v397 = vpop.f32.mrf.mxu0
    %v398 = vadd.f32 %v120, %v397
    %v399 = vpop.f32.mrf.mxu0
    %v400 = vadd.f32 %v124, %v399
    %401 = vmatprep.mubr.bf16.mxu0 0
    %402 = vmatmul.mubr.bf16.gmra.mxu0 %v211
    %v403 = vpop.f32.mrf.mxu0
    %v404 = vadd.f32 %v120, %v403
    %v405 = vpop.f32.mrf.mxu0
    %v406 = vadd.f32 %v124, %v405
    %v407 = vpop.f32.mrf.mxu0
    %v408 = vadd.f32 %v120, %v407
    %v409 = vpop.f32.mrf.mxu0
    %v410 = vadd.f32 %v124, %v409
    %411 = vmatprep.mubr.bf16.mxu0 0
    %412 = vmatmul.mubr.bf16.gmra.mxu0 %v214
    %v413 = vpop.f32.mrf.mxu0
    %v414 = vadd.f32 %v120, %v413
    %v415 = vpop.f32.mrf.mxu0
    %v416 = vadd.f32 %v124, %v415
    %v417 = vpop.f32.mrf.mxu0
    %v418 = vadd.f32 %v120, %v417
    %v419 = vpop.f32.mrf.mxu0
    %v420 = vadd.f32 %v124, %v419
    %421 = vdwg.mxu0
    %422 = vmatprep.subr.bf16.mxu0 0
    %423 = vmatpush1.bf16.msra.mxu0 0
    %424 = vmatprep.subr.bf16.mxu0 0
    %425 = vmatpush1.bf16.msra.mxu0 0
    %426 = vmatprep.subr.bf16.mxu0 0
    %427 = vmatpush1.bf16.msra.mxu0 0
    %428 = vmatprep.subr.bf16.mxu0 0
    %429 = vmatpush1.bf16.msra.mxu0 0
    %430 = vmatprep.subr.bf16.mxu0 0
    %431 = vmatpush1.bf16.msra.mxu0 0
    %432 = vmatprep.subr.bf16.mxu0 0
    %433 = vmatpush1.bf16.msra.mxu0 0
    %434 = vmatprep.subr.bf16.mxu0 %v227
    %435 = vmatpush1.bf16.msra.mxu0 %v224
    %436 = vmatprep.subr.bf16.mxu0 %v158
    %437 = vmatpush1.bf16.msra.mxu0 %v157
    %438 = vmatprep.subr.bf16.mxu0 0
    %439 = vmatpush2.bf16.msra.mxu0 0
    %440 = vmatprep.subr.bf16.mxu0 0
    %441 = vmatpush2.bf16.msra.mxu0 0
    %442 = vmatprep.subr.bf16.mxu0 0
    %443 = vmatpush2.bf16.msra.mxu0 0
    %444 = vmatprep.subr.bf16.mxu0 0
    %445 = vmatpush2.bf16.msra.mxu0 0
    %446 = vmatprep.subr.bf16.mxu0 0
    %447 = vmatpush2.bf16.msra.mxu0 0
    %448 = vmatprep.subr.bf16.mxu0 0
    %449 = vmatpush2.bf16.msra.mxu0 0
    %450 = vmatprep.subr.bf16.mxu0 0
    %451 = vmatpush2.bf16.msra.mxu0 0
    %452 = vmatprep.subr.bf16.mxu0 0
    %453 = vmatpush2.bf16.msra.mxu0 0
    %454 = vmatprep.mubr.bf16.mxu0 0
    %455 = vmatmul.mubr.bf16.gmra.mxu0 %v169
    %v456 = vpop.f32.mrf.mxu0
    %v457 = vadd.f32 %v128, %v456
    %v458 = vpop.f32.mrf.mxu0
    %v459 = vadd.f32 %v132, %v458
    %v460 = vpop.f32.mrf.mxu0
    %v461 = vadd.f32 %v128, %v460
    %v462 = vpop.f32.mrf.mxu0
    %v463 = vadd.f32 %v132, %v462
    %464 = vmatprep.mubr.bf16.mxu0 0
    %465 = vmatmul.mubr.bf16.gmra.mxu0 %v172
    %v466 = vpop.f32.mrf.mxu0
    %v467 = vadd.f32 %v128, %v466
    %v468 = vpop.f32.mrf.mxu0
    %v469 = vadd.f32 %v132, %v468
    %v470 = vpop.f32.mrf.mxu0
    %v471 = vadd.f32 %v128, %v470
    %v472 = vpop.f32.mrf.mxu0
    %v473 = vadd.f32 %v132, %v472
    %474 = vmatprep.mubr.bf16.mxu0 0
    %475 = vmatmul.mubr.bf16.gmra.mxu0 %v175
    %v476 = vpop.f32.mrf.mxu0
    %v477 = vadd.f32 %v128, %v476
    %v478 = vpop.f32.mrf.mxu0
    %v479 = vadd.f32 %v132, %v478
    %v480 = vpop.f32.mrf.mxu0
    %v481 = vadd.f32 %v128, %v480
    %v482 = vpop.f32.mrf.mxu0
    %v483 = vadd.f32 %v132, %v482
    %484 = vmatprep.mubr.bf16.mxu0 0
    %485 = vmatmul.mubr.bf16.gmra.mxu0 %v178
    %v486 = vpop.f32.mrf.mxu0
    %v487 = vadd.f32 %v128, %v486
    %v488 = vpop.f32.mrf.mxu0
    %v489 = vadd.f32 %v132, %v488
    %v490 = vpop.f32.mrf.mxu0
    %v491 = vadd.f32 %v128, %v490
    %v492 = vpop.f32.mrf.mxu0
    %v493 = vadd.f32 %v132, %v492
    %494 = vmatprep.mubr.bf16.mxu0 0
    %495 = vmatmul.mubr.bf16.gmra.mxu0 %v181
    %v496 = vpop.f32.mrf.mxu0
    %v497 = vadd.f32 %v128, %v496
    %v498 = vpop.f32.mrf.mxu0
    %v499 = vadd.f32 %v132, %v498
    %v500 = vpop.f32.mrf.mxu0
    %v501 = vadd.f32 %v128, %v500
    %v502 = vpop.f32.mrf.mxu0
    %v503 = vadd.f32 %v132, %v502
    %504 = vmatprep.mubr.bf16.mxu0 0
    %505 = vmatmul.mubr.bf16.gmra.mxu0 %v184
    %v506 = vpop.f32.mrf.mxu0
    %v507 = vadd.f32 %v128, %v506
    %v508 = vpop.f32.mrf.mxu0
    %v509 = vadd.f32 %v132, %v508
    %v510 = vpop.f32.mrf.mxu0
    %v511 = vadd.f32 %v128, %v510
    %v512 = vpop.f32.mrf.mxu0
    %v513 = vadd.f32 %v132, %v512
    %514 = vmatprep.mubr.bf16.mxu0 0
    %515 = vmatmul.mubr.bf16.gmra.mxu0 %v187
    %v516 = vpop.f32.mrf.mxu0
    %v517 = vadd.f32 %v128, %v516
    %v518 = vpop.f32.mrf.mxu0
    %v519 = vadd.f32 %v132, %v518
    %v520 = vpop.f32.mrf.mxu0
    %v521 = vadd.f32 %v128, %v520
    %v522 = vpop.f32.mrf.mxu0
    %v523 = vadd.f32 %v132, %v522
    %524 = vmatprep.mubr.bf16.mxu0 0
    %525 = vmatmul.mubr.bf16.gmra.mxu0 %v190
    %v526 = vpop.f32.mrf.mxu0
    %v527 = vadd.f32 %v128, %v526
    %v528 = vpop.f32.mrf.mxu0
    %v529 = vadd.f32 %v132, %v528
    %v530 = vpop.f32.mrf.mxu0
    %v531 = vadd.f32 %v128, %v530
    %v532 = vpop.f32.mrf.mxu0
    %v533 = vadd.f32 %v132, %v532
    %534 = vmatprep.mubr.bf16.mxu0 0
    %535 = vmatmul.mubr.bf16.gmra.mxu0 %v193
    %v536 = vpop.f32.mrf.mxu0
    %v537 = vadd.f32 %v128, %v536
    %v538 = vpop.f32.mrf.mxu0
    %v539 = vadd.f32 %v132, %v538
    %v540 = vpop.f32.mrf.mxu0
    %v541 = vadd.f32 %v128, %v540
    %v542 = vpop.f32.mrf.mxu0
    %v543 = vadd.f32 %v132, %v542
    %544 = vmatprep.mubr.bf16.mxu0 0
    %545 = vmatmul.mubr.bf16.gmra.mxu0 %v196
    %v546 = vpop.f32.mrf.mxu0
    %v547 = vadd.f32 %v128, %v546
    %v548 = vpop.f32.mrf.mxu0
    %v549 = vadd.f32 %v132, %v548
    %v550 = vpop.f32.mrf.mxu0
    %v551 = vadd.f32 %v128, %v550
    %v552 = vpop.f32.mrf.mxu0
    %v553 = vadd.f32 %v132, %v552
    %554 = vmatprep.mubr.bf16.mxu0 0
    %555 = vmatmul.mubr.bf16.gmra.mxu0 %v199
    %v556 = vpop.f32.mrf.mxu0
    %v557 = vadd.f32 %v128, %v556
    %v558 = vpop.f32.mrf.mxu0
    %v559 = vadd.f32 %v132, %v558
    %v560 = vpop.f32.mrf.mxu0
    %v561 = vadd.f32 %v128, %v560
    %v562 = vpop.f32.mrf.mxu0
    %v563 = vadd.f32 %v132, %v562
    %564 = vmatprep.mubr.bf16.mxu0 0
    %565 = vmatmul.mubr.bf16.gmra.mxu0 %v202
    %v566 = vpop.f32.mrf.mxu0
    %v567 = vadd.f32 %v128, %v566
    %v568 = vpop.f32.mrf.mxu0
    %v569 = vadd.f32 %v132, %v568
    %v570 = vpop.f32.mrf.mxu0
    %v571 = vadd.f32 %v128, %v570
    %v572 = vpop.f32.mrf.mxu0
    %v573 = vadd.f32 %v132, %v572
    %574 = vmatprep.mubr.bf16.mxu0 0
    %575 = vmatmul.mubr.bf16.gmra.mxu0 %v205
    %v576 = vpop.f32.mrf.mxu0
    %v577 = vadd.f32 %v128, %v576
    %v578 = vpop.f32.mrf.mxu0
    %v579 = vadd.f32 %v132, %v578
    %v580 = vpop.f32.mrf.mxu0
    %v581 = vadd.f32 %v128, %v580
    %v582 = vpop.f32.mrf.mxu0
    %v583 = vadd.f32 %v132, %v582
    %584 = vmatprep.mubr.bf16.mxu0 0
    %585 = vmatmul.mubr.bf16.gmra.mxu0 %v208
    %v586 = vpop.f32.mrf.mxu0
    %v587 = vadd.f32 %v128, %v586
    %v588 = vpop.f32.mrf.mxu0
    %v589 = vadd.f32 %v132, %v588
    %v590 = vpop.f32.mrf.mxu0
    %v591 = vadd.f32 %v128, %v590
    %v592 = vpop.f32.mrf.mxu0
    %v593 = vadd.f32 %v132, %v592
    %594 = vmatprep.mubr.bf16.mxu0 0
    %595 = vmatmul.mubr.bf16.gmra.mxu0 %v211
    %v596 = vpop.f32.mrf.mxu0
    %v597 = vadd.f32 %v128, %v596
    %v598 = vpop.f32.mrf.mxu0
    %v599 = vadd.f32 %v132, %v598
    %v600 = vpop.f32.mrf.mxu0
    %v601 = vadd.f32 %v128, %v600
    %v602 = vpop.f32.mrf.mxu0
    %v603 = vadd.f32 %v132, %v602
    %604 = vmatprep.mubr.bf16.mxu0 0
    %605 = vmatmul.mubr.bf16.gmra.mxu0 %v214
    %v606 = vpop.f32.mrf.mxu0
    %v607 = vadd.f32 %v128, %v606
    %v608 = vpop.f32.mrf.mxu0
    %v609 = vadd.f32 %v132, %v608
    %v610 = vpop.f32.mrf.mxu0
    %v611 = vadd.f32 %v128, %v610
    %v612 = vpop.f32.mrf.mxu0
    %v613 = vadd.f32 %v132, %v612
    %614 = vdwg.mxu0
    %v615 = vmul.f32 %v264, 0.2
    %v616 = vmul.f32 %v266, 0.2
    %v617 = vmul.f32 %v457, 0.2
    %v618 = vmul.f32 %v459, 0.2
    %v619 = vmul.f32 %v268, 0.2
    %v620 = vmul.f32 %v270, 0.2
    %v621 = vmul.f32 %v461, 0.2
    %v622 = vmul.f32 %v463, 0.2
    %v623 = vmul.f32 %v274, 0.2
    %v624 = vmul.f32 %v276, 0.2
    %v625 = vmul.f32 %v467, 0.2
    %v626 = vmul.f32 %v469, 0.2
    %v627 = vmul.f32 %v278, 0.2
    %v628 = vmul.f32 %v280, 0.2
    %v629 = vmul.f32 %v471, 0.2
    %v630 = vmul.f32 %v473, 0.2
    %v631 = vmul.f32 %v284, 0.2
    %v632 = vmul.f32 %v286, 0.2
    %v633 = vmul.f32 %v477, 0.2
    %v634 = vmul.f32 %v479, 0.2
    %v635 = vmul.f32 %v288, 0.2
    %v636 = vmul.f32 %v290, 0.2
    %v637 = vmul.f32 %v481, 0.2
    %v638 = vmul.f32 %v483, 0.2
    %v639 = vmul.f32 %v294, 0.2
    %v640 = vmul.f32 %v296, 0.2
    %v641 = vmul.f32 %v487, 0.2
    %v642 = vmul.f32 %v489, 0.2
    %v643 = vmul.f32 %v298, 0.2
    %v644 = vmul.f32 %v300, 0.2
    %v645 = vmul.f32 %v491, 0.2
    %v646 = vmul.f32 %v493, 0.2
    %v647 = vmul.f32 %v304, 0.2
    %v648 = vmul.f32 %v306, 0.2
    %v649 = vmul.f32 %v497, 0.2
    %v650 = vmul.f32 %v499, 0.2
    %v651 = vmul.f32 %v308, 0.2
    %v652 = vmul.f32 %v310, 0.2
    %v653 = vmul.f32 %v501, 0.2
    %v654 = vmul.f32 %v503, 0.2
    %v655 = vmul.f32 %v314, 0.2
    %v656 = vmul.f32 %v316, 0.2
    %v657 = vmul.f32 %v507, 0.2
    %v658 = vmul.f32 %v509, 0.2
    %v659 = vmul.f32 %v318, 0.2
    %v660 = vmul.f32 %v320, 0.2
    %v661 = vmul.f32 %v511, 0.2
    %v662 = vmul.f32 %v513, 0.2
    %v663 = vmul.f32 %v324, 0.2
    %v664 = vmul.f32 %v326, 0.2
    %v665 = vmul.f32 %v517, 0.2
    %v666 = vmul.f32 %v519, 0.2
    %v667 = vmul.f32 %v328, 0.2
    %v668 = vmul.f32 %v330, 0.2
    %v669 = vmul.f32 %v521, 0.2
    %v670 = vmul.f32 %v523, 0.2
    %v671 = vmul.f32 %v334, 0.2
    %v672 = vmul.f32 %v336, 0.2
    %v673 = vmul.f32 %v527, 0.2
    %v674 = vmul.f32 %v529, 0.2
    %v675 = vmul.f32 %v338, 0.2
    %v676 = vmul.f32 %v340, 0.2
    %v677 = vmul.f32 %v531, 0.2
    %v678 = vmul.f32 %v533, 0.2
    %v679 = vmul.f32 %v344, 0.2
    %v680 = vmul.f32 %v346, 0.2
    %v681 = vmul.f32 %v537, 0.2
    %v682 = vmul.f32 %v539, 0.2
    %v683 = vmul.f32 %v348, 0.2
    %v684 = vmul.f32 %v350, 0.2
    %v685 = vmul.f32 %v541, 0.2
    %v686 = vmul.f32 %v543, 0.2
    %v687 = vmul.f32 %v354, 0.2
    %v688 = vmul.f32 %v356, 0.2
    %v689 = vmul.f32 %v547, 0.2
    %v690 = vmul.f32 %v549, 0.2
    %v691 = vmul.f32 %v358, 0.2
    %v692 = vmul.f32 %v360, 0.2
    %v693 = vmul.f32 %v551, 0.2
    %v694 = vmul.f32 %v553, 0.2
    %v695 = vmul.f32 %v364, 0.2
    %v696 = vmul.f32 %v366, 0.2
    %v697 = vmul.f32 %v557, 0.2
    %v698 = vmul.f32 %v559, 0.2
    %v699 = vmul.f32 %v368, 0.2
    %v700 = vmul.f32 %v370, 0.2
    %v701 = vmul.f32 %v561, 0.2
    %v702 = vmul.f32 %v563, 0.2
    %v703 = vmul.f32 %v374, 0.2
    %v704 = vmul.f32 %v376, 0.2
    %v705 = vmul.f32 %v567, 0.2
    %v706 = vmul.f32 %v569, 0.2
    %v707 = vmul.f32 %v378, 0.2
    %v708 = vmul.f32 %v380, 0.2
    %v709 = vmul.f32 %v571, 0.2
    %v710 = vmul.f32 %v573, 0.2
    %v711 = vmul.f32 %v384, 0.2
    %v712 = vmul.f32 %v386, 0.2
    %v713 = vmul.f32 %v577, 0.2
    %v714 = vmul.f32 %v579, 0.2
    %v715 = vmul.f32 %v388, 0.2
    %v716 = vmul.f32 %v390, 0.2
    %v717 = vmul.f32 %v581, 0.2
    %v718 = vmul.f32 %v583, 0.2
    %v719 = vmul.f32 %v394, 0.2
    %v720 = vmul.f32 %v396, 0.2
    %v721 = vmul.f32 %v587, 0.2
    %v722 = vmul.f32 %v589, 0.2
    %v723 = vmul.f32 %v398, 0.2
    %v724 = vmul.f32 %v400, 0.2
    %v725 = vmul.f32 %v591, 0.2
    %v726 = vmul.f32 %v593, 0.2
    %v727 = vmul.f32 %v404, 0.2
    %v728 = vmul.f32 %v406, 0.2
    %v729 = vmul.f32 %v597, 0.2
    %v730 = vmul.f32 %v599, 0.2
    %v731 = vmul.f32 %v408, 0.2
    %v732 = vmul.f32 %v410, 0.2
    %v733 = vmul.f32 %v601, 0.2
    %v734 = vmul.f32 %v603, 0.2
    %v735 = vmul.f32 %v414, 0.2
    %v736 = vmul.f32 %v416, 0.2
    %v737 = vmul.f32 %v607, 0.2
    %v738 = vmul.f32 %v609, 0.2
    %v739 = vmul.f32 %v418, 0.2
    %v740 = vmul.f32 %v420, 0.2
    %v741 = vmul.f32 %v611, 0.2
    %v742 = vmul.f32 %v613, 0.2
    %v743 = vmax.f32 %v264, %v615
    %v744 = vmax.f32 %v266, %v616
    %v745 = vmax.f32 %v457, %v617
    %v746 = vmax.f32 %v459, %v618
    %v747 = vmax.f32 %v268, %v619
    %v748 = vmax.f32 %v270, %v620
    %v749 = vmax.f32 %v461, %v621
    %v750 = vmax.f32 %v463, %v622
    %v751 = vmax.f32 %v274, %v623
    %v752 = vmax.f32 %v276, %v624
    %v753 = vmax.f32 %v467, %v625
    %v754 = vmax.f32 %v469, %v626
    %v755 = vmax.f32 %v278, %v627
    %v756 = vmax.f32 %v280, %v628
    %v757 = vmax.f32 %v471, %v629
    %v758 = vmax.f32 %v473, %v630
    %v759 = vmax.f32 %v284, %v631
    %v760 = vmax.f32 %v286, %v632
    %v761 = vmax.f32 %v477, %v633
    %v762 = vmax.f32 %v479, %v634
    %v763 = vmax.f32 %v288, %v635
    %v764 = vmax.f32 %v290, %v636
    %v765 = vmax.f32 %v481, %v637
    %v766 = vmax.f32 %v483, %v638
    %v767 = vmax.f32 %v294, %v639
    %v768 = vmax.f32 %v296, %v640
    %v769 = vmax.f32 %v487, %v641
    %v770 = vmax.f32 %v489, %v642
    %v771 = vmax.f32 %v298, %v643
    %v772 = vmax.f32 %v300, %v644
    %v773 = vmax.f32 %v491, %v645
    %v774 = vmax.f32 %v493, %v646
    %v775 = vmax.f32 %v304, %v647
    %v776 = vmax.f32 %v306, %v648
    %v777 = vmax.f32 %v497, %v649
    %v778 = vmax.f32 %v499, %v650
    %v779 = vmax.f32 %v308, %v651
    %v780 = vmax.f32 %v310, %v652
    %v781 = vmax.f32 %v501, %v653
    %v782 = vmax.f32 %v503, %v654
    %v783 = vmax.f32 %v314, %v655
    %v784 = vmax.f32 %v316, %v656
    %v785 = vmax.f32 %v507, %v657
    %v786 = vmax.f32 %v509, %v658
    %v787 = vmax.f32 %v318, %v659
    %v788 = vmax.f32 %v320, %v660
    %v789 = vmax.f32 %v511, %v661
    %v790 = vmax.f32 %v513, %v662
    %v791 = vmax.f32 %v324, %v663
    %v792 = vmax.f32 %v326, %v664
    %v793 = vmax.f32 %v517, %v665
    %v794 = vmax.f32 %v519, %v666
    %v795 = vmax.f32 %v328, %v667
    %v796 = vmax.f32 %v330, %v668
    %v797 = vmax.f32 %v521, %v669
    %v798 = vmax.f32 %v523, %v670
    %v799 = vmax.f32 %v334, %v671
    %v800 = vmax.f32 %v336, %v672
    %v801 = vmax.f32 %v527, %v673
    %v802 = vmax.f32 %v529, %v674
    %v803 = vmax.f32 %v338, %v675
    %v804 = vmax.f32 %v340, %v676
    %v805 = vmax.f32 %v531, %v677
    %v806 = vmax.f32 %v533, %v678
    %v807 = vmax.f32 %v344, %v679
    %v808 = vmax.f32 %v346, %v680
    %v809 = vmax.f32 %v537, %v681
    %v810 = vmax.f32 %v539, %v682
    %v811 = vmax.f32 %v348, %v683
    %v812 = vmax.f32 %v350, %v684
    %v813 = vmax.f32 %v541, %v685
    %v814 = vmax.f32 %v543, %v686
    %v815 = vmax.f32 %v354, %v687
    %v816 = vmax.f32 %v356, %v688
    %v817 = vmax.f32 %v547, %v689
    %v818 = vmax.f32 %v549, %v690
    %v819 = vmax.f32 %v358, %v691
    %v820 = vmax.f32 %v360, %v692
    %v821 = vmax.f32 %v551, %v693
    %v822 = vmax.f32 %v553, %v694
    %v823 = vmax.f32 %v364, %v695
    %v824 = vmax.f32 %v366, %v696
    %v825 = vmax.f32 %v557, %v697
    %v826 = vmax.f32 %v559, %v698
    %v827 = vmax.f32 %v368, %v699
    %v828 = vmax.f32 %v370, %v700
    %v829 = vmax.f32 %v561, %v701
    %v830 = vmax.f32 %v563, %v702
    %v831 = vmax.f32 %v374, %v703
    %v832 = vmax.f32 %v376, %v704
    %v833 = vmax.f32 %v567, %v705
    %v834 = vmax.f32 %v569, %v706
    %v835 = vmax.f32 %v378, %v707
    %v836 = vmax.f32 %v380, %v708
    %v837 = vmax.f32 %v571, %v709
    %v838 = vmax.f32 %v573, %v710
    %v839 = vmax.f32 %v384, %v711
    %v840 = vmax.f32 %v386, %v712
    %v841 = vmax.f32 %v577, %v713
    %v842 = vmax.f32 %v579, %v714
    %v843 = vmax.f32 %v388, %v715
    %v844 = vmax.f32 %v390, %v716
    %v845 = vmax.f32 %v581, %v717
    %v846 = vmax.f32 %v583, %v718
    %v847 = vmax.f32 %v394, %v719
    %v848 = vmax.f32 %v396, %v720
    %v849 = vmax.f32 %v587, %v721
    %v850 = vmax.f32 %v589, %v722
    %v851 = vmax.f32 %v398, %v723
    %v852 = vmax.f32 %v400, %v724
    %v853 = vmax.f32 %v591, %v725
    %v854 = vmax.f32 %v593, %v726
    %v855 = vmax.f32 %v404, %v727
    %v856 = vmax.f32 %v406, %v728
    %v857 = vmax.f32 %v597, %v729
    %v858 = vmax.f32 %v599, %v730
    %v859 = vmax.f32 %v408, %v731
    %v860 = vmax.f32 %v410, %v732
    %v861 = vmax.f32 %v601, %v733
    %v862 = vmax.f32 %v603, %v734
    %v863 = vmax.f32 %v414, %v735
    %v864 = vmax.f32 %v416, %v736
    %v865 = vmax.f32 %v607, %v737
    %v866 = vmax.f32 %v609, %v738
    %v867 = vmax.f32 %v418, %v739
    %v868 = vmax.f32 %v420, %v740
    %v869 = vmax.f32 %v611, %v741
    %v870 = vmax.f32 %v613, %v742
    %v871 = vpack.c.bf16 %v747, %v743
    %v872 = vpack.c.bf16 %v748, %v744
    %v873 = vpack.c.bf16 %v749, %v745
    %v874 = vpack.c.bf16 %v750, %v746
    %v875 = vpack.c.bf16 %v755, %v751
    %v876 = vpack.c.bf16 %v756, %v752
    %v877 = vpack.c.bf16 %v757, %v753
    %v878 = vpack.c.bf16 %v758, %v754
    %v879 = vpack.c.bf16 %v763, %v759
    %v880 = vpack.c.bf16 %v764, %v760
    %v881 = vpack.c.bf16 %v765, %v761
    %v882 = vpack.c.bf16 %v766, %v762
    %v883 = vpack.c.bf16 %v771, %v767
    %v884 = vpack.c.bf16 %v772, %v768
    %v885 = vpack.c.bf16 %v773, %v769
    %v886 = vpack.c.bf16 %v774, %v770
    %v887 = vpack.c.bf16 %v779, %v775
    %v888 = vpack.c.bf16 %v780, %v776
    %v889 = vpack.c.bf16 %v781, %v777
    %v890 = vpack.c.bf16 %v782, %v778
    %v891 = vpack.c.bf16 %v787, %v783
    %v892 = vpack.c.bf16 %v788, %v784
    %v893 = vpack.c.bf16 %v789, %v785
    %v894 = vpack.c.bf16 %v790, %v786
    %v895 = vpack.c.bf16 %v795, %v791
    %v896 = vpack.c.bf16 %v796, %v792
    %v897 = vpack.c.bf16 %v797, %v793
    %v898 = vpack.c.bf16 %v798, %v794
    %v899 = vpack.c.bf16 %v803, %v799
    %v900 = vpack.c.bf16 %v804, %v800
    %v901 = vpack.c.bf16 %v805, %v801
    %v902 = vpack.c.bf16 %v806, %v802
    %v903 = vpack.c.bf16 %v811, %v807
    %v904 = vpack.c.bf16 %v812, %v808
    %v905 = vpack.c.bf16 %v813, %v809
    %v906 = vpack.c.bf16 %v814, %v810
    %v907 = vpack.c.bf16 %v819, %v815
    %v908 = vpack.c.bf16 %v820, %v816
    %v909 = vpack.c.bf16 %v821, %v817
    %v910 = vpack.c.bf16 %v822, %v818
    %v911 = vpack.c.bf16 %v827, %v823
    %v912 = vpack.c.bf16 %v828, %v824
    %v913 = vpack.c.bf16 %v829, %v825
    %v914 = vpack.c.bf16 %v830, %v826
    %v915 = vpack.c.bf16 %v835, %v831
    %v916 = vpack.c.bf16 %v836, %v832
    %v917 = vpack.c.bf16 %v837, %v833
    %v918 = vpack.c.bf16 %v838, %v834
    %v919 = vpack.c.bf16 %v843, %v839
    %v920 = vpack.c.bf16 %v844, %v840
    %v921 = vpack.c.bf16 %v845, %v841
    %v922 = vpack.c.bf16 %v846, %v842
    %v923 = vpack.c.bf16 %v851, %v847
    %v924 = vpack.c.bf16 %v852, %v848
    %v925 = vpack.c.bf16 %v853, %v849
    %v926 = vpack.c.bf16 %v854, %v850
    %v927 = vpack.c.bf16 %v859, %v855
    %v928 = vpack.c.bf16 %v860, %v856
    %v929 = vpack.c.bf16 %v861, %v857
    %v930 = vpack.c.bf16 %v862, %v858
    %v931 = vpack.c.bf16 %v867, %v863
    %v932 = vpack.c.bf16 %v868, %v864
    %v933 = vpack.c.bf16 %v869, %v865
    %v934 = vpack.c.bf16 %v870, %v866
    %v935 = vld [vmem:[#allocation2] sm:$0xff]
    %v936 = vld [vmem:[#allocation2 + $0x8] sm:$0xff]
    %v937 = vld [vmem:[#allocation2 + $0x10] sm:$0xff]
    %v938 = vld [vmem:[#allocation2 + $0x18] sm:$0xff]
    %v939 = vld [vmem:[#allocation2 + $0x20] sm:$0xff]
    %v940 = vld [vmem:[#allocation2 + $0x28] sm:$0xff]
    %v941 = vld [vmem:[#allocation2 + $0x30] sm:$0xff]
    %v942 = vld [vmem:[#allocation2 + $0x38] sm:$0xff]
    %v943 = vld [vmem:[#allocation2 + $0x40] sm:$0xff]
    %v944 = vld [vmem:[#allocation2 + $0x48] sm:$0xff]
    %v945 = vld [vmem:[#allocation2 + $0x50] sm:$0xff]
    %v946 = vld [vmem:[#allocation2 + $0x58] sm:$0xff]
    %v947 = vld [vmem:[#allocation2 + $0x60] sm:$0xff]
    %v948 = vld [vmem:[#allocation2 + $0x68] sm:$0xff]
    %v949 = vld [vmem:[#allocation2 + $0x70] sm:$0xff]
    %v950 = vld [vmem:[#allocation2 + $0x78] sm:$0xff]
    %v951 = vld [vmem:[#allocation2 + $0x80] sm:$0xff]
    %v952 = vld [vmem:[#allocation2 + $0x88] sm:$0xff]
    %v953 = vld [vmem:[#allocation2 + $0x90] sm:$0xff]
    %v954 = vld [vmem:[#allocation2 + $0x98] sm:$0xff]
    %v955 = vld [vmem:[#allocation2 + $0xa0] sm:$0xff]
    %v956 = vld [vmem:[#allocation2 + $0xa8] sm:$0xff]
    %v957 = vld [vmem:[#allocation2 + $0xb0] sm:$0xff]
    %v958 = vld [vmem:[#allocation2 + $0xb8] sm:$0xff]
    %v959 = vld [vmem:[#allocation2 + $0xc0] sm:$0xff]
    %v960 = vld [vmem:[#allocation2 + $0xc8] sm:$0xff]
    %v961 = vld [vmem:[#allocation2 + $0xd0] sm:$0xff]
    %v962 = vld [vmem:[#allocation2 + $0xd8] sm:$0xff]
    %v963 = vld [vmem:[#allocation2 + $0xe0] sm:$0xff]
    %v964 = vld [vmem:[#allocation2 + $0xe8] sm:$0xff]
    %v965 = vld [vmem:[#allocation2 + $0xf0] sm:$0xff]
    %v966 = vld [vmem:[#allocation2 + $0xf8] sm:$0xff]
    %v967 = vld [vmem:[#allocation2 + $0x100] sm:$0xff]
    %v968 = vld [vmem:[#allocation2 + $0x108] sm:$0xff]
    %v969 = vld [vmem:[#allocation2 + $0x110] sm:$0xff]
    %v970 = vld [vmem:[#allocation2 + $0x118] sm:$0xff]
    %v971 = vld [vmem:[#allocation2 + $0x120] sm:$0xff]
    %v972 = vld [vmem:[#allocation2 + $0x128] sm:$0xff]
    %v973 = vld [vmem:[#allocation2 + $0x130] sm:$0xff]
    %v974 = vld [vmem:[#allocation2 + $0x138] sm:$0xff]
    %v975 = vld [vmem:[#allocation2 + $0x140] sm:$0xff]
    %v976 = vld [vmem:[#allocation2 + $0x148] sm:$0xff]
    %v977 = vld [vmem:[#allocation2 + $0x150] sm:$0xff]
    %v978 = vld [vmem:[#allocation2 + $0x158] sm:$0xff]
    %v979 = vld [vmem:[#allocation2 + $0x160] sm:$0xff]
    %v980 = vld [vmem:[#allocation2 + $0x168] sm:$0xff]
    %v981 = vld [vmem:[#allocation2 + $0x170] sm:$0xff]
    %v982 = vld [vmem:[#allocation2 + $0x178] sm:$0xff]
    %v983 = vld [vmem:[#allocation2 + $0x180] sm:$0xff]
    %v984 = vld [vmem:[#allocation2 + $0x188] sm:$0xff]
    %v985 = vld [vmem:[#allocation2 + $0x190] sm:$0xff]
    %v986 = vld [vmem:[#allocation2 + $0x198] sm:$0xff]
    %v987 = vld [vmem:[#allocation2 + $0x1a0] sm:$0xff]
    %v988 = vld [vmem:[#allocation2 + $0x1a8] sm:$0xff]
    %v989 = vld [vmem:[#allocation2 + $0x1b0] sm:$0xff]
    %v990 = vld [vmem:[#allocation2 + $0x1b8] sm:$0xff]
    %v991 = vld [vmem:[#allocation2 + $0x1c0] sm:$0xff]
    %v992 = vld [vmem:[#allocation2 + $0x1c8] sm:$0xff]
    %v993 = vld [vmem:[#allocation2 + $0x1d0] sm:$0xff]
    %v994 = vld [vmem:[#allocation2 + $0x1d8] sm:$0xff]
    %v995 = vld [vmem:[#allocation2 + $0x1e0] sm:$0xff]
    %v996 = vld [vmem:[#allocation2 + $0x1e8] sm:$0xff]
    %v997 = vld [vmem:[#allocation2 + $0x1f0] sm:$0xff]
    %v998 = vld [vmem:[#allocation2 + $0x1f8] sm:$0xff]
    %v999 = vld [vmem:[#allocation2 + $0x200] sm:$0xff]
    %v1000 = vld [vmem:[#allocation2 + $0x208] sm:$0xff]
    %v1001 = vld [vmem:[#allocation2 + $0x210] sm:$0xff]
    %v1002 = vld [vmem:[#allocation2 + $0x218] sm:$0xff]
    %v1003 = vld [vmem:[#allocation2 + $0x220] sm:$0xff]
    %v1004 = vld [vmem:[#allocation2 + $0x228] sm:$0xff]
    %v1005 = vld [vmem:[#allocation2 + $0x230] sm:$0xff]
    %v1006 = vld [vmem:[#allocation2 + $0x238] sm:$0xff]
    %v1007 = vld [vmem:[#allocation2 + $0x240] sm:$0xff]
    %v1008 = vld [vmem:[#allocation2 + $0x248] sm:$0xff]
    %v1009 = vld [vmem:[#allocation2 + $0x250] sm:$0xff]
    %v1010 = vld [vmem:[#allocation2 + $0x258] sm:$0xff]
    %v1011 = vld [vmem:[#allocation2 + $0x260] sm:$0xff]
    %v1012 = vld [vmem:[#allocation2 + $0x268] sm:$0xff]
    %v1013 = vld [vmem:[#allocation2 + $0x270] sm:$0xff]
    %v1014 = vld [vmem:[#allocation2 + $0x278] sm:$0xff]
    %v1015 = vld [vmem:[#allocation2 + $0x280] sm:$0xff]
    %v1016 = vld [vmem:[#allocation2 + $0x288] sm:$0xff]
    %v1017 = vld [vmem:[#allocation2 + $0x290] sm:$0xff]
    %v1018 = vld [vmem:[#allocation2 + $0x298] sm:$0xff]
    %v1019 = vld [vmem:[#allocation2 + $0x2a0] sm:$0xff]
    %v1020 = vld [vmem:[#allocation2 + $0x2a8] sm:$0xff]
    %v1021 = vld [vmem:[#allocation2 + $0x2b0] sm:$0xff]
    %v1022 = vld [vmem:[#allocation2 + $0x2b8] sm:$0xff]
    %v1023 = vld [vmem:[#allocation2 + $0x2c0] sm:$0xff]
    %v1024 = vld [vmem:[#allocation2 + $0x2c8] sm:$0xff]
    %v1025 = vld [vmem:[#allocation2 + $0x2d0] sm:$0xff]
    %v1026 = vld [vmem:[#allocation2 + $0x2d8] sm:$0xff]
    %v1027 = vld [vmem:[#allocation2 + $0x2e0] sm:$0xff]
    %v1028 = vld [vmem:[#allocation2 + $0x2e8] sm:$0xff]
    %v1029 = vld [vmem:[#allocation2 + $0x2f0] sm:$0xff]
    %v1030 = vld [vmem:[#allocation2 + $0x2f8] sm:$0xff]
    %v1031 = vld [vmem:[#allocation2 + $0x300] sm:$0xff]
    %v1032 = vld [vmem:[#allocation2 + $0x308] sm:$0xff]
    %v1033 = vld [vmem:[#allocation2 + $0x310] sm:$0xff]
    %v1034 = vld [vmem:[#allocation2 + $0x318] sm:$0xff]
    %v1035 = vld [vmem:[#allocation2 + $0x320] sm:$0xff]
    %v1036 = vld [vmem:[#allocation2 + $0x328] sm:$0xff]
    %v1037 = vld [vmem:[#allocation2 + $0x330] sm:$0xff]
    %v1038 = vld [vmem:[#allocation2 + $0x338] sm:$0xff]
    %v1039 = vld [vmem:[#allocation2 + $0x340] sm:$0xff]
    %v1040 = vld [vmem:[#allocation2 + $0x348] sm:$0xff]
    %v1041 = vld [vmem:[#allocation2 + $0x350] sm:$0xff]
    %v1042 = vld [vmem:[#allocation2 + $0x358] sm:$0xff]
    %v1043 = vld [vmem:[#allocation2 + $0x360] sm:$0xff]
    %v1044 = vld [vmem:[#allocation2 + $0x368] sm:$0xff]
    %v1045 = vld [vmem:[#allocation2 + $0x370] sm:$0xff]
    %v1046 = vld [vmem:[#allocation2 + $0x378] sm:$0xff]
    %v1047 = vld [vmem:[#allocation2 + $0x380] sm:$0xff]
    %v1048 = vld [vmem:[#allocation2 + $0x388] sm:$0xff]
    %v1049 = vld [vmem:[#allocation2 + $0x390] sm:$0xff]
    %v1050 = vld [vmem:[#allocation2 + $0x398] sm:$0xff]
    %v1051 = vld [vmem:[#allocation2 + $0x3a0] sm:$0xff]
    %v1052 = vld [vmem:[#allocation2 + $0x3a8] sm:$0xff]
    %v1053 = vld [vmem:[#allocation2 + $0x3b0] sm:$0xff]
    %v1054 = vld [vmem:[#allocation2 + $0x3b8] sm:$0xff]
    %v1055 = vld [vmem:[#allocation2 + $0x3c0] sm:$0xff]
    %v1056 = vld [vmem:[#allocation2 + $0x3c8] sm:$0xff]
    %v1057 = vld [vmem:[#allocation2 + $0x3d0] sm:$0xff]
    %v1058 = vld [vmem:[#allocation2 + $0x3d8] sm:$0xff]
    %v1059 = vld [vmem:[#allocation2 + $0x3e0] sm:$0xff]
    %v1060 = vld [vmem:[#allocation2 + $0x3e8] sm:$0xff]
    %v1061 = vld [vmem:[#allocation2 + $0x3f0] sm:$0xff]
    %v1062 = vld [vmem:[#allocation2 + $0x3f8] sm:$0xff]
    %v1063 = vld [vmem:[%s4] sm:$0xf]
    %v1065 = vlaneseq
    %v1066 = vshrl.u32 %v1065, 7
    %v1067 = vsub.s32 0, %v1066
    %v1068 = vrot.slane %v1063, %v1067
    %v1069 = vlaneseq
    %v1070 = vshrl.u32 %v1069, 7
    %v1071 = vsub.s32 1, %v1070
    %v1072 = vrot.slane %v1063, %v1071
    %v1073 = vlaneseq
    %v1074 = vshrl.u32 %v1073, 7
    %v1075 = vsub.s32 2, %v1074
    %v1076 = vrot.slane %v1063, %v1075
    %v1077 = vlaneseq
    %v1078 = vshrl.u32 %v1077, 7
    %v1079 = vsub.s32 3, %v1078
    %v1080 = vrot.slane %v1063, %v1079
    %v1213 = vunpack.c.l.b16 %v935
    %v1214 = vunpack.c.h.b16 %v935
    %v1215 = vunpack.c.l.b16 %v936
    %v1216 = vunpack.c.h.b16 %v936
    %v1217 = vunpack.c.l.b16 %v937
    %v1218 = vunpack.c.h.b16 %v937
    %v1219 = vunpack.c.l.b16 %v938
    %v1220 = vunpack.c.h.b16 %v938
    %v1221 = vunpack.c.l.b16 %v939
    %v1222 = vunpack.c.h.b16 %v939
    %v1223 = vunpack.c.l.b16 %v940
    %v1224 = vunpack.c.h.b16 %v940
    %v1225 = vunpack.c.l.b16 %v941
    %v1226 = vunpack.c.h.b16 %v941
    %v1227 = vunpack.c.l.b16 %v942
    %v1228 = vunpack.c.h.b16 %v942
    %v1229 = vunpack.c.l.b16 %v943
    %v1230 = vunpack.c.h.b16 %v943
    %v1231 = vunpack.c.l.b16 %v944
    %v1232 = vunpack.c.h.b16 %v944
    %v1233 = vunpack.c.l.b16 %v945
    %v1234 = vunpack.c.h.b16 %v945
    %v1235 = vunpack.c.l.b16 %v946
    %v1236 = vunpack.c.h.b16 %v946
    %v1237 = vunpack.c.l.b16 %v947
    %v1238 = vunpack.c.h.b16 %v947
    %v1239 = vunpack.c.l.b16 %v948
    %v1240 = vunpack.c.h.b16 %v948
    %v1241 = vunpack.c.l.b16 %v949
    %v1242 = vunpack.c.h.b16 %v949
    %v1243 = vunpack.c.l.b16 %v950
    %v1244 = vunpack.c.h.b16 %v950
    %v1245 = vunpack.c.l.b16 %v951
    %v1246 = vunpack.c.h.b16 %v951
    %v1247 = vunpack.c.l.b16 %v952
    %v1248 = vunpack.c.h.b16 %v952
    %v1249 = vunpack.c.l.b16 %v953
    %v1250 = vunpack.c.h.b16 %v953
    %v1251 = vunpack.c.l.b16 %v954
    %v1252 = vunpack.c.h.b16 %v954
    %v1253 = vunpack.c.l.b16 %v955
    %v1254 = vunpack.c.h.b16 %v955
    %v1255 = vunpack.c.l.b16 %v956
    %v1256 = vunpack.c.h.b16 %v956
    %v1257 = vunpack.c.l.b16 %v957
    %v1258 = vunpack.c.h.b16 %v957
    %v1259 = vunpack.c.l.b16 %v958
    %v1260 = vunpack.c.h.b16 %v958
    %v1261 = vunpack.c.l.b16 %v959
    %v1262 = vunpack.c.h.b16 %v959
    %v1263 = vunpack.c.l.b16 %v960
    %v1264 = vunpack.c.h.b16 %v960
    %v1265 = vunpack.c.l.b16 %v961
    %v1266 = vunpack.c.h.b16 %v961
    %v1267 = vunpack.c.l.b16 %v962
    %v1268 = vunpack.c.h.b16 %v962
    %v1269 = vunpack.c.l.b16 %v963
    %v1270 = vunpack.c.h.b16 %v963
    %v1271 = vunpack.c.l.b16 %v964
    %v1272 = vunpack.c.h.b16 %v964
    %v1273 = vunpack.c.l.b16 %v965
    %v1274 = vunpack.c.h.b16 %v965
    %v1275 = vunpack.c.l.b16 %v966
    %v1276 = vunpack.c.h.b16 %v966
    %v1277 = vunpack.c.l.b16 %v967
    %v1278 = vunpack.c.h.b16 %v967
    %v1279 = vunpack.c.l.b16 %v968
    %v1280 = vunpack.c.h.b16 %v968
    %v1281 = vunpack.c.l.b16 %v969
    %v1282 = vunpack.c.h.b16 %v969
    %v1283 = vunpack.c.l.b16 %v970
    %v1284 = vunpack.c.h.b16 %v970
    %v1285 = vunpack.c.l.b16 %v971
    %v1286 = vunpack.c.h.b16 %v971
    %v1287 = vunpack.c.l.b16 %v972
    %v1288 = vunpack.c.h.b16 %v972
    %v1289 = vunpack.c.l.b16 %v973
    %v1290 = vunpack.c.h.b16 %v973
    %v1291 = vunpack.c.l.b16 %v974
    %v1292 = vunpack.c.h.b16 %v974
    %v1293 = vunpack.c.l.b16 %v975
    %v1294 = vunpack.c.h.b16 %v975
    %v1295 = vunpack.c.l.b16 %v976
    %v1296 = vunpack.c.h.b16 %v976
    %v1297 = vunpack.c.l.b16 %v977
    %v1298 = vunpack.c.h.b16 %v977
    %v1299 = vunpack.c.l.b16 %v978
    %v1300 = vunpack.c.h.b16 %v978
    %v1301 = vunpack.c.l.b16 %v979
    %v1302 = vunpack.c.h.b16 %v979
    %v1303 = vunpack.c.l.b16 %v980
    %v1304 = vunpack.c.h.b16 %v980
    %v1305 = vunpack.c.l.b16 %v981
    %v1306 = vunpack.c.h.b16 %v981
    %v1307 = vunpack.c.l.b16 %v982
    %v1308 = vunpack.c.h.b16 %v982
    %v1309 = vunpack.c.l.b16 %v983
    %v1310 = vunpack.c.h.b16 %v983
    %v1311 = vunpack.c.l.b16 %v984
    %v1312 = vunpack.c.h.b16 %v984
    %v1313 = vunpack.c.l.b16 %v985
    %v1314 = vunpack.c.h.b16 %v985
    %v1315 = vunpack.c.l.b16 %v986
    %v1316 = vunpack.c.h.b16 %v986
    %v1317 = vunpack.c.l.b16 %v987
    %v1318 = vunpack.c.h.b16 %v987
    %v1319 = vunpack.c.l.b16 %v988
    %v1320 = vunpack.c.h.b16 %v988
    %v1321 = vunpack.c.l.b16 %v989
    %v1322 = vunpack.c.h.b16 %v989
    %v1323 = vunpack.c.l.b16 %v990
    %v1324 = vunpack.c.h.b16 %v990
    %v1325 = vunpack.c.l.b16 %v991
    %v1326 = vunpack.c.h.b16 %v991
    %v1327 = vunpack.c.l.b16 %v992
    %v1328 = vunpack.c.h.b16 %v992
    %v1329 = vunpack.c.l.b16 %v993
    %v1330 = vunpack.c.h.b16 %v993
    %v1331 = vunpack.c.l.b16 %v994
    %v1332 = vunpack.c.h.b16 %v994
    %v1333 = vunpack.c.l.b16 %v995
    %v1334 = vunpack.c.h.b16 %v995
    %v1335 = vunpack.c.l.b16 %v996
    %v1336 = vunpack.c.h.b16 %v996
    %v1337 = vunpack.c.l.b16 %v997
    %v1338 = vunpack.c.h.b16 %v997
    %v1339 = vunpack.c.l.b16 %v998
    %v1340 = vunpack.c.h.b16 %v998
    %v1341 = vunpack.c.l.b16 %v999
    %v1342 = vunpack.c.h.b16 %v999
    %v1343 = vunpack.c.l.b16 %v1000
    %v1344 = vunpack.c.h.b16 %v1000
    %v1345 = vunpack.c.l.b16 %v1001
    %v1346 = vunpack.c.h.b16 %v1001
    %v1347 = vunpack.c.l.b16 %v1002
    %v1348 = vunpack.c.h.b16 %v1002
    %v1349 = vunpack.c.l.b16 %v1003
    %v1350 = vunpack.c.h.b16 %v1003
    %v1351 = vunpack.c.l.b16 %v1004
    %v1352 = vunpack.c.h.b16 %v1004
    %v1353 = vunpack.c.l.b16 %v1005
    %v1354 = vunpack.c.h.b16 %v1005
    %v1355 = vunpack.c.l.b16 %v1006
    %v1356 = vunpack.c.h.b16 %v1006
    %v1357 = vunpack.c.l.b16 %v1007
    %v1358 = vunpack.c.h.b16 %v1007
    %v1359 = vunpack.c.l.b16 %v1008
    %v1360 = vunpack.c.h.b16 %v1008
    %v1361 = vunpack.c.l.b16 %v1009
    %v1362 = vunpack.c.h.b16 %v1009
    %v1363 = vunpack.c.l.b16 %v1010
    %v1364 = vunpack.c.h.b16 %v1010
    %v1365 = vunpack.c.l.b16 %v1011
    %v1366 = vunpack.c.h.b16 %v1011
    %v1367 = vunpack.c.l.b16 %v1012
    %v1368 = vunpack.c.h.b16 %v1012
    %v1369 = vunpack.c.l.b16 %v1013
    %v1370 = vunpack.c.h.b16 %v1013
    %v1371 = vunpack.c.l.b16 %v1014
    %v1372 = vunpack.c.h.b16 %v1014
    %v1373 = vunpack.c.l.b16 %v1015
    %v1374 = vunpack.c.h.b16 %v1015
    %v1375 = vunpack.c.l.b16 %v1016
    %v1376 = vunpack.c.h.b16 %v1016
    %v1377 = vunpack.c.l.b16 %v1017
    %v1378 = vunpack.c.h.b16 %v1017
    %v1379 = vunpack.c.l.b16 %v1018
    %v1380 = vunpack.c.h.b16 %v1018
    %v1381 = vunpack.c.l.b16 %v1019
    %v1382 = vunpack.c.h.b16 %v1019
    %v1383 = vunpack.c.l.b16 %v1020
    %v1384 = vunpack.c.h.b16 %v1020
    %v1385 = vunpack.c.l.b16 %v1021
    %v1386 = vunpack.c.h.b16 %v1021
    %v1387 = vunpack.c.l.b16 %v1022
    %v1388 = vunpack.c.h.b16 %v1022
    %v1389 = vunpack.c.l.b16 %v1023
    %v1390 = vunpack.c.h.b16 %v1023
    %v1391 = vunpack.c.l.b16 %v1024
    %v1392 = vunpack.c.h.b16 %v1024
    %v1393 = vunpack.c.l.b16 %v1025
    %v1394 = vunpack.c.h.b16 %v1025
    %v1395 = vunpack.c.l.b16 %v1026
    %v1396 = vunpack.c.h.b16 %v1026
    %v1397 = vunpack.c.l.b16 %v1027
    %v1398 = vunpack.c.h.b16 %v1027
    %v1399 = vunpack.c.l.b16 %v1028
    %v1400 = vunpack.c.h.b16 %v1028
    %v1401 = vunpack.c.l.b16 %v1029
    %v1402 = vunpack.c.h.b16 %v1029
    %v1403 = vunpack.c.l.b16 %v1030
    %v1404 = vunpack.c.h.b16 %v1030
    %v1405 = vunpack.c.l.b16 %v1031
    %v1406 = vunpack.c.h.b16 %v1031
    %v1407 = vunpack.c.l.b16 %v1032
    %v1408 = vunpack.c.h.b16 %v1032
    %v1409 = vunpack.c.l.b16 %v1033
    %v1410 = vunpack.c.h.b16 %v1033
    %v1411 = vunpack.c.l.b16 %v1034
    %v1412 = vunpack.c.h.b16 %v1034
    %v1413 = vunpack.c.l.b16 %v1035
    %v1414 = vunpack.c.h.b16 %v1035
    %v1415 = vunpack.c.l.b16 %v1036
    %v1416 = vunpack.c.h.b16 %v1036
    %v1417 = vunpack.c.l.b16 %v1037
    %v1418 = vunpack.c.h.b16 %v1037
    %v1419 = vunpack.c.l.b16 %v1038
    %v1420 = vunpack.c.h.b16 %v1038
    %v1421 = vunpack.c.l.b16 %v1039
    %v1422 = vunpack.c.h.b16 %v1039
    %v1423 = vunpack.c.l.b16 %v1040
    %v1424 = vunpack.c.h.b16 %v1040
    %v1425 = vunpack.c.l.b16 %v1041
    %v1426 = vunpack.c.h.b16 %v1041
    %v1427 = vunpack.c.l.b16 %v1042
    %v1428 = vunpack.c.h.b16 %v1042
    %v1429 = vunpack.c.l.b16 %v1043
    %v1430 = vunpack.c.h.b16 %v1043
    %v1431 = vunpack.c.l.b16 %v1044
    %v1432 = vunpack.c.h.b16 %v1044
    %v1433 = vunpack.c.l.b16 %v1045
    %v1434 = vunpack.c.h.b16 %v1045
    %v1435 = vunpack.c.l.b16 %v1046
    %v1436 = vunpack.c.h.b16 %v1046
    %v1437 = vunpack.c.l.b16 %v1047
    %v1438 = vunpack.c.h.b16 %v1047
    %v1439 = vunpack.c.l.b16 %v1048
    %v1440 = vunpack.c.h.b16 %v1048
    %v1441 = vunpack.c.l.b16 %v1049
    %v1442 = vunpack.c.h.b16 %v1049
    %v1443 = vunpack.c.l.b16 %v1050
    %v1444 = vunpack.c.h.b16 %v1050
    %v1445 = vunpack.c.l.b16 %v1051
    %v1446 = vunpack.c.h.b16 %v1051
    %v1447 = vunpack.c.l.b16 %v1052
    %v1448 = vunpack.c.h.b16 %v1052
    %v1449 = vunpack.c.l.b16 %v1053
    %v1450 = vunpack.c.h.b16 %v1053
    %v1451 = vunpack.c.l.b16 %v1054
    %v1452 = vunpack.c.h.b16 %v1054
    %v1453 = vunpack.c.l.b16 %v1055
    %v1454 = vunpack.c.h.b16 %v1055
    %v1455 = vunpack.c.l.b16 %v1056
    %v1456 = vunpack.c.h.b16 %v1056
    %v1457 = vunpack.c.l.b16 %v1057
    %v1458 = vunpack.c.h.b16 %v1057
    %v1459 = vunpack.c.l.b16 %v1058
    %v1460 = vunpack.c.h.b16 %v1058
    %v1461 = vunpack.c.l.b16 %v1059
    %v1462 = vunpack.c.h.b16 %v1059
    %v1463 = vunpack.c.l.b16 %v1060
    %v1464 = vunpack.c.h.b16 %v1060
    %v1465 = vunpack.c.l.b16 %v1061
    %v1466 = vunpack.c.h.b16 %v1061
    %v1467 = vunpack.c.l.b16 %v1062
    %v1468 = vunpack.c.h.b16 %v1062
    %v1469 = vpack.c.b16 %v1217, %v1213
    %v1470 = vpack.c.b16 %v1218, %v1214
    %v1471 = vpack.c.b16 %v1219, %v1215
    %v1472 = vpack.c.b16 %v1220, %v1216
    %v1473 = vpack.c.b16 %v1225, %v1221
    %v1474 = vpack.c.b16 %v1226, %v1222
    %v1475 = vpack.c.b16 %v1227, %v1223
    %v1476 = vpack.c.b16 %v1228, %v1224
    %v1477 = vpack.c.b16 %v1233, %v1229
    %v1478 = vpack.c.b16 %v1234, %v1230
    %v1479 = vpack.c.b16 %v1235, %v1231
    %v1480 = vpack.c.b16 %v1236, %v1232
    %v1481 = vpack.c.b16 %v1241, %v1237
    %v1482 = vpack.c.b16 %v1242, %v1238
    %v1483 = vpack.c.b16 %v1243, %v1239
    %v1484 = vpack.c.b16 %v1244, %v1240
    %v1485 = vpack.c.b16 %v1249, %v1245
    %v1486 = vpack.c.b16 %v1250, %v1246
    %v1487 = vpack.c.b16 %v1251, %v1247
    %v1488 = vpack.c.b16 %v1252, %v1248
    %v1489 = vpack.c.b16 %v1257, %v1253
    %v1490 = vpack.c.b16 %v1258, %v1254
    %v1491 = vpack.c.b16 %v1259, %v1255
    %v1492 = vpack.c.b16 %v1260, %v1256
    %v1493 = vpack.c.b16 %v1265, %v1261
    %v1494 = vpack.c.b16 %v1266, %v1262
    %v1495 = vpack.c.b16 %v1267, %v1263
    %v1496 = vpack.c.b16 %v1268, %v1264
    %v1497 = vpack.c.b16 %v1273, %v1269
    %v1498 = vpack.c.b16 %v1274, %v1270
    %v1499 = vpack.c.b16 %v1275, %v1271
    %v1500 = vpack.c.b16 %v1276, %v1272
    %v1501 = vpack.c.b16 %v1281, %v1277
    %v1502 = vpack.c.b16 %v1282, %v1278
    %v1503 = vpack.c.b16 %v1283, %v1279
    %v1504 = vpack.c.b16 %v1284, %v1280
    %v1505 = vpack.c.b16 %v1289, %v1285
    %v1506 = vpack.c.b16 %v1290, %v1286
    %v1507 = vpack.c.b16 %v1291, %v1287
    %v1508 = vpack.c.b16 %v1292, %v1288
    %v1509 = vpack.c.b16 %v1297, %v1293
    %v1510 = vpack.c.b16 %v1298, %v1294
    %v1511 = vpack.c.b16 %v1299, %v1295
    %v1512 = vpack.c.b16 %v1300, %v1296
    %v1513 = vpack.c.b16 %v1305, %v1301
    %v1514 = vpack.c.b16 %v1306, %v1302
    %v1515 = vpack.c.b16 %v1307, %v1303
    %v1516 = vpack.c.b16 %v1308, %v1304
    %v1517 = vpack.c.b16 %v1313, %v1309
    %v1518 = vpack.c.b16 %v1314, %v1310
    %v1519 = vpack.c.b16 %v1315, %v1311
    %v1520 = vpack.c.b16 %v1316, %v1312
    %v1521 = vpack.c.b16 %v1321, %v1317
    %v1522 = vpack.c.b16 %v1322, %v1318
    %v1523 = vpack.c.b16 %v1323, %v1319
    %v1524 = vpack.c.b16 %v1324, %v1320
    %v1525 = vpack.c.b16 %v1329, %v1325
    %v1526 = vpack.c.b16 %v1330, %v1326
    %v1527 = vpack.c.b16 %v1331, %v1327
    %v1528 = vpack.c.b16 %v1332, %v1328
    %v1529 = vpack.c.b16 %v1337, %v1333
    %v1530 = vpack.c.b16 %v1338, %v1334
    %v1531 = vpack.c.b16 %v1339, %v1335
    %v1532 = vpack.c.b16 %v1340, %v1336
    %v1533 = vpack.c.b16 %v1345, %v1341
    %v1534 = vpack.c.b16 %v1346, %v1342
    %v1535 = vpack.c.b16 %v1347, %v1343
    %v1536 = vpack.c.b16 %v1348, %v1344
    %v1537 = vpack.c.b16 %v1353, %v1349
    %v1538 = vpack.c.b16 %v1354, %v1350
    %v1539 = vpack.c.b16 %v1355, %v1351
    %v1540 = vpack.c.b16 %v1356, %v1352
    %v1541 = vpack.c.b16 %v1361, %v1357
    %v1542 = vpack.c.b16 %v1362, %v1358
    %v1543 = vpack.c.b16 %v1363, %v1359
    %v1544 = vpack.c.b16 %v1364, %v1360
    %v1545 = vpack.c.b16 %v1369, %v1365
    %v1546 = vpack.c.b16 %v1370, %v1366
    %v1547 = vpack.c.b16 %v1371, %v1367
    %v1548 = vpack.c.b16 %v1372, %v1368
    %v1549 = vpack.c.b16 %v1377, %v1373
    %v1550 = vpack.c.b16 %v1378, %v1374
    %v1551 = vpack.c.b16 %v1379, %v1375
    %v1552 = vpack.c.b16 %v1380, %v1376
    %v1553 = vpack.c.b16 %v1385, %v1381
    %v1554 = vpack.c.b16 %v1386, %v1382
    %v1555 = vpack.c.b16 %v1387, %v1383
    %v1556 = vpack.c.b16 %v1388, %v1384
    %v1557 = vpack.c.b16 %v1393, %v1389
    %v1558 = vpack.c.b16 %v1394, %v1390
    %v1559 = vpack.c.b16 %v1395, %v1391
    %v1560 = vpack.c.b16 %v1396, %v1392
    %v1561 = vpack.c.b16 %v1401, %v1397
    %v1562 = vpack.c.b16 %v1402, %v1398
    %v1563 = vpack.c.b16 %v1403, %v1399
    %v1564 = vpack.c.b16 %v1404, %v1400
    %v1565 = vpack.c.b16 %v1409, %v1405
    %v1566 = vpack.c.b16 %v1410, %v1406
    %v1567 = vpack.c.b16 %v1411, %v1407
    %v1568 = vpack.c.b16 %v1412, %v1408
    %v1569 = vpack.c.b16 %v1417, %v1413
    %v1570 = vpack.c.b16 %v1418, %v1414
    %v1571 = vpack.c.b16 %v1419, %v1415
    %v1572 = vpack.c.b16 %v1420, %v1416
    %v1573 = vpack.c.b16 %v1425, %v1421
    %v1574 = vpack.c.b16 %v1426, %v1422
    %v1575 = vpack.c.b16 %v1427, %v1423
    %v1576 = vpack.c.b16 %v1428, %v1424
    %v1577 = vpack.c.b16 %v1433, %v1429
    %v1578 = vpack.c.b16 %v1434, %v1430
    %v1579 = vpack.c.b16 %v1435, %v1431
    %v1580 = vpack.c.b16 %v1436, %v1432
    %v1581 = vpack.c.b16 %v1441, %v1437
    %v1582 = vpack.c.b16 %v1442, %v1438
    %v1583 = vpack.c.b16 %v1443, %v1439
    %v1584 = vpack.c.b16 %v1444, %v1440
    %v1585 = vpack.c.b16 %v1449, %v1445
    %v1586 = vpack.c.b16 %v1450, %v1446
    %v1587 = vpack.c.b16 %v1451, %v1447
    %v1588 = vpack.c.b16 %v1452, %v1448
    %v1589 = vpack.c.b16 %v1457, %v1453
    %v1590 = vpack.c.b16 %v1458, %v1454
    %v1591 = vpack.c.b16 %v1459, %v1455
    %v1592 = vpack.c.b16 %v1460, %v1456
    %v1593 = vpack.c.b16 %v1465, %v1461
    %v1594 = vpack.c.b16 %v1466, %v1462
    %v1595 = vpack.c.b16 %v1467, %v1463
    %v1596 = vpack.c.b16 %v1468, %v1464
    %1725 = vmatprep.subr.bf16.mxu0 %v1498
    %1726 = vmatpush1.bf16.msra.mxu0 %v1497
    %1727 = vmatprep.subr.bf16.mxu0 %v1494
    %1728 = vmatpush1.bf16.msra.mxu0 %v1493
    %1729 = vmatprep.subr.bf16.mxu0 %v1490
    %1730 = vmatpush1.bf16.msra.mxu0 %v1489
    %1731 = vmatprep.subr.bf16.mxu0 %v1486
    %1732 = vmatpush1.bf16.msra.mxu0 %v1485
    %1733 = vmatprep.subr.bf16.mxu0 %v1482
    %1734 = vmatpush1.bf16.msra.mxu0 %v1481
    %1735 = vmatprep.subr.bf16.mxu0 %v1478
    %1736 = vmatpush1.bf16.msra.mxu0 %v1477
    %1737 = vmatprep.subr.bf16.mxu0 %v1474
    %1738 = vmatpush1.bf16.msra.mxu0 %v1473
    %1739 = vmatprep.subr.bf16.mxu0 %v1470
    %1740 = vmatpush1.bf16.msra.mxu0 %v1469
    %1741 = vmatprep.subr.bf16.mxu0 %v1530
    %1742 = vmatpush2.bf16.msra.mxu0 %v1529
    %1743 = vmatprep.subr.bf16.mxu0 %v1526
    %1744 = vmatpush2.bf16.msra.mxu0 %v1525
    %1745 = vmatprep.subr.bf16.mxu0 %v1522
    %1746 = vmatpush2.bf16.msra.mxu0 %v1521
    %1747 = vmatprep.subr.bf16.mxu0 %v1518
    %1748 = vmatpush2.bf16.msra.mxu0 %v1517
    %1749 = vmatprep.subr.bf16.mxu0 %v1514
    %1750 = vmatpush2.bf16.msra.mxu0 %v1513
    %1751 = vmatprep.subr.bf16.mxu0 %v1510
    %1752 = vmatpush2.bf16.msra.mxu0 %v1509
    %1753 = vmatprep.subr.bf16.mxu0 %v1506
    %1754 = vmatpush2.bf16.msra.mxu0 %v1505
    %1755 = vmatprep.subr.bf16.mxu0 %v1502
    %1756 = vmatpush2.bf16.msra.mxu0 %v1501
    %1757 = vmatprep.mubr.bf16.mxu0 %v872
    %1758 = vmatmul.mubr.bf16.gmra.mxu0 %v871
    %v1759 = vpop.f32.mrf.mxu0
    %v1760 = vadd.f32 %v1068, %v1759
    %v1761 = vpop.f32.mrf.mxu0
    %v1762 = vadd.f32 %v1072, %v1761
    %v1763 = vpop.f32.mrf.mxu0
    %v1764 = vadd.f32 %v1068, %v1763
    %v1765 = vpop.f32.mrf.mxu0
    %v1766 = vadd.f32 %v1072, %v1765
    %1767 = vmatprep.mubr.bf16.mxu0 %v876
    %1768 = vmatmul.mubr.bf16.gmra.mxu0 %v875
    %v1769 = vpop.f32.mrf.mxu0
    %v1770 = vadd.f32 %v1068, %v1769
    %v1771 = vpop.f32.mrf.mxu0
    %v1772 = vadd.f32 %v1072, %v1771
    %v1773 = vpop.f32.mrf.mxu0
    %v1774 = vadd.f32 %v1068, %v1773
    %v1775 = vpop.f32.mrf.mxu0
    %v1776 = vadd.f32 %v1072, %v1775
    %1777 = vmatprep.mubr.bf16.mxu0 %v880
    %1778 = vmatmul.mubr.bf16.gmra.mxu0 %v879
    %v1779 = vpop.f32.mrf.mxu0
    %v1780 = vadd.f32 %v1068, %v1779
    %v1781 = vpop.f32.mrf.mxu0
    %v1782 = vadd.f32 %v1072, %v1781
    %v1783 = vpop.f32.mrf.mxu0
    %v1784 = vadd.f32 %v1068, %v1783
    %v1785 = vpop.f32.mrf.mxu0
    %v1786 = vadd.f32 %v1072, %v1785
    %1787 = vmatprep.mubr.bf16.mxu0 %v884
    %1788 = vmatmul.mubr.bf16.gmra.mxu0 %v883
    %v1789 = vpop.f32.mrf.mxu0
    %v1790 = vadd.f32 %v1068, %v1789
    %v1791 = vpop.f32.mrf.mxu0
    %v1792 = vadd.f32 %v1072, %v1791
    %v1793 = vpop.f32.mrf.mxu0
    %v1794 = vadd.f32 %v1068, %v1793
    %v1795 = vpop.f32.mrf.mxu0
    %v1796 = vadd.f32 %v1072, %v1795
    %1797 = vmatprep.mubr.bf16.mxu0 %v888
    %1798 = vmatmul.mubr.bf16.gmra.mxu0 %v887
    %v1799 = vpop.f32.mrf.mxu0
    %v1800 = vadd.f32 %v1068, %v1799
    %v1801 = vpop.f32.mrf.mxu0
    %v1802 = vadd.f32 %v1072, %v1801
    %v1803 = vpop.f32.mrf.mxu0
    %v1804 = vadd.f32 %v1068, %v1803
    %v1805 = vpop.f32.mrf.mxu0
    %v1806 = vadd.f32 %v1072, %v1805
    %1807 = vmatprep.mubr.bf16.mxu0 %v892
    %1808 = vmatmul.mubr.bf16.gmra.mxu0 %v891
    %v1809 = vpop.f32.mrf.mxu0
    %v1810 = vadd.f32 %v1068, %v1809
    %v1811 = vpop.f32.mrf.mxu0
    %v1812 = vadd.f32 %v1072, %v1811
    %v1813 = vpop.f32.mrf.mxu0
    %v1814 = vadd.f32 %v1068, %v1813
    %v1815 = vpop.f32.mrf.mxu0
    %v1816 = vadd.f32 %v1072, %v1815
    %1817 = vmatprep.mubr.bf16.mxu0 %v896
    %1818 = vmatmul.mubr.bf16.gmra.mxu0 %v895
    %v1819 = vpop.f32.mrf.mxu0
    %v1820 = vadd.f32 %v1068, %v1819
    %v1821 = vpop.f32.mrf.mxu0
    %v1822 = vadd.f32 %v1072, %v1821
    %v1823 = vpop.f32.mrf.mxu0
    %v1824 = vadd.f32 %v1068, %v1823
    %v1825 = vpop.f32.mrf.mxu0
    %v1826 = vadd.f32 %v1072, %v1825
    %1827 = vmatprep.mubr.bf16.mxu0 %v900
    %1828 = vmatmul.mubr.bf16.gmra.mxu0 %v899
    %v1829 = vpop.f32.mrf.mxu0
    %v1830 = vadd.f32 %v1068, %v1829
    %v1831 = vpop.f32.mrf.mxu0
    %v1832 = vadd.f32 %v1072, %v1831
    %v1833 = vpop.f32.mrf.mxu0
    %v1834 = vadd.f32 %v1068, %v1833
    %v1835 = vpop.f32.mrf.mxu0
    %v1836 = vadd.f32 %v1072, %v1835
    %1837 = vmatprep.mubr.bf16.mxu0 %v904
    %1838 = vmatmul.mubr.bf16.gmra.mxu0 %v903
    %v1839 = vpop.f32.mrf.mxu0
    %v1840 = vadd.f32 %v1068, %v1839
    %v1841 = vpop.f32.mrf.mxu0
    %v1842 = vadd.f32 %v1072, %v1841
    %v1843 = vpop.f32.mrf.mxu0
    %v1844 = vadd.f32 %v1068, %v1843
    %v1845 = vpop.f32.mrf.mxu0
    %v1846 = vadd.f32 %v1072, %v1845
    %1847 = vmatprep.mubr.bf16.mxu0 %v908
    %1848 = vmatmul.mubr.bf16.gmra.mxu0 %v907
    %v1849 = vpop.f32.mrf.mxu0
    %v1850 = vadd.f32 %v1068, %v1849
    %v1851 = vpop.f32.mrf.mxu0
    %v1852 = vadd.f32 %v1072, %v1851
    %v1853 = vpop.f32.mrf.mxu0
    %v1854 = vadd.f32 %v1068, %v1853
    %v1855 = vpop.f32.mrf.mxu0
    %v1856 = vadd.f32 %v1072, %v1855
    %1857 = vmatprep.mubr.bf16.mxu0 %v912
    %1858 = vmatmul.mubr.bf16.gmra.mxu0 %v911
    %v1859 = vpop.f32.mrf.mxu0
    %v1860 = vadd.f32 %v1068, %v1859
    %v1861 = vpop.f32.mrf.mxu0
    %v1862 = vadd.f32 %v1072, %v1861
    %v1863 = vpop.f32.mrf.mxu0
    %v1864 = vadd.f32 %v1068, %v1863
    %v1865 = vpop.f32.mrf.mxu0
    %v1866 = vadd.f32 %v1072, %v1865
    %1867 = vmatprep.mubr.bf16.mxu0 %v916
    %1868 = vmatmul.mubr.bf16.gmra.mxu0 %v915
    %v1869 = vpop.f32.mrf.mxu0
    %v1870 = vadd.f32 %v1068, %v1869
    %v1871 = vpop.f32.mrf.mxu0
    %v1872 = vadd.f32 %v1072, %v1871
    %v1873 = vpop.f32.mrf.mxu0
    %v1874 = vadd.f32 %v1068, %v1873
    %v1875 = vpop.f32.mrf.mxu0
    %v1876 = vadd.f32 %v1072, %v1875
    %1877 = vmatprep.mubr.bf16.mxu0 %v920
    %1878 = vmatmul.mubr.bf16.gmra.mxu0 %v919
    %v1879 = vpop.f32.mrf.mxu0
    %v1880 = vadd.f32 %v1068, %v1879
    %v1881 = vpop.f32.mrf.mxu0
    %v1882 = vadd.f32 %v1072, %v1881
    %v1883 = vpop.f32.mrf.mxu0
    %v1884 = vadd.f32 %v1068, %v1883
    %v1885 = vpop.f32.mrf.mxu0
    %v1886 = vadd.f32 %v1072, %v1885
    %1887 = vmatprep.mubr.bf16.mxu0 %v924
    %1888 = vmatmul.mubr.bf16.gmra.mxu0 %v923
    %v1889 = vpop.f32.mrf.mxu0
    %v1890 = vadd.f32 %v1068, %v1889
    %v1891 = vpop.f32.mrf.mxu0
    %v1892 = vadd.f32 %v1072, %v1891
    %v1893 = vpop.f32.mrf.mxu0
    %v1894 = vadd.f32 %v1068, %v1893
    %v1895 = vpop.f32.mrf.mxu0
    %v1896 = vadd.f32 %v1072, %v1895
    %1897 = vmatprep.mubr.bf16.mxu0 %v928
    %1898 = vmatmul.mubr.bf16.gmra.mxu0 %v927
    %v1899 = vpop.f32.mrf.mxu0
    %v1900 = vadd.f32 %v1068, %v1899
    %v1901 = vpop.f32.mrf.mxu0
    %v1902 = vadd.f32 %v1072, %v1901
    %v1903 = vpop.f32.mrf.mxu0
    %v1904 = vadd.f32 %v1068, %v1903
    %v1905 = vpop.f32.mrf.mxu0
    %v1906 = vadd.f32 %v1072, %v1905
    %1907 = vmatprep.mubr.bf16.mxu0 %v932
    %1908 = vmatmul.mubr.bf16.gmra.mxu0 %v931
    %v1909 = vpop.f32.mrf.mxu0
    %v1910 = vadd.f32 %v1068, %v1909
    %v1911 = vpop.f32.mrf.mxu0
    %v1912 = vadd.f32 %v1072, %v1911
    %v1913 = vpop.f32.mrf.mxu0
    %v1914 = vadd.f32 %v1068, %v1913
    %v1915 = vpop.f32.mrf.mxu0
    %v1916 = vadd.f32 %v1072, %v1915
    %1917 = vdwg.mxu0
    %1918 = vmatprep.subr.bf16.mxu0 %v1562
    %1919 = vmatpush1.bf16.msra.mxu0 %v1561
    %1920 = vmatprep.subr.bf16.mxu0 %v1558
    %1921 = vmatpush1.bf16.msra.mxu0 %v1557
    %1922 = vmatprep.subr.bf16.mxu0 %v1554
    %1923 = vmatpush1.bf16.msra.mxu0 %v1553
    %1924 = vmatprep.subr.bf16.mxu0 %v1550
    %1925 = vmatpush1.bf16.msra.mxu0 %v1549
    %1926 = vmatprep.subr.bf16.mxu0 %v1546
    %1927 = vmatpush1.bf16.msra.mxu0 %v1545
    %1928 = vmatprep.subr.bf16.mxu0 %v1542
    %1929 = vmatpush1.bf16.msra.mxu0 %v1541
    %1930 = vmatprep.subr.bf16.mxu0 %v1538
    %1931 = vmatpush1.bf16.msra.mxu0 %v1537
    %1932 = vmatprep.subr.bf16.mxu0 %v1534
    %1933 = vmatpush1.bf16.msra.mxu0 %v1533
    %1934 = vmatprep.subr.bf16.mxu0 %v1594
    %1935 = vmatpush2.bf16.msra.mxu0 %v1593
    %1936 = vmatprep.subr.bf16.mxu0 %v1590
    %1937 = vmatpush2.bf16.msra.mxu0 %v1589
    %1938 = vmatprep.subr.bf16.mxu0 %v1586
    %1939 = vmatpush2.bf16.msra.mxu0 %v1585
    %1940 = vmatprep.subr.bf16.mxu0 %v1582
    %1941 = vmatpush2.bf16.msra.mxu0 %v1581
    %1942 = vmatprep.subr.bf16.mxu0 %v1578
    %1943 = vmatpush2.bf16.msra.mxu0 %v1577
    %1944 = vmatprep.subr.bf16.mxu0 %v1574
    %1945 = vmatpush2.bf16.msra.mxu0 %v1573
    %1946 = vmatprep.subr.bf16.mxu0 %v1570
    %1947 = vmatpush2.bf16.msra.mxu0 %v1569
    %1948 = vmatprep.subr.bf16.mxu0 %v1566
    %1949 = vmatpush2.bf16.msra.mxu0 %v1565
    %1950 = vmatprep.mubr.bf16.mxu0 %v874
    %1951 = vmatmul.mubr.bf16.gmra.mxu0 %v873
    %v1952 = vpop.f32.mrf.mxu0
    %v1953 = vadd.f32 %v1760, %v1952
    %v1954 = vpop.f32.mrf.mxu0
    %v1955 = vadd.f32 %v1762, %v1954
    %v1956 = vpop.f32.mrf.mxu0
    %v1957 = vadd.f32 %v1764, %v1956
    %v1958 = vpop.f32.mrf.mxu0
    %v1959 = vadd.f32 %v1766, %v1958
    %1960 = vmatprep.mubr.bf16.mxu0 %v878
    %1961 = vmatmul.mubr.bf16.gmra.mxu0 %v877
    %v1962 = vpop.f32.mrf.mxu0
    %v1963 = vadd.f32 %v1770, %v1962
    %v1964 = vpop.f32.mrf.mxu0
    %v1965 = vadd.f32 %v1772, %v1964
    %v1966 = vpop.f32.mrf.mxu0
    %v1967 = vadd.f32 %v1774, %v1966
    %v1968 = vpop.f32.mrf.mxu0
    %v1969 = vadd.f32 %v1776, %v1968
    %1970 = vmatprep.mubr.bf16.mxu0 %v882
    %1971 = vmatmul.mubr.bf16.gmra.mxu0 %v881
    %v1972 = vpop.f32.mrf.mxu0
    %v1973 = vadd.f32 %v1780, %v1972
    %v1974 = vpop.f32.mrf.mxu0
    %v1975 = vadd.f32 %v1782, %v1974
    %v1976 = vpop.f32.mrf.mxu0
    %v1977 = vadd.f32 %v1784, %v1976
    %v1978 = vpop.f32.mrf.mxu0
    %v1979 = vadd.f32 %v1786, %v1978
    %1980 = vmatprep.mubr.bf16.mxu0 %v886
    %1981 = vmatmul.mubr.bf16.gmra.mxu0 %v885
    %v1982 = vpop.f32.mrf.mxu0
    %v1983 = vadd.f32 %v1790, %v1982
    %v1984 = vpop.f32.mrf.mxu0
    %v1985 = vadd.f32 %v1792, %v1984
    %v1986 = vpop.f32.mrf.mxu0
    %v1987 = vadd.f32 %v1794, %v1986
    %v1988 = vpop.f32.mrf.mxu0
    %v1989 = vadd.f32 %v1796, %v1988
    %1990 = vmatprep.mubr.bf16.mxu0 %v890
    %1991 = vmatmul.mubr.bf16.gmra.mxu0 %v889
    %v1992 = vpop.f32.mrf.mxu0
    %v1993 = vadd.f32 %v1800, %v1992
    %v1994 = vpop.f32.mrf.mxu0
    %v1995 = vadd.f32 %v1802, %v1994
    %v1996 = vpop.f32.mrf.mxu0
    %v1997 = vadd.f32 %v1804, %v1996
    %v1998 = vpop.f32.mrf.mxu0
    %v1999 = vadd.f32 %v1806, %v1998
    %2000 = vmatprep.mubr.bf16.mxu0 %v894
    %2001 = vmatmul.mubr.bf16.gmra.mxu0 %v893
    %v2002 = vpop.f32.mrf.mxu0
    %v2003 = vadd.f32 %v1810, %v2002
    %v2004 = vpop.f32.mrf.mxu0
    %v2005 = vadd.f32 %v1812, %v2004
    %v2006 = vpop.f32.mrf.mxu0
    %v2007 = vadd.f32 %v1814, %v2006
    %v2008 = vpop.f32.mrf.mxu0
    %v2009 = vadd.f32 %v1816, %v2008
    %2010 = vmatprep.mubr.bf16.mxu0 %v898
    %2011 = vmatmul.mubr.bf16.gmra.mxu0 %v897
    %v2012 = vpop.f32.mrf.mxu0
    %v2013 = vadd.f32 %v1820, %v2012
    %v2014 = vpop.f32.mrf.mxu0
    %v2015 = vadd.f32 %v1822, %v2014
    %v2016 = vpop.f32.mrf.mxu0
    %v2017 = vadd.f32 %v1824, %v2016
    %v2018 = vpop.f32.mrf.mxu0
    %v2019 = vadd.f32 %v1826, %v2018
    %2020 = vmatprep.mubr.bf16.mxu0 %v902
    %2021 = vmatmul.mubr.bf16.gmra.mxu0 %v901
    %v2022 = vpop.f32.mrf.mxu0
    %v2023 = vadd.f32 %v1830, %v2022
    %v2024 = vpop.f32.mrf.mxu0
    %v2025 = vadd.f32 %v1832, %v2024
    %v2026 = vpop.f32.mrf.mxu0
    %v2027 = vadd.f32 %v1834, %v2026
    %v2028 = vpop.f32.mrf.mxu0
    %v2029 = vadd.f32 %v1836, %v2028
    %2030 = vmatprep.mubr.bf16.mxu0 %v906
    %2031 = vmatmul.mubr.bf16.gmra.mxu0 %v905
    %v2032 = vpop.f32.mrf.mxu0
    %v2033 = vadd.f32 %v1840, %v2032
    %v2034 = vpop.f32.mrf.mxu0
    %v2035 = vadd.f32 %v1842, %v2034
    %v2036 = vpop.f32.mrf.mxu0
    %v2037 = vadd.f32 %v1844, %v2036
    %v2038 = vpop.f32.mrf.mxu0
    %v2039 = vadd.f32 %v1846, %v2038
    %2040 = vmatprep.mubr.bf16.mxu0 %v910
    %2041 = vmatmul.mubr.bf16.gmra.mxu0 %v909
    %v2042 = vpop.f32.mrf.mxu0
    %v2043 = vadd.f32 %v1850, %v2042
    %v2044 = vpop.f32.mrf.mxu0
    %v2045 = vadd.f32 %v1852, %v2044
    %v2046 = vpop.f32.mrf.mxu0
    %v2047 = vadd.f32 %v1854, %v2046
    %v2048 = vpop.f32.mrf.mxu0
    %v2049 = vadd.f32 %v1856, %v2048
    %2050 = vmatprep.mubr.bf16.mxu0 %v914
    %2051 = vmatmul.mubr.bf16.gmra.mxu0 %v913
    %v2052 = vpop.f32.mrf.mxu0
    %v2053 = vadd.f32 %v1860, %v2052
    %v2054 = vpop.f32.mrf.mxu0
    %v2055 = vadd.f32 %v1862, %v2054
    %v2056 = vpop.f32.mrf.mxu0
    %v2057 = vadd.f32 %v1864, %v2056
    %v2058 = vpop.f32.mrf.mxu0
    %v2059 = vadd.f32 %v1866, %v2058
    %2060 = vmatprep.mubr.bf16.mxu0 %v918
    %2061 = vmatmul.mubr.bf16.gmra.mxu0 %v917
    %v2062 = vpop.f32.mrf.mxu0
    %v2063 = vadd.f32 %v1870, %v2062
    %v2064 = vpop.f32.mrf.mxu0
    %v2065 = vadd.f32 %v1872, %v2064
    %v2066 = vpop.f32.mrf.mxu0
    %v2067 = vadd.f32 %v1874, %v2066
    %v2068 = vpop.f32.mrf.mxu0
    %v2069 = vadd.f32 %v1876, %v2068
    %2070 = vmatprep.mubr.bf16.mxu0 %v922
    %2071 = vmatmul.mubr.bf16.gmra.mxu0 %v921
    %v2072 = vpop.f32.mrf.mxu0
    %v2073 = vadd.f32 %v1880, %v2072
    %v2074 = vpop.f32.mrf.mxu0
    %v2075 = vadd.f32 %v1882, %v2074
    %v2076 = vpop.f32.mrf.mxu0
    %v2077 = vadd.f32 %v1884, %v2076
    %v2078 = vpop.f32.mrf.mxu0
    %v2079 = vadd.f32 %v1886, %v2078
    %2080 = vmatprep.mubr.bf16.mxu0 %v926
    %2081 = vmatmul.mubr.bf16.gmra.mxu0 %v925
    %v2082 = vpop.f32.mrf.mxu0
    %v2083 = vadd.f32 %v1890, %v2082
    %v2084 = vpop.f32.mrf.mxu0
    %v2085 = vadd.f32 %v1892, %v2084
    %v2086 = vpop.f32.mrf.mxu0
    %v2087 = vadd.f32 %v1894, %v2086
    %v2088 = vpop.f32.mrf.mxu0
    %v2089 = vadd.f32 %v1896, %v2088
    %2090 = vmatprep.mubr.bf16.mxu0 %v930
    %2091 = vmatmul.mubr.bf16.gmra.mxu0 %v929
    %v2092 = vpop.f32.mrf.mxu0
    %v2093 = vadd.f32 %v1900, %v2092
    %v2094 = vpop.f32.mrf.mxu0
    %v2095 = vadd.f32 %v1902, %v2094
    %v2096 = vpop.f32.mrf.mxu0
    %v2097 = vadd.f32 %v1904, %v2096
    %v2098 = vpop.f32.mrf.mxu0
    %v2099 = vadd.f32 %v1906, %v2098
    %2100 = vmatprep.mubr.bf16.mxu0 %v934
    %2101 = vmatmul.mubr.bf16.gmra.mxu0 %v933
    %v2102 = vpop.f32.mrf.mxu0
    %v2103 = vadd.f32 %v1910, %v2102
    %v2104 = vpop.f32.mrf.mxu0
    %v2105 = vadd.f32 %v1912, %v2104
    %v2106 = vpop.f32.mrf.mxu0
    %v2107 = vadd.f32 %v1914, %v2106
    %v2108 = vpop.f32.mrf.mxu0
    %v2109 = vadd.f32 %v1916, %v2108
    %2110 = vdwg.mxu0
    %2111 = vmatprep.subr.bf16.mxu0 %v1500
    %2112 = vmatpush1.bf16.msra.mxu0 %v1499
    %2113 = vmatprep.subr.bf16.mxu0 %v1496
    %2114 = vmatpush1.bf16.msra.mxu0 %v1495
    %2115 = vmatprep.subr.bf16.mxu0 %v1492
    %2116 = vmatpush1.bf16.msra.mxu0 %v1491
    %2117 = vmatprep.subr.bf16.mxu0 %v1488
    %2118 = vmatpush1.bf16.msra.mxu0 %v1487
    %2119 = vmatprep.subr.bf16.mxu0 %v1484
    %2120 = vmatpush1.bf16.msra.mxu0 %v1483
    %2121 = vmatprep.subr.bf16.mxu0 %v1480
    %2122 = vmatpush1.bf16.msra.mxu0 %v1479
    %2123 = vmatprep.subr.bf16.mxu0 %v1476
    %2124 = vmatpush1.bf16.msra.mxu0 %v1475
    %2125 = vmatprep.subr.bf16.mxu0 %v1472
    %2126 = vmatpush1.bf16.msra.mxu0 %v1471
    %2127 = vmatprep.subr.bf16.mxu0 %v1532
    %2128 = vmatpush2.bf16.msra.mxu0 %v1531
    %2129 = vmatprep.subr.bf16.mxu0 %v1528
    %2130 = vmatpush2.bf16.msra.mxu0 %v1527
    %2131 = vmatprep.subr.bf16.mxu0 %v1524
    %2132 = vmatpush2.bf16.msra.mxu0 %v1523
    %2133 = vmatprep.subr.bf16.mxu0 %v1520
    %2134 = vmatpush2.bf16.msra.mxu0 %v1519
    %2135 = vmatprep.subr.bf16.mxu0 %v1516
    %2136 = vmatpush2.bf16.msra.mxu0 %v1515
    %2137 = vmatprep.subr.bf16.mxu0 %v1512
    %2138 = vmatpush2.bf16.msra.mxu0 %v1511
    %2139 = vmatprep.subr.bf16.mxu0 %v1508
    %2140 = vmatpush2.bf16.msra.mxu0 %v1507
    %2141 = vmatprep.subr.bf16.mxu0 %v1504
    %2142 = vmatpush2.bf16.msra.mxu0 %v1503
    %2143 = vmatprep.mubr.bf16.mxu0 %v872
    %2144 = vmatmul.mubr.bf16.gmra.mxu0 %v871
    %v2145 = vpop.f32.mrf.mxu0
    %v2146 = vadd.f32 %v1076, %v2145
    %v2147 = vpop.f32.mrf.mxu0
    %v2148 = vadd.f32 %v1080, %v2147
    %v2149 = vpop.f32.mrf.mxu0
    %v2150 = vadd.f32 %v1076, %v2149
    %v2151 = vpop.f32.mrf.mxu0
    %v2152 = vadd.f32 %v1080, %v2151
    %2153 = vmatprep.mubr.bf16.mxu0 %v876
    %2154 = vmatmul.mubr.bf16.gmra.mxu0 %v875
    %v2155 = vpop.f32.mrf.mxu0
    %v2156 = vadd.f32 %v1076, %v2155
    %v2157 = vpop.f32.mrf.mxu0
    %v2158 = vadd.f32 %v1080, %v2157
    %v2159 = vpop.f32.mrf.mxu0
    %v2160 = vadd.f32 %v1076, %v2159
    %v2161 = vpop.f32.mrf.mxu0
    %v2162 = vadd.f32 %v1080, %v2161
    %2163 = vmatprep.mubr.bf16.mxu0 %v880
    %2164 = vmatmul.mubr.bf16.gmra.mxu0 %v879
    %v2165 = vpop.f32.mrf.mxu0
    %v2166 = vadd.f32 %v1076, %v2165
    %v2167 = vpop.f32.mrf.mxu0
    %v2168 = vadd.f32 %v1080, %v2167
    %v2169 = vpop.f32.mrf.mxu0
    %v2170 = vadd.f32 %v1076, %v2169
    %v2171 = vpop.f32.mrf.mxu0
    %v2172 = vadd.f32 %v1080, %v2171
    %2173 = vmatprep.mubr.bf16.mxu0 %v884
    %2174 = vmatmul.mubr.bf16.gmra.mxu0 %v883
    %v2175 = vpop.f32.mrf.mxu0
    %v2176 = vadd.f32 %v1076, %v2175
    %v2177 = vpop.f32.mrf.mxu0
    %v2178 = vadd.f32 %v1080, %v2177
    %v2179 = vpop.f32.mrf.mxu0
    %v2180 = vadd.f32 %v1076, %v2179
    %v2181 = vpop.f32.mrf.mxu0
    %v2182 = vadd.f32 %v1080, %v2181
    %2183 = vmatprep.mubr.bf16.mxu0 %v888
    %2184 = vmatmul.mubr.bf16.gmra.mxu0 %v887
    %v2185 = vpop.f32.mrf.mxu0
    %v2186 = vadd.f32 %v1076, %v2185
    %v2187 = vpop.f32.mrf.mxu0
    %v2188 = vadd.f32 %v1080, %v2187
    %v2189 = vpop.f32.mrf.mxu0
    %v2190 = vadd.f32 %v1076, %v2189
    %v2191 = vpop.f32.mrf.mxu0
    %v2192 = vadd.f32 %v1080, %v2191
    %2193 = vmatprep.mubr.bf16.mxu0 %v892
    %2194 = vmatmul.mubr.bf16.gmra.mxu0 %v891
    %v2195 = vpop.f32.mrf.mxu0
    %v2196 = vadd.f32 %v1076, %v2195
    %v2197 = vpop.f32.mrf.mxu0
    %v2198 = vadd.f32 %v1080, %v2197
    %v2199 = vpop.f32.mrf.mxu0
    %v2200 = vadd.f32 %v1076, %v2199
    %v2201 = vpop.f32.mrf.mxu0
    %v2202 = vadd.f32 %v1080, %v2201
    %2203 = vmatprep.mubr.bf16.mxu0 %v896
    %2204 = vmatmul.mubr.bf16.gmra.mxu0 %v895
    %v2205 = vpop.f32.mrf.mxu0
    %v2206 = vadd.f32 %v1076, %v2205
    %v2207 = vpop.f32.mrf.mxu0
    %v2208 = vadd.f32 %v1080, %v2207
    %v2209 = vpop.f32.mrf.mxu0
    %v2210 = vadd.f32 %v1076, %v2209
    %v2211 = vpop.f32.mrf.mxu0
    %v2212 = vadd.f32 %v1080, %v2211
    %2213 = vmatprep.mubr.bf16.mxu0 %v900
    %2214 = vmatmul.mubr.bf16.gmra.mxu0 %v899
    %v2215 = vpop.f32.mrf.mxu0
    %v2216 = vadd.f32 %v1076, %v2215
    %v2217 = vpop.f32.mrf.mxu0
    %v2218 = vadd.f32 %v1080, %v2217
    %v2219 = vpop.f32.mrf.mxu0
    %v2220 = vadd.f32 %v1076, %v2219
    %v2221 = vpop.f32.mrf.mxu0
    %v2222 = vadd.f32 %v1080, %v2221
    %2223 = vmatprep.mubr.bf16.mxu0 %v904
    %2224 = vmatmul.mubr.bf16.gmra.mxu0 %v903
    %v2225 = vpop.f32.mrf.mxu0
    %v2226 = vadd.f32 %v1076, %v2225
    %v2227 = vpop.f32.mrf.mxu0
    %v2228 = vadd.f32 %v1080, %v2227
    %v2229 = vpop.f32.mrf.mxu0
    %v2230 = vadd.f32 %v1076, %v2229
    %v2231 = vpop.f32.mrf.mxu0
    %v2232 = vadd.f32 %v1080, %v2231
    %2233 = vmatprep.mubr.bf16.mxu0 %v908
    %2234 = vmatmul.mubr.bf16.gmra.mxu0 %v907
    %v2235 = vpop.f32.mrf.mxu0
    %v2236 = vadd.f32 %v1076, %v2235
    %v2237 = vpop.f32.mrf.mxu0
    %v2238 = vadd.f32 %v1080, %v2237
    %v2239 = vpop.f32.mrf.mxu0
    %v2240 = vadd.f32 %v1076, %v2239
    %v2241 = vpop.f32.mrf.mxu0
    %v2242 = vadd.f32 %v1080, %v2241
    %2243 = vmatprep.mubr.bf16.mxu0 %v912
    %2244 = vmatmul.mubr.bf16.gmra.mxu0 %v911
    %v2245 = vpop.f32.mrf.mxu0
    %v2246 = vadd.f32 %v1076, %v2245
    %v2247 = vpop.f32.mrf.mxu0
    %v2248 = vadd.f32 %v1080, %v2247
    %v2249 = vpop.f32.mrf.mxu0
    %v2250 = vadd.f32 %v1076, %v2249
    %v2251 = vpop.f32.mrf.mxu0
    %v2252 = vadd.f32 %v1080, %v2251
    %2253 = vmatprep.mubr.bf16.mxu0 %v916
    %2254 = vmatmul.mubr.bf16.gmra.mxu0 %v915
    %v2255 = vpop.f32.mrf.mxu0
    %v2256 = vadd.f32 %v1076, %v2255
    %v2257 = vpop.f32.mrf.mxu0
    %v2258 = vadd.f32 %v1080, %v2257
    %v2259 = vpop.f32.mrf.mxu0
    %v2260 = vadd.f32 %v1076, %v2259
    %v2261 = vpop.f32.mrf.mxu0
    %v2262 = vadd.f32 %v1080, %v2261
    %2263 = vmatprep.mubr.bf16.mxu0 %v920
    %2264 = vmatmul.mubr.bf16.gmra.mxu0 %v919
    %v2265 = vpop.f32.mrf.mxu0
    %v2266 = vadd.f32 %v1076, %v2265
    %v2267 = vpop.f32.mrf.mxu0
    %v2268 = vadd.f32 %v1080, %v2267
    %v2269 = vpop.f32.mrf.mxu0
    %v2270 = vadd.f32 %v1076, %v2269
    %v2271 = vpop.f32.mrf.mxu0
    %v2272 = vadd.f32 %v1080, %v2271
    %2273 = vmatprep.mubr.bf16.mxu0 %v924
    %2274 = vmatmul.mubr.bf16.gmra.mxu0 %v923
    %v2275 = vpop.f32.mrf.mxu0
    %v2276 = vadd.f32 %v1076, %v2275
    %v2277 = vpop.f32.mrf.mxu0
    %v2278 = vadd.f32 %v1080, %v2277
    %v2279 = vpop.f32.mrf.mxu0
    %v2280 = vadd.f32 %v1076, %v2279
    %v2281 = vpop.f32.mrf.mxu0
    %v2282 = vadd.f32 %v1080, %v2281
    %2283 = vmatprep.mubr.bf16.mxu0 %v928
    %2284 = vmatmul.mubr.bf16.gmra.mxu0 %v927
    %v2285 = vpop.f32.mrf.mxu0
    %v2286 = vadd.f32 %v1076, %v2285
    %v2287 = vpop.f32.mrf.mxu0
    %v2288 = vadd.f32 %v1080, %v2287
    %v2289 = vpop.f32.mrf.mxu0
    %v2290 = vadd.f32 %v1076, %v2289
    %v2291 = vpop.f32.mrf.mxu0
    %v2292 = vadd.f32 %v1080, %v2291
    %2293 = vmatprep.mubr.bf16.mxu0 %v932
    %2294 = vmatmul.mubr.bf16.gmra.mxu0 %v931
    %v2295 = vpop.f32.mrf.mxu0
    %v2296 = vadd.f32 %v1076, %v2295
    %v2297 = vpop.f32.mrf.mxu0
    %v2298 = vadd.f32 %v1080, %v2297
    %v2299 = vpop.f32.mrf.mxu0
    %v2300 = vadd.f32 %v1076, %v2299
    %v2301 = vpop.f32.mrf.mxu0
    %v2302 = vadd.f32 %v1080, %v2301
    %2303 = vdwg.mxu0
    %2304 = vmatprep.subr.bf16.mxu0 %v1564
    %2305 = vmatpush1.bf16.msra.mxu0 %v1563
    %2306 = vmatprep.subr.bf16.mxu0 %v1560
    %2307 = vmatpush1.bf16.msra.mxu0 %v1559
    %2308 = vmatprep.subr.bf16.mxu0 %v1556
    %2309 = vmatpush1.bf16.msra.mxu0 %v1555
    %2310 = vmatprep.subr.bf16.mxu0 %v1552
    %2311 = vmatpush1.bf16.msra.mxu0 %v1551
    %2312 = vmatprep.subr.bf16.mxu0 %v1548
    %2313 = vmatpush1.bf16.msra.mxu0 %v1547
    %2314 = vmatprep.subr.bf16.mxu0 %v1544
    %2315 = vmatpush1.bf16.msra.mxu0 %v1543
    %2316 = vmatprep.subr.bf16.mxu0 %v1540
    %2317 = vmatpush1.bf16.msra.mxu0 %v1539
    %2318 = vmatprep.subr.bf16.mxu0 %v1536
    %2319 = vmatpush1.bf16.msra.mxu0 %v1535
    %2320 = vmatprep.subr.bf16.mxu0 %v1596
    %2321 = vmatpush2.bf16.msra.mxu0 %v1595
    %2322 = vmatprep.subr.bf16.mxu0 %v1592
    %2323 = vmatpush2.bf16.msra.mxu0 %v1591
    %2324 = vmatprep.subr.bf16.mxu0 %v1588
    %2325 = vmatpush2.bf16.msra.mxu0 %v1587
    %2326 = vmatprep.subr.bf16.mxu0 %v1584
    %2327 = vmatpush2.bf16.msra.mxu0 %v1583
    %2328 = vmatprep.subr.bf16.mxu0 %v1580
    %2329 = vmatpush2.bf16.msra.mxu0 %v1579
    %2330 = vmatprep.subr.bf16.mxu0 %v1576
    %2331 = vmatpush2.bf16.msra.mxu0 %v1575
    %2332 = vmatprep.subr.bf16.mxu0 %v1572
    %2333 = vmatpush2.bf16.msra.mxu0 %v1571
    %2334 = vmatprep.subr.bf16.mxu0 %v1568
    %2335 = vmatpush2.bf16.msra.mxu0 %v1567
    %2336 = vmatprep.mubr.bf16.mxu0 %v874
    %2337 = vmatmul.mubr.bf16.gmra.mxu0 %v873
    %v2338 = vpop.f32.mrf.mxu0
    %v2339 = vadd.f32 %v2146, %v2338
    %v2340 = vpop.f32.mrf.mxu0
    %v2341 = vadd.f32 %v2148, %v2340
    %v2342 = vpop.f32.mrf.mxu0
    %v2343 = vadd.f32 %v2150, %v2342
    %v2344 = vpop.f32.mrf.mxu0
    %v2345 = vadd.f32 %v2152, %v2344
    %2346 = vmatprep.mubr.bf16.mxu0 %v878
    %2347 = vmatmul.mubr.bf16.gmra.mxu0 %v877
    %v2348 = vpop.f32.mrf.mxu0
    %v2349 = vadd.f32 %v2156, %v2348
    %v2350 = vpop.f32.mrf.mxu0
    %v2351 = vadd.f32 %v2158, %v2350
    %v2352 = vpop.f32.mrf.mxu0
    %v2353 = vadd.f32 %v2160, %v2352
    %v2354 = vpop.f32.mrf.mxu0
    %v2355 = vadd.f32 %v2162, %v2354
    %2356 = vmatprep.mubr.bf16.mxu0 %v882
    %2357 = vmatmul.mubr.bf16.gmra.mxu0 %v881
    %v2358 = vpop.f32.mrf.mxu0
    %v2359 = vadd.f32 %v2166, %v2358
    %v2360 = vpop.f32.mrf.mxu0
    %v2361 = vadd.f32 %v2168, %v2360
    %v2362 = vpop.f32.mrf.mxu0
    %v2363 = vadd.f32 %v2170, %v2362
    %v2364 = vpop.f32.mrf.mxu0
    %v2365 = vadd.f32 %v2172, %v2364
    %2366 = vmatprep.mubr.bf16.mxu0 %v886
    %2367 = vmatmul.mubr.bf16.gmra.mxu0 %v885
    %v2368 = vpop.f32.mrf.mxu0
    %v2369 = vadd.f32 %v2176, %v2368
    %v2370 = vpop.f32.mrf.mxu0
    %v2371 = vadd.f32 %v2178, %v2370
    %v2372 = vpop.f32.mrf.mxu0
    %v2373 = vadd.f32 %v2180, %v2372
    %v2374 = vpop.f32.mrf.mxu0
    %v2375 = vadd.f32 %v2182, %v2374
    %2376 = vmatprep.mubr.bf16.mxu0 %v890
    %2377 = vmatmul.mubr.bf16.gmra.mxu0 %v889
    %v2378 = vpop.f32.mrf.mxu0
    %v2379 = vadd.f32 %v2186, %v2378
    %v2380 = vpop.f32.mrf.mxu0
    %v2381 = vadd.f32 %v2188, %v2380
    %v2382 = vpop.f32.mrf.mxu0
    %v2383 = vadd.f32 %v2190, %v2382
    %v2384 = vpop.f32.mrf.mxu0
    %v2385 = vadd.f32 %v2192, %v2384
    %2386 = vmatprep.mubr.bf16.mxu0 %v894
    %2387 = vmatmul.mubr.bf16.gmra.mxu0 %v893
    %v2388 = vpop.f32.mrf.mxu0
    %v2389 = vadd.f32 %v2196, %v2388
    %v2390 = vpop.f32.mrf.mxu0
    %v2391 = vadd.f32 %v2198, %v2390
    %v2392 = vpop.f32.mrf.mxu0
    %v2393 = vadd.f32 %v2200, %v2392
    %v2394 = vpop.f32.mrf.mxu0
    %v2395 = vadd.f32 %v2202, %v2394
    %2396 = vmatprep.mubr.bf16.mxu0 %v898
    %2397 = vmatmul.mubr.bf16.gmra.mxu0 %v897
    %v2398 = vpop.f32.mrf.mxu0
    %v2399 = vadd.f32 %v2206, %v2398
    %v2400 = vpop.f32.mrf.mxu0
    %v2401 = vadd.f32 %v2208, %v2400
    %v2402 = vpop.f32.mrf.mxu0
    %v2403 = vadd.f32 %v2210, %v2402
    %v2404 = vpop.f32.mrf.mxu0
    %v2405 = vadd.f32 %v2212, %v2404
    %2406 = vmatprep.mubr.bf16.mxu0 %v902
    %2407 = vmatmul.mubr.bf16.gmra.mxu0 %v901
    %v2408 = vpop.f32.mrf.mxu0
    %v2409 = vadd.f32 %v2216, %v2408
    %v2410 = vpop.f32.mrf.mxu0
    %v2411 = vadd.f32 %v2218, %v2410
    %v2412 = vpop.f32.mrf.mxu0
    %v2413 = vadd.f32 %v2220, %v2412
    %v2414 = vpop.f32.mrf.mxu0
    %v2415 = vadd.f32 %v2222, %v2414
    %2416 = vmatprep.mubr.bf16.mxu0 %v906
    %2417 = vmatmul.mubr.bf16.gmra.mxu0 %v905
    %v2418 = vpop.f32.mrf.mxu0
    %v2419 = vadd.f32 %v2226, %v2418
    %v2420 = vpop.f32.mrf.mxu0
    %v2421 = vadd.f32 %v2228, %v2420
    %v2422 = vpop.f32.mrf.mxu0
    %v2423 = vadd.f32 %v2230, %v2422
    %v2424 = vpop.f32.mrf.mxu0
    %v2425 = vadd.f32 %v2232, %v2424
    %2426 = vmatprep.mubr.bf16.mxu0 %v910
    %2427 = vmatmul.mubr.bf16.gmra.mxu0 %v909
    %v2428 = vpop.f32.mrf.mxu0
    %v2429 = vadd.f32 %v2236, %v2428
    %v2430 = vpop.f32.mrf.mxu0
    %v2431 = vadd.f32 %v2238, %v2430
    %v2432 = vpop.f32.mrf.mxu0
    %v2433 = vadd.f32 %v2240, %v2432
    %v2434 = vpop.f32.mrf.mxu0
    %v2435 = vadd.f32 %v2242, %v2434
    %2436 = vmatprep.mubr.bf16.mxu0 %v914
    %2437 = vmatmul.mubr.bf16.gmra.mxu0 %v913
    %v2438 = vpop.f32.mrf.mxu0
    %v2439 = vadd.f32 %v2246, %v2438
    %v2440 = vpop.f32.mrf.mxu0
    %v2441 = vadd.f32 %v2248, %v2440
    %v2442 = vpop.f32.mrf.mxu0
    %v2443 = vadd.f32 %v2250, %v2442
    %v2444 = vpop.f32.mrf.mxu0
    %v2445 = vadd.f32 %v2252, %v2444
    %2446 = vmatprep.mubr.bf16.mxu0 %v918
    %2447 = vmatmul.mubr.bf16.gmra.mxu0 %v917
    %v2448 = vpop.f32.mrf.mxu0
    %v2449 = vadd.f32 %v2256, %v2448
    %v2450 = vpop.f32.mrf.mxu0
    %v2451 = vadd.f32 %v2258, %v2450
    %v2452 = vpop.f32.mrf.mxu0
    %v2453 = vadd.f32 %v2260, %v2452
    %v2454 = vpop.f32.mrf.mxu0
    %v2455 = vadd.f32 %v2262, %v2454
    %2456 = vmatprep.mubr.bf16.mxu0 %v922
    %2457 = vmatmul.mubr.bf16.gmra.mxu0 %v921
    %v2458 = vpop.f32.mrf.mxu0
    %v2459 = vadd.f32 %v2266, %v2458
    %v2460 = vpop.f32.mrf.mxu0
    %v2461 = vadd.f32 %v2268, %v2460
    %v2462 = vpop.f32.mrf.mxu0
    %v2463 = vadd.f32 %v2270, %v2462
    %v2464 = vpop.f32.mrf.mxu0
    %v2465 = vadd.f32 %v2272, %v2464
    %2466 = vmatprep.mubr.bf16.mxu0 %v926
    %2467 = vmatmul.mubr.bf16.gmra.mxu0 %v925
    %v2468 = vpop.f32.mrf.mxu0
    %v2469 = vadd.f32 %v2276, %v2468
    %v2470 = vpop.f32.mrf.mxu0
    %v2471 = vadd.f32 %v2278, %v2470
    %v2472 = vpop.f32.mrf.mxu0
    %v2473 = vadd.f32 %v2280, %v2472
    %v2474 = vpop.f32.mrf.mxu0
    %v2475 = vadd.f32 %v2282, %v2474
    %2476 = vmatprep.mubr.bf16.mxu0 %v930
    %2477 = vmatmul.mubr.bf16.gmra.mxu0 %v929
    %v2478 = vpop.f32.mrf.mxu0
    %v2479 = vadd.f32 %v2286, %v2478
    %v2480 = vpop.f32.mrf.mxu0
    %v2481 = vadd.f32 %v2288, %v2480
    %v2482 = vpop.f32.mrf.mxu0
    %v2483 = vadd.f32 %v2290, %v2482
    %v2484 = vpop.f32.mrf.mxu0
    %v2485 = vadd.f32 %v2292, %v2484
    %2486 = vmatprep.mubr.bf16.mxu0 %v934
    %2487 = vmatmul.mubr.bf16.gmra.mxu0 %v933
    %v2488 = vpop.f32.mrf.mxu0
    %v2489 = vadd.f32 %v2296, %v2488
    %v2490 = vpop.f32.mrf.mxu0
    %v2491 = vadd.f32 %v2298, %v2490
    %v2492 = vpop.f32.mrf.mxu0
    %v2493 = vadd.f32 %v2300, %v2492
    %v2494 = vpop.f32.mrf.mxu0
    %v2495 = vadd.f32 %v2302, %v2494
    %2496 = vdwg.mxu0
    %v2497 = vadd.f32 %v1953, %v1957
    %v2498 = vadd.f32 %v2497, %v1963
    %v2499 = vadd.f32 %v2498, %v1967
    %v2500 = vadd.f32 %v2499, %v1973
    %v2501 = vadd.f32 %v2500, %v1977
    %v2502 = vadd.f32 %v2501, %v1983
    %v2503 = vadd.f32 %v2502, %v1987
    %v2504 = vadd.f32 %v2503, %v1993
    %v2505 = vadd.f32 %v2504, %v1997
    %v2506 = vadd.f32 %v2505, %v2003
    %v2507 = vadd.f32 %v2506, %v2007
    %v2508 = vadd.f32 %v2507, %v2013
    %v2509 = vadd.f32 %v2508, %v2017
    %v2510 = vadd.f32 %v2509, %v2023
    %v2511 = vadd.f32 %v2510, %v2027
    %v2512 = vadd.f32 %v2511, %v2033
    %v2513 = vadd.f32 %v2512, %v2037
    %v2514 = vadd.f32 %v2513, %v2043
    %v2515 = vadd.f32 %v2514, %v2047
    %v2516 = vadd.f32 %v2515, %v2053
    %v2517 = vadd.f32 %v2516, %v2057
    %v2518 = vadd.f32 %v2517, %v2063
    %v2519 = vadd.f32 %v2518, %v2067
    %v2520 = vadd.f32 %v2519, %v2073
    %v2521 = vadd.f32 %v2520, %v2077
    %v2522 = vadd.f32 %v2521, %v2083
    %v2523 = vadd.f32 %v2522, %v2087
    %v2524 = vadd.f32 %v2523, %v2093
    %v2525 = vadd.f32 %v2524, %v2097
    %v2526 = vadd.f32 %v2525, %v2103
    %v2527 = vadd.f32 %v2526, %v2107
    %v2528 = vrot.slane %v2527, 4
    %v2529 = vadd.f32 %v2527, %v2528
    %v2530 = vrot.slane %v2529, 2
    %v2531 = vadd.f32 %v2529, %v2530
    %v2532 = vrot.slane %v2531, 1
    %v2533 = vadd.f32 %v2531, %v2532
    %v2534 = vadd.f32 %v1955, %v1959
    %v2535 = vadd.f32 %v2534, %v1965
    %v2536 = vadd.f32 %v2535, %v1969
    %v2537 = vadd.f32 %v2536, %v1975
    %v2538 = vadd.f32 %v2537, %v1979
    %v2539 = vadd.f32 %v2538, %v1985
    %v2540 = vadd.f32 %v2539, %v1989
    %v2541 = vadd.f32 %v2540, %v1995
    %v2542 = vadd.f32 %v2541, %v1999
    %v2543 = vadd.f32 %v2542, %v2005
    %v2544 = vadd.f32 %v2543, %v2009
    %v2545 = vadd.f32 %v2544, %v2015
    %v2546 = vadd.f32 %v2545, %v2019
    %v2547 = vadd.f32 %v2546, %v2025
    %v2548 = vadd.f32 %v2547, %v2029
    %v2549 = vadd.f32 %v2548, %v2035
    %v2550 = vadd.f32 %v2549, %v2039
    %v2551 = vadd.f32 %v2550, %v2045
    %v2552 = vadd.f32 %v2551, %v2049
    %v2553 = vadd.f32 %v2552, %v2055
    %v2554 = vadd.f32 %v2553, %v2059
    %v2555 = vadd.f32 %v2554, %v2065
    %v2556 = vadd.f32 %v2555, %v2069
    %v2557 = vadd.f32 %v2556, %v2075
    %v2558 = vadd.f32 %v2557, %v2079
    %v2559 = vadd.f32 %v2558, %v2085
    %v2560 = vadd.f32 %v2559, %v2089
    %v2561 = vadd.f32 %v2560, %v2095
    %v2562 = vadd.f32 %v2561, %v2099
    %v2563 = vadd.f32 %v2562, %v2105
    %v2564 = vadd.f32 %v2563, %v2109
    %v2565 = vrot.slane %v2564, 4
    %v2566 = vadd.f32 %v2564, %v2565
    %v2567 = vrot.slane %v2566, 2
    %v2568 = vadd.f32 %v2566, %v2567
    %v2569 = vrot.slane %v2568, 1
    %v2570 = vadd.f32 %v2568, %v2569
    %v2571 = vadd.f32 %v2339, %v2343
    %v2572 = vadd.f32 %v2571, %v2349
    %v2573 = vadd.f32 %v2572, %v2353
    %v2574 = vadd.f32 %v2573, %v2359
    %v2575 = vadd.f32 %v2574, %v2363
    %v2576 = vadd.f32 %v2575, %v2369
    %v2577 = vadd.f32 %v2576, %v2373
    %v2578 = vadd.f32 %v2577, %v2379
    %v2579 = vadd.f32 %v2578, %v2383
    %v2580 = vadd.f32 %v2579, %v2389
    %v2581 = vadd.f32 %v2580, %v2393
    %v2582 = vadd.f32 %v2581, %v2399
    %v2583 = vadd.f32 %v2582, %v2403
    %v2584 = vadd.f32 %v2583, %v2409
    %v2585 = vadd.f32 %v2584, %v2413
    %v2586 = vadd.f32 %v2585, %v2419
    %v2587 = vadd.f32 %v2586, %v2423
    %v2588 = vadd.f32 %v2587, %v2429
    %v2589 = vadd.f32 %v2588, %v2433
    %v2590 = vadd.f32 %v2589, %v2439
    %v2591 = vadd.f32 %v2590, %v2443
    %v2592 = vadd.f32 %v2591, %v2449
    %v2593 = vadd.f32 %v2592, %v2453
    %v2594 = vadd.f32 %v2593, %v2459
    %v2595 = vadd.f32 %v2594, %v2463
    %v2596 = vadd.f32 %v2595, %v2469
    %v2597 = vadd.f32 %v2596, %v2473
    %v2598 = vadd.f32 %v2597, %v2479
    %v2599 = vadd.f32 %v2598, %v2483
    %v2600 = vadd.f32 %v2599, %v2489
    %v2601 = vadd.f32 %v2600, %v2493
    %v2602 = vrot.slane %v2601, 4
    %v2603 = vadd.f32 %v2601, %v2602
    %v2604 = vrot.slane %v2603, 2
    %v2605 = vadd.f32 %v2603, %v2604
    %v2606 = vrot.slane %v2605, 1
    %v2607 = vadd.f32 %v2605, %v2606
    %v2608 = vadd.f32 %v2341, %v2345
    %v2609 = vadd.f32 %v2608, %v2351
    %v2610 = vadd.f32 %v2609, %v2355
    %v2611 = vadd.f32 %v2610, %v2361
    %v2612 = vadd.f32 %v2611, %v2365
    %v2613 = vadd.f32 %v2612, %v2371
    %v2614 = vadd.f32 %v2613, %v2375
    %v2615 = vadd.f32 %v2614, %v2381
    %v2616 = vadd.f32 %v2615, %v2385
    %v2617 = vadd.f32 %v2616, %v2391
    %v2618 = vadd.f32 %v2617, %v2395
    %v2619 = vadd.f32 %v2618, %v2401
    %v2620 = vadd.f32 %v2619, %v2405
    %v2621 = vadd.f32 %v2620, %v2411
    %v2622 = vadd.f32 %v2621, %v2415
    %v2623 = vadd.f32 %v2622, %v2421
    %v2624 = vadd.f32 %v2623, %v2425
    %v2625 = vadd.f32 %v2624, %v2431
    %v2626 = vadd.f32 %v2625, %v2435
    %v2627 = vadd.f32 %v2626, %v2441
    %v2628 = vadd.f32 %v2627, %v2445
    %v2629 = vadd.f32 %v2628, %v2451
    %v2630 = vadd.f32 %v2629, %v2455
    %v2631 = vadd.f32 %v2630, %v2461
    %v2632 = vadd.f32 %v2631, %v2465
    %v2633 = vadd.f32 %v2632, %v2471
    %v2634 = vadd.f32 %v2633, %v2475
    %v2635 = vadd.f32 %v2634, %v2481
    %v2636 = vadd.f32 %v2635, %v2485
    %v2637 = vadd.f32 %v2636, %v2491
    %v2638 = vadd.f32 %v2637, %v2495
    %v2639 = vrot.slane %v2638, 4
    %v2640 = vadd.f32 %v2638, %v2639
    %v2641 = vrot.slane %v2640, 2
    %v2642 = vadd.f32 %v2640, %v2641
    %v2643 = vrot.slane %v2642, 1
    %v2644 = vadd.f32 %v2642, %v2643
    %v2645 = vrcp.pop 256.0
    %v2646 = vmul.f32 %v2533, %v2645
    %v2647 = vmul.f32 %v2570, %v2645
    %v2648 = vmul.f32 %v2607, %v2645
    %v2649 = vmul.f32 %v2644, %v2645
    %v2650 = vsub.f32 %v1953, %v2646
    %v2651 = vsub.f32 %v1955, %v2647
    %v2652 = vsub.f32 %v2339, %v2648
    %v2653 = vsub.f32 %v2341, %v2649
    %v2654 = vsub.f32 %v1957, %v2646
    %v2655 = vsub.f32 %v1959, %v2647
    %v2656 = vsub.f32 %v2343, %v2648
    %v2657 = vsub.f32 %v2345, %v2649
    %v2658 = vsub.f32 %v1963, %v2646
    %v2659 = vsub.f32 %v1965, %v2647
    %v2660 = vsub.f32 %v2349, %v2648
    %v2661 = vsub.f32 %v2351, %v2649
    %v2662 = vsub.f32 %v1967, %v2646
    %v2663 = vsub.f32 %v1969, %v2647
    %v2664 = vsub.f32 %v2353, %v2648
    %v2665 = vsub.f32 %v2355, %v2649
    %v2666 = vsub.f32 %v1973, %v2646
    %v2667 = vsub.f32 %v1975, %v2647
    %v2668 = vsub.f32 %v2359, %v2648
    %v2669 = vsub.f32 %v2361, %v2649
    %v2670 = vsub.f32 %v1977, %v2646
    %v2671 = vsub.f32 %v1979, %v2647
    %v2672 = vsub.f32 %v2363, %v2648
    %v2673 = vsub.f32 %v2365, %v2649
    %v2674 = vsub.f32 %v1983, %v2646
    %v2675 = vsub.f32 %v1985, %v2647
    %v2676 = vsub.f32 %v2369, %v2648
    %v2677 = vsub.f32 %v2371, %v2649
    %v2678 = vsub.f32 %v1987, %v2646
    %v2679 = vsub.f32 %v1989, %v2647
    %v2680 = vsub.f32 %v2373, %v2648
    %v2681 = vsub.f32 %v2375, %v2649
    %v2682 = vsub.f32 %v1993, %v2646
    %v2683 = vsub.f32 %v1995, %v2647
    %v2684 = vsub.f32 %v2379, %v2648
    %v2685 = vsub.f32 %v2381, %v2649
    %v2686 = vsub.f32 %v1997, %v2646
    %v2687 = vsub.f32 %v1999, %v2647
    %v2688 = vsub.f32 %v2383, %v2648
    %v2689 = vsub.f32 %v2385, %v2649
    %v2690 = vsub.f32 %v2003, %v2646
    %v2691 = vsub.f32 %v2005, %v2647
    %v2692 = vsub.f32 %v2389, %v2648
    %v2693 = vsub.f32 %v2391, %v2649
    %v2694 = vsub.f32 %v2007, %v2646
    %v2695 = vsub.f32 %v2009, %v2647
    %v2696 = vsub.f32 %v2393, %v2648
    %v2697 = vsub.f32 %v2395, %v2649
    %v2698 = vsub.f32 %v2013, %v2646
    %v2699 = vsub.f32 %v2015, %v2647
    %v2700 = vsub.f32 %v2399, %v2648
    %v2701 = vsub.f32 %v2401, %v2649
    %v2702 = vsub.f32 %v2017, %v2646
    %v2703 = vsub.f32 %v2019, %v2647
    %v2704 = vsub.f32 %v2403, %v2648
    %v2705 = vsub.f32 %v2405, %v2649
    %v2706 = vsub.f32 %v2023, %v2646
    %v2707 = vsub.f32 %v2025, %v2647
    %v2708 = vsub.f32 %v2409, %v2648
    %v2709 = vsub.f32 %v2411, %v2649
    %v2710 = vsub.f32 %v2027, %v2646
    %v2711 = vsub.f32 %v2029, %v2647
    %v2712 = vsub.f32 %v2413, %v2648
    %v2713 = vsub.f32 %v2415, %v2649
    %v2714 = vsub.f32 %v2033, %v2646
    %v2715 = vsub.f32 %v2035, %v2647
    %v2716 = vsub.f32 %v2419, %v2648
    %v2717 = vsub.f32 %v2421, %v2649
    %v2718 = vsub.f32 %v2037, %v2646
    %v2719 = vsub.f32 %v2039, %v2647
    %v2720 = vsub.f32 %v2423, %v2648
    %v2721 = vsub.f32 %v2425, %v2649
    %v2722 = vsub.f32 %v2043, %v2646
    %v2723 = vsub.f32 %v2045, %v2647
    %v2724 = vsub.f32 %v2429, %v2648
    %v2725 = vsub.f32 %v2431, %v2649
    %v2726 = vsub.f32 %v2047, %v2646
    %v2727 = vsub.f32 %v2049, %v2647
    %v2728 = vsub.f32 %v2433, %v2648
    %v2729 = vsub.f32 %v2435, %v2649
    %v2730 = vsub.f32 %v2053, %v2646
    %v2731 = vsub.f32 %v2055, %v2647
    %v2732 = vsub.f32 %v2439, %v2648
    %v2733 = vsub.f32 %v2441, %v2649
    %v2734 = vsub.f32 %v2057, %v2646
    %v2735 = vsub.f32 %v2059, %v2647
    %v2736 = vsub.f32 %v2443, %v2648
    %v2737 = vsub.f32 %v2445, %v2649
    %v2738 = vsub.f32 %v2063, %v2646
    %v2739 = vsub.f32 %v2065, %v2647
    %v2740 = vsub.f32 %v2449, %v2648
    %v2741 = vsub.f32 %v2451, %v2649
    %v2742 = vsub.f32 %v2067, %v2646
    %v2743 = vsub.f32 %v2069, %v2647
    %v2744 = vsub.f32 %v2453, %v2648
    %v2745 = vsub.f32 %v2455, %v2649
    %v2746 = vsub.f32 %v2073, %v2646
    %v2747 = vsub.f32 %v2075, %v2647
    %v2748 = vsub.f32 %v2459, %v2648
    %v2749 = vsub.f32 %v2461, %v2649
    %v2750 = vsub.f32 %v2077, %v2646
    %v2751 = vsub.f32 %v2079, %v2647
    %v2752 = vsub.f32 %v2463, %v2648
    %v2753 = vsub.f32 %v2465, %v2649
    %v2754 = vsub.f32 %v2083, %v2646
    %v2755 = vsub.f32 %v2085, %v2647
    %v2756 = vsub.f32 %v2469, %v2648
    %v2757 = vsub.f32 %v2471, %v2649
    %v2758 = vsub.f32 %v2087, %v2646
    %v2759 = vsub.f32 %v2089, %v2647
    %v2760 = vsub.f32 %v2473, %v2648
    %v2761 = vsub.f32 %v2475, %v2649
    %v2762 = vsub.f32 %v2093, %v2646
    %v2763 = vsub.f32 %v2095, %v2647
    %v2764 = vsub.f32 %v2479, %v2648
    %v2765 = vsub.f32 %v2481, %v2649
    %v2766 = vsub.f32 %v2097, %v2646
    %v2767 = vsub.f32 %v2099, %v2647
    %v2768 = vsub.f32 %v2483, %v2648
    %v2769 = vsub.f32 %v2485, %v2649
    %v2770 = vsub.f32 %v2103, %v2646
    %v2771 = vsub.f32 %v2105, %v2647
    %v2772 = vsub.f32 %v2489, %v2648
    %v2773 = vsub.f32 %v2491, %v2649
    %v2774 = vsub.f32 %v2107, %v2646
    %v2775 = vsub.f32 %v2109, %v2647
    %v2776 = vsub.f32 %v2493, %v2648
    %v2777 = vsub.f32 %v2495, %v2649
    %v2778 = vmul.f32 %v2650, %v2650
    %v2779 = vmul.f32 %v2651, %v2651
    %v2780 = vmul.f32 %v2652, %v2652
    %v2781 = vmul.f32 %v2653, %v2653
    %v2782 = vmul.f32 %v2654, %v2654
    %v2783 = vmul.f32 %v2655, %v2655
    %v2784 = vmul.f32 %v2656, %v2656
    %v2785 = vmul.f32 %v2657, %v2657
    %v2786 = vmul.f32 %v2658, %v2658
    %v2787 = vmul.f32 %v2659, %v2659
    %v2788 = vmul.f32 %v2660, %v2660
    %v2789 = vmul.f32 %v2661, %v2661
    %v2790 = vmul.f32 %v2662, %v2662
    %v2791 = vmul.f32 %v2663, %v2663
    %v2792 = vmul.f32 %v2664, %v2664
    %v2793 = vmul.f32 %v2665, %v2665
    %v2794 = vmul.f32 %v2666, %v2666
    %v2795 = vmul.f32 %v2667, %v2667
    %v2796 = vmul.f32 %v2668, %v2668
    %v2797 = vmul.f32 %v2669, %v2669
    %v2798 = vmul.f32 %v2670, %v2670
    %v2799 = vmul.f32 %v2671, %v2671
    %v2800 = vmul.f32 %v2672, %v2672
    %v2801 = vmul.f32 %v2673, %v2673
    %v2802 = vmul.f32 %v2674, %v2674
    %v2803 = vmul.f32 %v2675, %v2675
    %v2804 = vmul.f32 %v2676, %v2676
    %v2805 = vmul.f32 %v2677, %v2677
    %v2806 = vmul.f32 %v2678, %v2678
    %v2807 = vmul.f32 %v2679, %v2679
    %v2808 = vmul.f32 %v2680, %v2680
    %v2809 = vmul.f32 %v2681, %v2681
    %v2810 = vmul.f32 %v2682, %v2682
    %v2811 = vmul.f32 %v2683, %v2683
    %v2812 = vmul.f32 %v2684, %v2684
    %v2813 = vmul.f32 %v2685, %v2685
    %v2814 = vmul.f32 %v2686, %v2686
    %v2815 = vmul.f32 %v2687, %v2687
    %v2816 = vmul.f32 %v2688, %v2688
    %v2817 = vmul.f32 %v2689, %v2689
    %v2818 = vmul.f32 %v2690, %v2690
    %v2819 = vmul.f32 %v2691, %v2691
    %v2820 = vmul.f32 %v2692, %v2692
    %v2821 = vmul.f32 %v2693, %v2693
    %v2822 = vmul.f32 %v2694, %v2694
    %v2823 = vmul.f32 %v2695, %v2695
    %v2824 = vmul.f32 %v2696, %v2696
    %v2825 = vmul.f32 %v2697, %v2697
    %v2826 = vmul.f32 %v2698, %v2698
    %v2827 = vmul.f32 %v2699, %v2699
    %v2828 = vmul.f32 %v2700, %v2700
    %v2829 = vmul.f32 %v2701, %v2701
    %v2830 = vmul.f32 %v2702, %v2702
    %v2831 = vmul.f32 %v2703, %v2703
    %v2832 = vmul.f32 %v2704, %v2704
    %v2833 = vmul.f32 %v2705, %v2705
    %v2834 = vmul.f32 %v2706, %v2706
    %v2835 = vmul.f32 %v2707, %v2707
    %v2836 = vmul.f32 %v2708, %v2708
    %v2837 = vmul.f32 %v2709, %v2709
    %v2838 = vmul.f32 %v2710, %v2710
    %v2839 = vmul.f32 %v2711, %v2711
    %v2840 = vmul.f32 %v2712, %v2712
    %v2841 = vmul.f32 %v2713, %v2713
    %v2842 = vmul.f32 %v2714, %v2714
    %v2843 = vmul.f32 %v2715, %v2715
    %v2844 = vmul.f32 %v2716, %v2716
    %v2845 = vmul.f32 %v2717, %v2717
    %v2846 = vmul.f32 %v2718, %v2718
    %v2847 = vmul.f32 %v2719, %v2719
    %v2848 = vmul.f32 %v2720, %v2720
    %v2849 = vmul.f32 %v2721, %v2721
    %v2850 = vmul.f32 %v2722, %v2722
    %v2851 = vmul.f32 %v2723, %v2723
    %v2852 = vmul.f32 %v2724, %v2724
    %v2853 = vmul.f32 %v2725, %v2725
    %v2854 = vmul.f32 %v2726, %v2726
    %v2855 = vmul.f32 %v2727, %v2727
    %v2856 = vmul.f32 %v2728, %v2728
    %v2857 = vmul.f32 %v2729, %v2729
    %v2858 = vmul.f32 %v2730, %v2730
    %v2859 = vmul.f32 %v2731, %v2731
    %v2860 = vmul.f32 %v2732, %v2732
    %v2861 = vmul.f32 %v2733, %v2733
    %v2862 = vmul.f32 %v2734, %v2734
    %v2863 = vmul.f32 %v2735, %v2735
    %v2864 = vmul.f32 %v2736, %v2736
    %v2865 = vmul.f32 %v2737, %v2737
    %v2866 = vmul.f32 %v2738, %v2738
    %v2867 = vmul.f32 %v2739, %v2739
    %v2868 = vmul.f32 %v2740, %v2740
    %v2869 = vmul.f32 %v2741, %v2741
    %v2870 = vmul.f32 %v2742, %v2742
    %v2871 = vmul.f32 %v2743, %v2743
    %v2872 = vmul.f32 %v2744, %v2744
    %v2873 = vmul.f32 %v2745, %v2745
    %v2874 = vmul.f32 %v2746, %v2746
    %v2875 = vmul.f32 %v2747, %v2747
    %v2876 = vmul.f32 %v2748, %v2748
    %v2877 = vmul.f32 %v2749, %v2749
    %v2878 = vmul.f32 %v2750, %v2750
    %v2879 = vmul.f32 %v2751, %v2751
    %v2880 = vmul.f32 %v2752, %v2752
    %v2881 = vmul.f32 %v2753, %v2753
    %v2882 = vmul.f32 %v2754, %v2754
    %v2883 = vmul.f32 %v2755, %v2755
    %v2884 = vmul.f32 %v2756, %v2756
    %v2885 = vmul.f32 %v2757, %v2757
    %v2886 = vmul.f32 %v2758, %v2758
    %v2887 = vmul.f32 %v2759, %v2759
    %v2888 = vmul.f32 %v2760, %v2760
    %v2889 = vmul.f32 %v2761, %v2761
    %v2890 = vmul.f32 %v2762, %v2762
    %v2891 = vmul.f32 %v2763, %v2763
    %v2892 = vmul.f32 %v2764, %v2764
    %v2893 = vmul.f32 %v2765, %v2765
    %v2894 = vmul.f32 %v2766, %v2766
    %v2895 = vmul.f32 %v2767, %v2767
    %v2896 = vmul.f32 %v2768, %v2768
    %v2897 = vmul.f32 %v2769, %v2769
    %v2898 = vmul.f32 %v2770, %v2770
    %v2899 = vmul.f32 %v2771, %v2771
    %v2900 = vmul.f32 %v2772, %v2772
    %v2901 = vmul.f32 %v2773, %v2773
    %v2902 = vmul.f32 %v2774, %v2774
    %v2903 = vmul.f32 %v2775, %v2775
    %v2904 = vmul.f32 %v2776, %v2776
    %v2905 = vmul.f32 %v2777, %v2777
    %v2906 = vadd.f32 %v2778, %v2782
    %v2907 = vadd.f32 %v2906, %v2786
    %v2908 = vadd.f32 %v2907, %v2790
    %v2909 = vadd.f32 %v2908, %v2794
    %v2910 = vadd.f32 %v2909, %v2798
    %v2911 = vadd.f32 %v2910, %v2802
    %v2912 = vadd.f32 %v2911, %v2806
    %v2913 = vadd.f32 %v2912, %v2810
    %v2914 = vadd.f32 %v2913, %v2814
    %v2915 = vadd.f32 %v2914, %v2818
    %v2916 = vadd.f32 %v2915, %v2822
    %v2917 = vadd.f32 %v2916, %v2826
    %v2918 = vadd.f32 %v2917, %v2830
    %v2919 = vadd.f32 %v2918, %v2834
    %v2920 = vadd.f32 %v2919, %v2838
    %v2921 = vadd.f32 %v2920, %v2842
    %v2922 = vadd.f32 %v2921, %v2846
    %v2923 = vadd.f32 %v2922, %v2850
    %v2924 = vadd.f32 %v2923, %v2854
    %v2925 = vadd.f32 %v2924, %v2858
    %v2926 = vadd.f32 %v2925, %v2862
    %v2927 = vadd.f32 %v2926, %v2866
    %v2928 = vadd.f32 %v2927, %v2870
    %v2929 = vadd.f32 %v2928, %v2874
    %v2930 = vadd.f32 %v2929, %v2878
    %v2931 = vadd.f32 %v2930, %v2882
    %v2932 = vadd.f32 %v2931, %v2886
    %v2933 = vadd.f32 %v2932, %v2890
    %v2934 = vadd.f32 %v2933, %v2894
    %v2935 = vadd.f32 %v2934, %v2898
    %v2936 = vadd.f32 %v2935, %v2902
    %v2937 = vrot.slane %v2936, 4
    %v2938 = vadd.f32 %v2936, %v2937
    %v2939 = vrot.slane %v2938, 2
    %v2940 = vadd.f32 %v2938, %v2939
    %v2941 = vrot.slane %v2940, 1
    %v2942 = vadd.f32 %v2940, %v2941
    %v2943 = vadd.f32 %v2779, %v2783
    %v2944 = vadd.f32 %v2943, %v2787
    %v2945 = vadd.f32 %v2944, %v2791
    %v2946 = vadd.f32 %v2945, %v2795
    %v2947 = vadd.f32 %v2946, %v2799
    %v2948 = vadd.f32 %v2947, %v2803
    %v2949 = vadd.f32 %v2948, %v2807
    %v2950 = vadd.f32 %v2949, %v2811
    %v2951 = vadd.f32 %v2950, %v2815
    %v2952 = vadd.f32 %v2951, %v2819
    %v2953 = vadd.f32 %v2952, %v2823
    %v2954 = vadd.f32 %v2953, %v2827
    %v2955 = vadd.f32 %v2954, %v2831
    %v2956 = vadd.f32 %v2955, %v2835
    %v2957 = vadd.f32 %v2956, %v2839
    %v2958 = vadd.f32 %v2957, %v2843
    %v2959 = vadd.f32 %v2958, %v2847
    %v2960 = vadd.f32 %v2959, %v2851
    %v2961 = vadd.f32 %v2960, %v2855
    %v2962 = vadd.f32 %v2961, %v2859
    %v2963 = vadd.f32 %v2962, %v2863
    %v2964 = vadd.f32 %v2963, %v2867
    %v2965 = vadd.f32 %v2964, %v2871
    %v2966 = vadd.f32 %v2965, %v2875
    %v2967 = vadd.f32 %v2966, %v2879
    %v2968 = vadd.f32 %v2967, %v2883
    %v2969 = vadd.f32 %v2968, %v2887
    %v2970 = vadd.f32 %v2969, %v2891
    %v2971 = vadd.f32 %v2970, %v2895
    %v2972 = vadd.f32 %v2971, %v2899
    %v2973 = vadd.f32 %v2972, %v2903
    %v2974 = vrot.slane %v2973, 4
    %v2975 = vadd.f32 %v2973, %v2974
    %v2976 = vrot.slane %v2975, 2
    %v2977 = vadd.f32 %v2975, %v2976
    %v2978 = vrot.slane %v2977, 1
    %v2979 = vadd.f32 %v2977, %v2978
    %v2980 = vadd.f32 %v2780, %v2784
    %v2981 = vadd.f32 %v2980, %v2788
    %v2982 = vadd.f32 %v2981, %v2792
    %v2983 = vadd.f32 %v2982, %v2796
    %v2984 = vadd.f32 %v2983, %v2800
    %v2985 = vadd.f32 %v2984, %v2804
    %v2986 = vadd.f32 %v2985, %v2808
    %v2987 = vadd.f32 %v2986, %v2812
    %v2988 = vadd.f32 %v2987, %v2816
    %v2989 = vadd.f32 %v2988, %v2820
    %v2990 = vadd.f32 %v2989, %v2824
    %v2991 = vadd.f32 %v2990, %v2828
    %v2992 = vadd.f32 %v2991, %v2832
    %v2993 = vadd.f32 %v2992, %v2836
    %v2994 = vadd.f32 %v2993, %v2840
    %v2995 = vadd.f32 %v2994, %v2844
    %v2996 = vadd.f32 %v2995, %v2848
    %v2997 = vadd.f32 %v2996, %v2852
    %v2998 = vadd.f32 %v2997, %v2856
    %v2999 = vadd.f32 %v2998, %v2860
    %v3000 = vadd.f32 %v2999, %v2864
    %v3001 = vadd.f32 %v3000, %v2868
    %v3002 = vadd.f32 %v3001, %v2872
    %v3003 = vadd.f32 %v3002, %v2876
    %v3004 = vadd.f32 %v3003, %v2880
    %v3005 = vadd.f32 %v3004, %v2884
    %v3006 = vadd.f32 %v3005, %v2888
    %v3007 = vadd.f32 %v3006, %v2892
    %v3008 = vadd.f32 %v3007, %v2896
    %v3009 = vadd.f32 %v3008, %v2900
    %v3010 = vadd.f32 %v3009, %v2904
    %v3011 = vrot.slane %v3010, 4
    %v3012 = vadd.f32 %v3010, %v3011
    %v3013 = vrot.slane %v3012, 2
    %v3014 = vadd.f32 %v3012, %v3013
    %v3015 = vrot.slane %v3014, 1
    %v3016 = vadd.f32 %v3014, %v3015
    %v3017 = vadd.f32 %v2781, %v2785
    %v3018 = vadd.f32 %v3017, %v2789
    %v3019 = vadd.f32 %v3018, %v2793
    %v3020 = vadd.f32 %v3019, %v2797
    %v3021 = vadd.f32 %v3020, %v2801
    %v3022 = vadd.f32 %v3021, %v2805
    %v3023 = vadd.f32 %v3022, %v2809
    %v3024 = vadd.f32 %v3023, %v2813
    %v3025 = vadd.f32 %v3024, %v2817
    %v3026 = vadd.f32 %v3025, %v2821
    %v3027 = vadd.f32 %v3026, %v2825
    %v3028 = vadd.f32 %v3027, %v2829
    %v3029 = vadd.f32 %v3028, %v2833
    %v3030 = vadd.f32 %v3029, %v2837
    %v3031 = vadd.f32 %v3030, %v2841
    %v3032 = vadd.f32 %v3031, %v2845
    %v3033 = vadd.f32 %v3032, %v2849
    %v3034 = vadd.f32 %v3033, %v2853
    %v3035 = vadd.f32 %v3034, %v2857
    %v3036 = vadd.f32 %v3035, %v2861
    %v3037 = vadd.f32 %v3036, %v2865
    %v3038 = vadd.f32 %v3037, %v2869
    %v3039 = vadd.f32 %v3038, %v2873
    %v3040 = vadd.f32 %v3039, %v2877
    %v3041 = vadd.f32 %v3040, %v2881
    %v3042 = vadd.f32 %v3041, %v2885
    %v3043 = vadd.f32 %v3042, %v2889
    %v3044 = vadd.f32 %v3043, %v2893
    %v3045 = vadd.f32 %v3044, %v2897
    %v3046 = vadd.f32 %v3045, %v2901
    %v3047 = vadd.f32 %v3046, %v2905
    %v3048 = vrot.slane %v3047, 4
    %v3049 = vadd.f32 %v3047, %v3048
    %v3050 = vrot.slane %v3049, 2
    %v3051 = vadd.f32 %v3049, %v3050
    %v3052 = vrot.slane %v3051, 1
    %v3053 = vadd.f32 %v3051, %v3052
    %v3054 = vmul.f32 %v2942, %v2645
    %v3055 = vmul.f32 %v2979, %v2645
    %v3056 = vmul.f32 %v3016, %v2645
    %v3057 = vmul.f32 %v3053, %v2645
    %v3058 = vadd.f32 %v3054, 1e-05
    %v3059 = vadd.f32 %v3055, 1e-05
    %v3060 = vadd.f32 %v3056, 1e-05
    %v3061 = vadd.f32 %v3057, 1e-05
    %v3062 = vrsqrt.pop %v3058
    %v3063 = vrsqrt.pop %v3059
    %v3064 = vrsqrt.pop %v3060
    %v3065 = vrsqrt.pop %v3061
    %v3066 = vld [vmem:[%s5] sm:$0xf]
    %v3071 = vcombine.low %v3062, %v3063
    %v3072 = vcombine.low %v3064, %v3065
    %v3074 = vunpack.c.l.s4 1966171168
    %v3075 = vunpack.c.0.s8 %v3074
    %v3076 = vlaneseq
    %v3077 = vshrl.u32 %v3076, 7
    %v3078 = vsub.s32 %v3075, %v3077
    %v3079 = vrot.slane %v3071, %v3078
    %v3081 = vunpack.c.l.s4 1966171168
    %v3082 = vunpack.c.0.s8 %v3081
    %v3083 = vlaneseq
    %v3084 = vshrl.u32 %v3083, 7
    %v3085 = vsub.s32 %v3082, %v3084
    %v3086 = vrot.slane %v3072, %v3085
    %v3087 = vcombine.low %v3079, %v3086
    %v3089 = vunpack.c.l.s4 1966171168
    %v3090 = vunpack.c.0.s8 %v3089
    %v3091 = vlaneseq
    %v3092 = vshrl.u32 %v3091, 7
    %v3093 = vsub.s32 %v3090, %v3092
    %v3094 = vrot.slane %v3087, %v3093
    %v3096 = vmul.f32 %v3066, %v3094
    %v3097 = vld [vmem:[%s6] sm:$0xf]
    %v3099 = vlaneseq
    %v3100 = vshrl.u32 %v3099, 7
    %v3101 = vsub.s32 0, %v3100
    %v3102 = vrot.slane %v3096, %v3101
    %v3103 = vlaneseq
    %v3104 = vshrl.u32 %v3103, 7
    %v3105 = vsub.s32 1, %v3104
    %v3106 = vrot.slane %v3096, %v3105
    %v3107 = vlaneseq
    %v3108 = vshrl.u32 %v3107, 7
    %v3109 = vsub.s32 2, %v3108
    %v3110 = vrot.slane %v3096, %v3109
    %v3111 = vlaneseq
    %v3112 = vshrl.u32 %v3111, 7
    %v3113 = vsub.s32 3, %v3112
    %v3114 = vrot.slane %v3096, %v3113
    %v3119 = vmul.f32 %v2646, %v3102
    %v3120 = vmul.f32 %v2647, %v3106
    %v3121 = vmul.f32 %v2648, %v3110
    %v3122 = vmul.f32 %v2649, %v3114
    %v3127 = vcombine.low %v3119, %v3120
    %v3128 = vcombine.low %v3121, %v3122
    %v3130 = vunpack.c.l.s4 1966171168
    %v3131 = vunpack.c.0.s8 %v3130
    %v3132 = vlaneseq
    %v3133 = vshrl.u32 %v3132, 7
    %v3134 = vsub.s32 %v3131, %v3133
    %v3135 = vrot.slane %v3127, %v3134
    %v3137 = vunpack.c.l.s4 1966171168
    %v3138 = vunpack.c.0.s8 %v3137
    %v3139 = vlaneseq
    %v3140 = vshrl.u32 %v3139, 7
    %v3141 = vsub.s32 %v3138, %v3140
    %v3142 = vrot.slane %v3128, %v3141
    %v3143 = vcombine.low %v3135, %v3142
    %v3145 = vunpack.c.l.s4 1966171168
    %v3146 = vunpack.c.0.s8 %v3145
    %v3147 = vlaneseq
    %v3148 = vshrl.u32 %v3147, 7
    %v3149 = vsub.s32 %v3146, %v3148
    %v3150 = vrot.slane %v3143, %v3149
    %v3152 = vsub.f32 %v3097, %v3150
    %v3153 = vmul.f32 %v1953, %v3102
    %v3154 = vmul.f32 %v1955, %v3106
    %v3155 = vmul.f32 %v2339, %v3110
    %v3156 = vmul.f32 %v2341, %v3114
    %v3157 = vmul.f32 %v1957, %v3102
    %v3158 = vmul.f32 %v1959, %v3106
    %v3159 = vmul.f32 %v2343, %v3110
    %v3160 = vmul.f32 %v2345, %v3114
    %v3161 = vmul.f32 %v1963, %v3102
    %v3162 = vmul.f32 %v1965, %v3106
    %v3163 = vmul.f32 %v2349, %v3110
    %v3164 = vmul.f32 %v2351, %v3114
    %v3165 = vmul.f32 %v1967, %v3102
    %v3166 = vmul.f32 %v1969, %v3106
    %v3167 = vmul.f32 %v2353, %v3110
    %v3168 = vmul.f32 %v2355, %v3114
    %v3169 = vmul.f32 %v1973, %v3102
    %v3170 = vmul.f32 %v1975, %v3106
    %v3171 = vmul.f32 %v2359, %v3110
    %v3172 = vmul.f32 %v2361, %v3114
    %v3173 = vmul.f32 %v1977, %v3102
    %v3174 = vmul.f32 %v1979, %v3106
    %v3175 = vmul.f32 %v2363, %v3110
    %v3176 = vmul.f32 %v2365, %v3114
    %v3177 = vmul.f32 %v1983, %v3102
    %v3178 = vmul.f32 %v1985, %v3106
    %v3179 = vmul.f32 %v2369, %v3110
    %v3180 = vmul.f32 %v2371, %v3114
    %v3181 = vmul.f32 %v1987, %v3102
    %v3182 = vmul.f32 %v1989, %v3106
    %v3183 = vmul.f32 %v2373, %v3110
    %v3184 = vmul.f32 %v2375, %v3114
    %v3185 = vmul.f32 %v1993, %v3102
    %v3186 = vmul.f32 %v1995, %v3106
    %v3187 = vmul.f32 %v2379, %v3110
    %v3188 = vmul.f32 %v2381, %v3114
    %v3189 = vmul.f32 %v1997, %v3102
    %v3190 = vmul.f32 %v1999, %v3106
    %v3191 = vmul.f32 %v2383, %v3110
    %v3192 = vmul.f32 %v2385, %v3114
    %v3193 = vmul.f32 %v2003, %v3102
    %v3194 = vmul.f32 %v2005, %v3106
    %v3195 = vmul.f32 %v2389, %v3110
    %v3196 = vmul.f32 %v2391, %v3114
    %v3197 = vmul.f32 %v2007, %v3102
    %v3198 = vmul.f32 %v2009, %v3106
    %v3199 = vmul.f32 %v2393, %v3110
    %v3200 = vmul.f32 %v2395, %v3114
    %v3201 = vmul.f32 %v2013, %v3102
    %v3202 = vmul.f32 %v2015, %v3106
    %v3203 = vmul.f32 %v2399, %v3110
    %v3204 = vmul.f32 %v2401, %v3114
    %v3205 = vmul.f32 %v2017, %v3102
    %v3206 = vmul.f32 %v2019, %v3106
    %v3207 = vmul.f32 %v2403, %v3110
    %v3208 = vmul.f32 %v2405, %v3114
    %v3209 = vmul.f32 %v2023, %v3102
    %v3210 = vmul.f32 %v2025, %v3106
    %v3211 = vmul.f32 %v2409, %v3110
    %v3212 = vmul.f32 %v2411, %v3114
    %v3213 = vmul.f32 %v2027, %v3102
    %v3214 = vmul.f32 %v2029, %v3106
    %v3215 = vmul.f32 %v2413, %v3110
    %v3216 = vmul.f32 %v2415, %v3114
    %v3217 = vmul.f32 %v2033, %v3102
    %v3218 = vmul.f32 %v2035, %v3106
    %v3219 = vmul.f32 %v2419, %v3110
    %v3220 = vmul.f32 %v2421, %v3114
    %v3221 = vmul.f32 %v2037, %v3102
    %v3222 = vmul.f32 %v2039, %v3106
    %v3223 = vmul.f32 %v2423, %v3110
    %v3224 = vmul.f32 %v2425, %v3114
    %v3225 = vmul.f32 %v2043, %v3102
    %v3226 = vmul.f32 %v2045, %v3106
    %v3227 = vmul.f32 %v2429, %v3110
    %v3228 = vmul.f32 %v2431, %v3114
    %v3229 = vmul.f32 %v2047, %v3102
    %v3230 = vmul.f32 %v2049, %v3106
    %v3231 = vmul.f32 %v2433, %v3110
    %v3232 = vmul.f32 %v2435, %v3114
    %v3233 = vmul.f32 %v2053, %v3102
    %v3234 = vmul.f32 %v2055, %v3106
    %v3235 = vmul.f32 %v2439, %v3110
    %v3236 = vmul.f32 %v2441, %v3114
    %v3237 = vmul.f32 %v2057, %v3102
    %v3238 = vmul.f32 %v2059, %v3106
    %v3239 = vmul.f32 %v2443, %v3110
    %v3240 = vmul.f32 %v2445, %v3114
    %v3241 = vmul.f32 %v2063, %v3102
    %v3242 = vmul.f32 %v2065, %v3106
    %v3243 = vmul.f32 %v2449, %v3110
    %v3244 = vmul.f32 %v2451, %v3114
    %v3245 = vmul.f32 %v2067, %v3102
    %v3246 = vmul.f32 %v2069, %v3106
    %v3247 = vmul.f32 %v2453, %v3110
    %v3248 = vmul.f32 %v2455, %v3114
    %v3249 = vmul.f32 %v2073, %v3102
    %v3250 = vmul.f32 %v2075, %v3106
    %v3251 = vmul.f32 %v2459, %v3110
    %v3252 = vmul.f32 %v2461, %v3114
    %v3253 = vmul.f32 %v2077, %v3102
    %v3254 = vmul.f32 %v2079, %v3106
    %v3255 = vmul.f32 %v2463, %v3110
    %v3256 = vmul.f32 %v2465, %v3114
    %v3257 = vmul.f32 %v2083, %v3102
    %v3258 = vmul.f32 %v2085, %v3106
    %v3259 = vmul.f32 %v2469, %v3110
    %v3260 = vmul.f32 %v2471, %v3114
    %v3261 = vmul.f32 %v2087, %v3102
    %v3262 = vmul.f32 %v2089, %v3106
    %v3263 = vmul.f32 %v2473, %v3110
    %v3264 = vmul.f32 %v2475, %v3114
    %v3265 = vmul.f32 %v2093, %v3102
    %v3266 = vmul.f32 %v2095, %v3106
    %v3267 = vmul.f32 %v2479, %v3110
    %v3268 = vmul.f32 %v2481, %v3114
    %v3269 = vmul.f32 %v2097, %v3102
    %v3270 = vmul.f32 %v2099, %v3106
    %v3271 = vmul.f32 %v2483, %v3110
    %v3272 = vmul.f32 %v2485, %v3114
    %v3273 = vmul.f32 %v2103, %v3102
    %v3274 = vmul.f32 %v2105, %v3106
    %v3275 = vmul.f32 %v2489, %v3110
    %v3276 = vmul.f32 %v2491, %v3114
    %v3277 = vmul.f32 %v2107, %v3102
    %v3278 = vmul.f32 %v2109, %v3106
    %v3279 = vmul.f32 %v2493, %v3110
    %v3280 = vmul.f32 %v2495, %v3114
    %v3282 = vlaneseq
    %v3283 = vshrl.u32 %v3282, 7
    %v3284 = vsub.s32 0, %v3283
    %v3285 = vrot.slane %v3152, %v3284
    %v3286 = vlaneseq
    %v3287 = vshrl.u32 %v3286, 7
    %v3288 = vsub.s32 1, %v3287
    %v3289 = vrot.slane %v3152, %v3288
    %v3290 = vlaneseq
    %v3291 = vshrl.u32 %v3290, 7
    %v3292 = vsub.s32 2, %v3291
    %v3293 = vrot.slane %v3152, %v3292
    %v3294 = vlaneseq
    %v3295 = vshrl.u32 %v3294, 7
    %v3296 = vsub.s32 3, %v3295
    %v3297 = vrot.slane %v3152, %v3296
    %v3302 = vadd.f32 %v3153, %v3285
    %v3303 = vadd.f32 %v3154, %v3289
    %v3304 = vadd.f32 %v3155, %v3293
    %v3305 = vadd.f32 %v3156, %v3297
    %v3306 = vadd.f32 %v3157, %v3285
    %v3307 = vadd.f32 %v3158, %v3289
    %v3308 = vadd.f32 %v3159, %v3293
    %v3309 = vadd.f32 %v3160, %v3297
    %v3310 = vadd.f32 %v3161, %v3285
    %v3311 = vadd.f32 %v3162, %v3289
    %v3312 = vadd.f32 %v3163, %v3293
    %v3313 = vadd.f32 %v3164, %v3297
    %v3314 = vadd.f32 %v3165, %v3285
    %v3315 = vadd.f32 %v3166, %v3289
    %v3316 = vadd.f32 %v3167, %v3293
    %v3317 = vadd.f32 %v3168, %v3297
    %v3318 = vadd.f32 %v3169, %v3285
    %v3319 = vadd.f32 %v3170, %v3289
    %v3320 = vadd.f32 %v3171, %v3293
    %v3321 = vadd.f32 %v3172, %v3297
    %v3322 = vadd.f32 %v3173, %v3285
    %v3323 = vadd.f32 %v3174, %v3289
    %v3324 = vadd.f32 %v3175, %v3293
    %v3325 = vadd.f32 %v3176, %v3297
    %v3326 = vadd.f32 %v3177, %v3285
    %v3327 = vadd.f32 %v3178, %v3289
    %v3328 = vadd.f32 %v3179, %v3293
    %v3329 = vadd.f32 %v3180, %v3297
    %v3330 = vadd.f32 %v3181, %v3285
    %v3331 = vadd.f32 %v3182, %v3289
    %v3332 = vadd.f32 %v3183, %v3293
    %v3333 = vadd.f32 %v3184, %v3297
    %v3334 = vadd.f32 %v3185, %v3285
    %v3335 = vadd.f32 %v3186, %v3289
    %v3336 = vadd.f32 %v3187, %v3293
    %v3337 = vadd.f32 %v3188, %v3297
    %v3338 = vadd.f32 %v3189, %v3285
    %v3339 = vadd.f32 %v3190, %v3289
    %v3340 = vadd.f32 %v3191, %v3293
    %v3341 = vadd.f32 %v3192, %v3297
    %v3342 = vadd.f32 %v3193, %v3285
    %v3343 = vadd.f32 %v3194, %v3289
    %v3344 = vadd.f32 %v3195, %v3293
    %v3345 = vadd.f32 %v3196, %v3297
    %v3346 = vadd.f32 %v3197, %v3285
    %v3347 = vadd.f32 %v3198, %v3289
    %v3348 = vadd.f32 %v3199, %v3293
    %v3349 = vadd.f32 %v3200, %v3297
    %v3350 = vadd.f32 %v3201, %v3285
    %v3351 = vadd.f32 %v3202, %v3289
    %v3352 = vadd.f32 %v3203, %v3293
    %v3353 = vadd.f32 %v3204, %v3297
    %v3354 = vadd.f32 %v3205, %v3285
    %v3355 = vadd.f32 %v3206, %v3289
    %v3356 = vadd.f32 %v3207, %v3293
    %v3357 = vadd.f32 %v3208, %v3297
    %v3358 = vadd.f32 %v3209, %v3285
    %v3359 = vadd.f32 %v3210, %v3289
    %v3360 = vadd.f32 %v3211, %v3293
    %v3361 = vadd.f32 %v3212, %v3297
    %v3362 = vadd.f32 %v3213, %v3285
    %v3363 = vadd.f32 %v3214, %v3289
    %v3364 = vadd.f32 %v3215, %v3293
    %v3365 = vadd.f32 %v3216, %v3297
    %v3366 = vadd.f32 %v3217, %v3285
    %v3367 = vadd.f32 %v3218, %v3289
    %v3368 = vadd.f32 %v3219, %v3293
    %v3369 = vadd.f32 %v3220, %v3297
    %v3370 = vadd.f32 %v3221, %v3285
    %v3371 = vadd.f32 %v3222, %v3289
    %v3372 = vadd.f32 %v3223, %v3293
    %v3373 = vadd.f32 %v3224, %v3297
    %v3374 = vadd.f32 %v3225, %v3285
    %v3375 = vadd.f32 %v3226, %v3289
    %v3376 = vadd.f32 %v3227, %v3293
    %v3377 = vadd.f32 %v3228, %v3297
    %v3378 = vadd.f32 %v3229, %v3285
    %v3379 = vadd.f32 %v3230, %v3289
    %v3380 = vadd.f32 %v3231, %v3293
    %v3381 = vadd.f32 %v3232, %v3297
    %v3382 = vadd.f32 %v3233, %v3285
    %v3383 = vadd.f32 %v3234, %v3289
    %v3384 = vadd.f32 %v3235, %v3293
    %v3385 = vadd.f32 %v3236, %v3297
    %v3386 = vadd.f32 %v3237, %v3285
    %v3387 = vadd.f32 %v3238, %v3289
    %v3388 = vadd.f32 %v3239, %v3293
    %v3389 = vadd.f32 %v3240, %v3297
    %v3390 = vadd.f32 %v3241, %v3285
    %v3391 = vadd.f32 %v3242, %v3289
    %v3392 = vadd.f32 %v3243, %v3293
    %v3393 = vadd.f32 %v3244, %v3297
    %v3394 = vadd.f32 %v3245, %v3285
    %v3395 = vadd.f32 %v3246, %v3289
    %v3396 = vadd.f32 %v3247, %v3293
    %v3397 = vadd.f32 %v3248, %v3297
    %v3398 = vadd.f32 %v3249, %v3285
    %v3399 = vadd.f32 %v3250, %v3289
    %v3400 = vadd.f32 %v3251, %v3293
    %v3401 = vadd.f32 %v3252, %v3297
    %v3402 = vadd.f32 %v3253, %v3285
    %v3403 = vadd.f32 %v3254, %v3289
    %v3404 = vadd.f32 %v3255, %v3293
    %v3405 = vadd.f32 %v3256, %v3297
    %v3406 = vadd.f32 %v3257, %v3285
    %v3407 = vadd.f32 %v3258, %v3289
    %v3408 = vadd.f32 %v3259, %v3293
    %v3409 = vadd.f32 %v3260, %v3297
    %v3410 = vadd.f32 %v3261, %v3285
    %v3411 = vadd.f32 %v3262, %v3289
    %v3412 = vadd.f32 %v3263, %v3293
    %v3413 = vadd.f32 %v3264, %v3297
    %v3414 = vadd.f32 %v3265, %v3285
    %v3415 = vadd.f32 %v3266, %v3289
    %v3416 = vadd.f32 %v3267, %v3293
    %v3417 = vadd.f32 %v3268, %v3297
    %v3418 = vadd.f32 %v3269, %v3285
    %v3419 = vadd.f32 %v3270, %v3289
    %v3420 = vadd.f32 %v3271, %v3293
    %v3421 = vadd.f32 %v3272, %v3297
    %v3422 = vadd.f32 %v3273, %v3285
    %v3423 = vadd.f32 %v3274, %v3289
    %v3424 = vadd.f32 %v3275, %v3293
    %v3425 = vadd.f32 %v3276, %v3297
    %v3426 = vadd.f32 %v3277, %v3285
    %v3427 = vadd.f32 %v3278, %v3289
    %v3428 = vadd.f32 %v3279, %v3293
    %v3429 = vadd.f32 %v3280, %v3297
    %v3430 = vmul.f32 %v3302, 0.2
    %v3431 = vmul.f32 %v3303, 0.2
    %v3432 = vmul.f32 %v3304, 0.2
    %v3433 = vmul.f32 %v3305, 0.2
    %v3434 = vmul.f32 %v3306, 0.2
    %v3435 = vmul.f32 %v3307, 0.2
    %v3436 = vmul.f32 %v3308, 0.2
    %v3437 = vmul.f32 %v3309, 0.2
    %v3438 = vmul.f32 %v3310, 0.2
    %v3439 = vmul.f32 %v3311, 0.2
    %v3440 = vmul.f32 %v3312, 0.2
    %v3441 = vmul.f32 %v3313, 0.2
    %v3442 = vmul.f32 %v3314, 0.2
    %v3443 = vmul.f32 %v3315, 0.2
    %v3444 = vmul.f32 %v3316, 0.2
    %v3445 = vmul.f32 %v3317, 0.2
    %v3446 = vmul.f32 %v3318, 0.2
    %v3447 = vmul.f32 %v3319, 0.2
    %v3448 = vmul.f32 %v3320, 0.2
    %v3449 = vmul.f32 %v3321, 0.2
    %v3450 = vmul.f32 %v3322, 0.2
    %v3451 = vmul.f32 %v3323, 0.2
    %v3452 = vmul.f32 %v3324, 0.2
    %v3453 = vmul.f32 %v3325, 0.2
    %v3454 = vmul.f32 %v3326, 0.2
    %v3455 = vmul.f32 %v3327, 0.2
    %v3456 = vmul.f32 %v3328, 0.2
    %v3457 = vmul.f32 %v3329, 0.2
    %v3458 = vmul.f32 %v3330, 0.2
    %v3459 = vmul.f32 %v3331, 0.2
    %v3460 = vmul.f32 %v3332, 0.2
    %v3461 = vmul.f32 %v3333, 0.2
    %v3462 = vmul.f32 %v3334, 0.2
    %v3463 = vmul.f32 %v3335, 0.2
    %v3464 = vmul.f32 %v3336, 0.2
    %v3465 = vmul.f32 %v3337, 0.2
    %v3466 = vmul.f32 %v3338, 0.2
    %v3467 = vmul.f32 %v3339, 0.2
    %v3468 = vmul.f32 %v3340, 0.2
    %v3469 = vmul.f32 %v3341, 0.2
    %v3470 = vmul.f32 %v3342, 0.2
    %v3471 = vmul.f32 %v3343, 0.2
    %v3472 = vmul.f32 %v3344, 0.2
    %v3473 = vmul.f32 %v3345, 0.2
    %v3474 = vmul.f32 %v3346, 0.2
    %v3475 = vmul.f32 %v3347, 0.2
    %v3476 = vmul.f32 %v3348, 0.2
    %v3477 = vmul.f32 %v3349, 0.2
    %v3478 = vmul.f32 %v3350, 0.2
    %v3479 = vmul.f32 %v3351, 0.2
    %v3480 = vmul.f32 %v3352, 0.2
    %v3481 = vmul.f32 %v3353, 0.2
    %v3482 = vmul.f32 %v3354, 0.2
    %v3483 = vmul.f32 %v3355, 0.2
    %v3484 = vmul.f32 %v3356, 0.2
    %v3485 = vmul.f32 %v3357, 0.2
    %v3486 = vmul.f32 %v3358, 0.2
    %v3487 = vmul.f32 %v3359, 0.2
    %v3488 = vmul.f32 %v3360, 0.2
    %v3489 = vmul.f32 %v3361, 0.2
    %v3490 = vmul.f32 %v3362, 0.2
    %v3491 = vmul.f32 %v3363, 0.2
    %v3492 = vmul.f32 %v3364, 0.2
    %v3493 = vmul.f32 %v3365, 0.2
    %v3494 = vmul.f32 %v3366, 0.2
    %v3495 = vmul.f32 %v3367, 0.2
    %v3496 = vmul.f32 %v3368, 0.2
    %v3497 = vmul.f32 %v3369, 0.2
    %v3498 = vmul.f32 %v3370, 0.2
    %v3499 = vmul.f32 %v3371, 0.2
    %v3500 = vmul.f32 %v3372, 0.2
    %v3501 = vmul.f32 %v3373, 0.2
    %v3502 = vmul.f32 %v3374, 0.2
    %v3503 = vmul.f32 %v3375, 0.2
    %v3504 = vmul.f32 %v3376, 0.2
    %v3505 = vmul.f32 %v3377, 0.2
    %v3506 = vmul.f32 %v3378, 0.2
    %v3507 = vmul.f32 %v3379, 0.2
    %v3508 = vmul.f32 %v3380, 0.2
    %v3509 = vmul.f32 %v3381, 0.2
    %v3510 = vmul.f32 %v3382, 0.2
    %v3511 = vmul.f32 %v3383, 0.2
    %v3512 = vmul.f32 %v3384, 0.2
    %v3513 = vmul.f32 %v3385, 0.2
    %v3514 = vmul.f32 %v3386, 0.2
    %v3515 = vmul.f32 %v3387, 0.2
    %v3516 = vmul.f32 %v3388, 0.2
    %v3517 = vmul.f32 %v3389, 0.2
    %v3518 = vmul.f32 %v3390, 0.2
    %v3519 = vmul.f32 %v3391, 0.2
    %v3520 = vmul.f32 %v3392, 0.2
    %v3521 = vmul.f32 %v3393, 0.2
    %v3522 = vmul.f32 %v3394, 0.2
    %v3523 = vmul.f32 %v3395, 0.2
    %v3524 = vmul.f32 %v3396, 0.2
    %v3525 = vmul.f32 %v3397, 0.2
    %v3526 = vmul.f32 %v3398, 0.2
    %v3527 = vmul.f32 %v3399, 0.2
    %v3528 = vmul.f32 %v3400, 0.2
    %v3529 = vmul.f32 %v3401, 0.2
    %v3530 = vmul.f32 %v3402, 0.2
    %v3531 = vmul.f32 %v3403, 0.2
    %v3532 = vmul.f32 %v3404, 0.2
    %v3533 = vmul.f32 %v3405, 0.2
    %v3534 = vmul.f32 %v3406, 0.2
    %v3535 = vmul.f32 %v3407, 0.2
    %v3536 = vmul.f32 %v3408, 0.2
    %v3537 = vmul.f32 %v3409, 0.2
    %v3538 = vmul.f32 %v3410, 0.2
    %v3539 = vmul.f32 %v3411, 0.2
    %v3540 = vmul.f32 %v3412, 0.2
    %v3541 = vmul.f32 %v3413, 0.2
    %v3542 = vmul.f32 %v3414, 0.2
    %v3543 = vmul.f32 %v3415, 0.2
    %v3544 = vmul.f32 %v3416, 0.2
    %v3545 = vmul.f32 %v3417, 0.2
    %v3546 = vmul.f32 %v3418, 0.2
    %v3547 = vmul.f32 %v3419, 0.2
    %v3548 = vmul.f32 %v3420, 0.2
    %v3549 = vmul.f32 %v3421, 0.2
    %v3550 = vmul.f32 %v3422, 0.2
    %v3551 = vmul.f32 %v3423, 0.2
    %v3552 = vmul.f32 %v3424, 0.2
    %v3553 = vmul.f32 %v3425, 0.2
    %v3554 = vmul.f32 %v3426, 0.2
    %v3555 = vmul.f32 %v3427, 0.2
    %v3556 = vmul.f32 %v3428, 0.2
    %v3557 = vmul.f32 %v3429, 0.2
    %v3558 = vmax.f32 %v3302, %v3430
    %v3559 = vmax.f32 %v3303, %v3431
    %v3560 = vmax.f32 %v3304, %v3432
    %v3561 = vmax.f32 %v3305, %v3433
    %v3562 = vmax.f32 %v3306, %v3434
    %v3563 = vmax.f32 %v3307, %v3435
    %v3564 = vmax.f32 %v3308, %v3436
    %v3565 = vmax.f32 %v3309, %v3437
    %v3566 = vmax.f32 %v3310, %v3438
    %v3567 = vmax.f32 %v3311, %v3439
    %v3568 = vmax.f32 %v3312, %v3440
    %v3569 = vmax.f32 %v3313, %v3441
    %v3570 = vmax.f32 %v3314, %v3442
    %v3571 = vmax.f32 %v3315, %v3443
    %v3572 = vmax.f32 %v3316, %v3444
    %v3573 = vmax.f32 %v3317, %v3445
    %v3574 = vmax.f32 %v3318, %v3446
    %v3575 = vmax.f32 %v3319, %v3447
    %v3576 = vmax.f32 %v3320, %v3448
    %v3577 = vmax.f32 %v3321, %v3449
    %v3578 = vmax.f32 %v3322, %v3450
    %v3579 = vmax.f32 %v3323, %v3451
    %v3580 = vmax.f32 %v3324, %v3452
    %v3581 = vmax.f32 %v3325, %v3453
    %v3582 = vmax.f32 %v3326, %v3454
    %v3583 = vmax.f32 %v3327, %v3455
    %v3584 = vmax.f32 %v3328, %v3456
    %v3585 = vmax.f32 %v3329, %v3457
    %v3586 = vmax.f32 %v3330, %v3458
    %v3587 = vmax.f32 %v3331, %v3459
    %v3588 = vmax.f32 %v3332, %v3460
    %v3589 = vmax.f32 %v3333, %v3461
    %v3590 = vmax.f32 %v3334, %v3462
    %v3591 = vmax.f32 %v3335, %v3463
    %v3592 = vmax.f32 %v3336, %v3464
    %v3593 = vmax.f32 %v3337, %v3465
    %v3594 = vmax.f32 %v3338, %v3466
    %v3595 = vmax.f32 %v3339, %v3467
    %v3596 = vmax.f32 %v3340, %v3468
    %v3597 = vmax.f32 %v3341, %v3469
    %v3598 = vmax.f32 %v3342, %v3470
    %v3599 = vmax.f32 %v3343, %v3471
    %v3600 = vmax.f32 %v3344, %v3472
    %v3601 = vmax.f32 %v3345, %v3473
    %v3602 = vmax.f32 %v3346, %v3474
    %v3603 = vmax.f32 %v3347, %v3475
    %v3604 = vmax.f32 %v3348, %v3476
    %v3605 = vmax.f32 %v3349, %v3477
    %v3606 = vmax.f32 %v3350, %v3478
    %v3607 = vmax.f32 %v3351, %v3479
    %v3608 = vmax.f32 %v3352, %v3480
    %v3609 = vmax.f32 %v3353, %v3481
    %v3610 = vmax.f32 %v3354, %v3482
    %v3611 = vmax.f32 %v3355, %v3483
    %v3612 = vmax.f32 %v3356, %v3484
    %v3613 = vmax.f32 %v3357, %v3485
    %v3614 = vmax.f32 %v3358, %v3486
    %v3615 = vmax.f32 %v3359, %v3487
    %v3616 = vmax.f32 %v3360, %v3488
    %v3617 = vmax.f32 %v3361, %v3489
    %v3618 = vmax.f32 %v3362, %v3490
    %v3619 = vmax.f32 %v3363, %v3491
    %v3620 = vmax.f32 %v3364, %v3492
    %v3621 = vmax.f32 %v3365, %v3493
    %v3622 = vmax.f32 %v3366, %v3494
    %v3623 = vmax.f32 %v3367, %v3495
    %v3624 = vmax.f32 %v3368, %v3496
    %v3625 = vmax.f32 %v3369, %v3497
    %v3626 = vmax.f32 %v3370, %v3498
    %v3627 = vmax.f32 %v3371, %v3499
    %v3628 = vmax.f32 %v3372, %v3500
    %v3629 = vmax.f32 %v3373, %v3501
    %v3630 = vmax.f32 %v3374, %v3502
    %v3631 = vmax.f32 %v3375, %v3503
    %v3632 = vmax.f32 %v3376, %v3504
    %v3633 = vmax.f32 %v3377, %v3505
    %v3634 = vmax.f32 %v3378, %v3506
    %v3635 = vmax.f32 %v3379, %v3507
    %v3636 = vmax.f32 %v3380, %v3508
    %v3637 = vmax.f32 %v3381, %v3509
    %v3638 = vmax.f32 %v3382, %v3510
    %v3639 = vmax.f32 %v3383, %v3511
    %v3640 = vmax.f32 %v3384, %v3512
    %v3641 = vmax.f32 %v3385, %v3513
    %v3642 = vmax.f32 %v3386, %v3514
    %v3643 = vmax.f32 %v3387, %v3515
    %v3644 = vmax.f32 %v3388, %v3516
    %v3645 = vmax.f32 %v3389, %v3517
    %v3646 = vmax.f32 %v3390, %v3518
    %v3647 = vmax.f32 %v3391, %v3519
    %v3648 = vmax.f32 %v3392, %v3520
    %v3649 = vmax.f32 %v3393, %v3521
    %v3650 = vmax.f32 %v3394, %v3522
    %v3651 = vmax.f32 %v3395, %v3523
    %v3652 = vmax.f32 %v3396, %v3524
    %v3653 = vmax.f32 %v3397, %v3525
    %v3654 = vmax.f32 %v3398, %v3526
    %v3655 = vmax.f32 %v3399, %v3527
    %v3656 = vmax.f32 %v3400, %v3528
    %v3657 = vmax.f32 %v3401, %v3529
    %v3658 = vmax.f32 %v3402, %v3530
    %v3659 = vmax.f32 %v3403, %v3531
    %v3660 = vmax.f32 %v3404, %v3532
    %v3661 = vmax.f32 %v3405, %v3533
    %v3662 = vmax.f32 %v3406, %v3534
    %v3663 = vmax.f32 %v3407, %v3535
    %v3664 = vmax.f32 %v3408, %v3536
    %v3665 = vmax.f32 %v3409, %v3537
    %v3666 = vmax.f32 %v3410, %v3538
    %v3667 = vmax.f32 %v3411, %v3539
    %v3668 = vmax.f32 %v3412, %v3540
    %v3669 = vmax.f32 %v3413, %v3541
    %v3670 = vmax.f32 %v3414, %v3542
    %v3671 = vmax.f32 %v3415, %v3543
    %v3672 = vmax.f32 %v3416, %v3544
    %v3673 = vmax.f32 %v3417, %v3545
    %v3674 = vmax.f32 %v3418, %v3546
    %v3675 = vmax.f32 %v3419, %v3547
    %v3676 = vmax.f32 %v3420, %v3548
    %v3677 = vmax.f32 %v3421, %v3549
    %v3678 = vmax.f32 %v3422, %v3550
    %v3679 = vmax.f32 %v3423, %v3551
    %v3680 = vmax.f32 %v3424, %v3552
    %v3681 = vmax.f32 %v3425, %v3553
    %v3682 = vmax.f32 %v3426, %v3554
    %v3683 = vmax.f32 %v3427, %v3555
    %v3684 = vmax.f32 %v3428, %v3556
    %v3685 = vmax.f32 %v3429, %v3557
    %v3686 = vpack.c.bf16 %v3562, %v3558
    %v3687 = vpack.c.bf16 %v3563, %v3559
    %v3688 = vpack.c.bf16 %v3564, %v3560
    %v3689 = vpack.c.bf16 %v3565, %v3561
    %v3690 = vpack.c.bf16 %v3570, %v3566
    %v3691 = vpack.c.bf16 %v3571, %v3567
    %v3692 = vpack.c.bf16 %v3572, %v3568
    %v3693 = vpack.c.bf16 %v3573, %v3569
    %v3694 = vpack.c.bf16 %v3578, %v3574
    %v3695 = vpack.c.bf16 %v3579, %v3575
    %v3696 = vpack.c.bf16 %v3580, %v3576
    %v3697 = vpack.c.bf16 %v3581, %v3577
    %v3698 = vpack.c.bf16 %v3586, %v3582
    %v3699 = vpack.c.bf16 %v3587, %v3583
    %v3700 = vpack.c.bf16 %v3588, %v3584
    %v3701 = vpack.c.bf16 %v3589, %v3585
    %v3702 = vpack.c.bf16 %v3594, %v3590
    %v3703 = vpack.c.bf16 %v3595, %v3591
    %v3704 = vpack.c.bf16 %v3596, %v3592
    %v3705 = vpack.c.bf16 %v3597, %v3593
    %v3706 = vpack.c.bf16 %v3602, %v3598
    %v3707 = vpack.c.bf16 %v3603, %v3599
    %v3708 = vpack.c.bf16 %v3604, %v3600
    %v3709 = vpack.c.bf16 %v3605, %v3601
    %v3710 = vpack.c.bf16 %v3610, %v3606
    %v3711 = vpack.c.bf16 %v3611, %v3607
    %v3712 = vpack.c.bf16 %v3612, %v3608
    %v3713 = vpack.c.bf16 %v3613, %v3609
    %v3714 = vpack.c.bf16 %v3618, %v3614
    %v3715 = vpack.c.bf16 %v3619, %v3615
    %v3716 = vpack.c.bf16 %v3620, %v3616
    %v3717 = vpack.c.bf16 %v3621, %v3617
    %v3718 = vpack.c.bf16 %v3626, %v3622
    %v3719 = vpack.c.bf16 %v3627, %v3623
    %v3720 = vpack.c.bf16 %v3628, %v3624
    %v3721 = vpack.c.bf16 %v3629, %v3625
    %v3722 = vpack.c.bf16 %v3634, %v3630
    %v3723 = vpack.c.bf16 %v3635, %v3631
    %v3724 = vpack.c.bf16 %v3636, %v3632
    %v3725 = vpack.c.bf16 %v3637, %v3633
    %v3726 = vpack.c.bf16 %v3642, %v3638
    %v3727 = vpack.c.bf16 %v3643, %v3639
    %v3728 = vpack.c.bf16 %v3644, %v3640
    %v3729 = vpack.c.bf16 %v3645, %v3641
    %v3730 = vpack.c.bf16 %v3650, %v3646
    %v3731 = vpack.c.bf16 %v3651, %v3647
    %v3732 = vpack.c.bf16 %v3652, %v3648
    %v3733 = vpack.c.bf16 %v3653, %v3649
    %v3734 = vpack.c.bf16 %v3658, %v3654
    %v3735 = vpack.c.bf16 %v3659, %v3655
    %v3736 = vpack.c.bf16 %v3660, %v3656
    %v3737 = vpack.c.bf16 %v3661, %v3657
    %v3738 = vpack.c.bf16 %v3666, %v3662
    %v3739 = vpack.c.bf16 %v3667, %v3663
    %v3740 = vpack.c.bf16 %v3668, %v3664
    %v3741 = vpack.c.bf16 %v3669, %v3665
    %v3742 = vpack.c.bf16 %v3674, %v3670
    %v3743 = vpack.c.bf16 %v3675, %v3671
    %v3744 = vpack.c.bf16 %v3676, %v3672
    %v3745 = vpack.c.bf16 %v3677, %v3673
    %v3746 = vpack.c.bf16 %v3682, %v3678
    %v3747 = vpack.c.bf16 %v3683, %v3679
    %v3748 = vpack.c.bf16 %v3684, %v3680
    %v3749 = vpack.c.bf16 %v3685, %v3681
    %v3750 = vld [vmem:[#allocation4] sm:$0xff]
    %v3751 = vld [vmem:[#allocation4 + $0x8] sm:$0xff]
    %v3752 = vld [vmem:[#allocation4 + $0x10] sm:$0xff]
    %v3753 = vld [vmem:[#allocation4 + $0x18] sm:$0xff]
    %v3754 = vld [vmem:[#allocation4 + $0x20] sm:$0xff]
    %v3755 = vld [vmem:[#allocation4 + $0x28] sm:$0xff]
    %v3756 = vld [vmem:[#allocation4 + $0x30] sm:$0xff]
    %v3757 = vld [vmem:[#allocation4 + $0x38] sm:$0xff]
    %v3758 = vld [vmem:[#allocation4 + $0x40] sm:$0xff]
    %v3759 = vld [vmem:[#allocation4 + $0x48] sm:$0xff]
    %v3760 = vld [vmem:[#allocation4 + $0x50] sm:$0xff]
    %v3761 = vld [vmem:[#allocation4 + $0x58] sm:$0xff]
    %v3762 = vld [vmem:[#allocation4 + $0x60] sm:$0xff]
    %v3763 = vld [vmem:[#allocation4 + $0x68] sm:$0xff]
    %v3764 = vld [vmem:[#allocation4 + $0x70] sm:$0xff]
    %v3765 = vld [vmem:[#allocation4 + $0x78] sm:$0xff]
    %v3766 = vld [vmem:[#allocation4 + $0x80] sm:$0xff]
    %v3767 = vld [vmem:[#allocation4 + $0x88] sm:$0xff]
    %v3768 = vld [vmem:[#allocation4 + $0x90] sm:$0xff]
    %v3769 = vld [vmem:[#allocation4 + $0x98] sm:$0xff]
    %v3770 = vld [vmem:[#allocation4 + $0xa0] sm:$0xff]
    %v3771 = vld [vmem:[#allocation4 + $0xa8] sm:$0xff]
    %v3772 = vld [vmem:[#allocation4 + $0xb0] sm:$0xff]
    %v3773 = vld [vmem:[#allocation4 + $0xb8] sm:$0xff]
    %v3774 = vld [vmem:[#allocation4 + $0xc0] sm:$0xff]
    %v3775 = vld [vmem:[#allocation4 + $0xc8] sm:$0xff]
    %v3776 = vld [vmem:[#allocation4 + $0xd0] sm:$0xff]
    %v3777 = vld [vmem:[#allocation4 + $0xd8] sm:$0xff]
    %v3778 = vld [vmem:[#allocation4 + $0xe0] sm:$0xff]
    %v3779 = vld [vmem:[#allocation4 + $0xe8] sm:$0xff]
    %v3780 = vld [vmem:[#allocation4 + $0xf0] sm:$0xff]
    %v3781 = vld [vmem:[#allocation4 + $0xf8] sm:$0xff]
    %v3782 = vld [vmem:[#allocation4 + $0x100] sm:$0xff]
    %v3783 = vld [vmem:[#allocation4 + $0x108] sm:$0xff]
    %v3784 = vld [vmem:[#allocation4 + $0x110] sm:$0xff]
    %v3785 = vld [vmem:[#allocation4 + $0x118] sm:$0xff]
    %v3786 = vld [vmem:[#allocation4 + $0x120] sm:$0xff]
    %v3787 = vld [vmem:[#allocation4 + $0x128] sm:$0xff]
    %v3788 = vld [vmem:[#allocation4 + $0x130] sm:$0xff]
    %v3789 = vld [vmem:[#allocation4 + $0x138] sm:$0xff]
    %v3790 = vld [vmem:[#allocation4 + $0x140] sm:$0xff]
    %v3791 = vld [vmem:[#allocation4 + $0x148] sm:$0xff]
    %v3792 = vld [vmem:[#allocation4 + $0x150] sm:$0xff]
    %v3793 = vld [vmem:[#allocation4 + $0x158] sm:$0xff]
    %v3794 = vld [vmem:[#allocation4 + $0x160] sm:$0xff]
    %v3795 = vld [vmem:[#allocation4 + $0x168] sm:$0xff]
    %v3796 = vld [vmem:[#allocation4 + $0x170] sm:$0xff]
    %v3797 = vld [vmem:[#allocation4 + $0x178] sm:$0xff]
    %v3798 = vld [vmem:[#allocation4 + $0x180] sm:$0xff]
    %v3799 = vld [vmem:[#allocation4 + $0x188] sm:$0xff]
    %v3800 = vld [vmem:[#allocation4 + $0x190] sm:$0xff]
    %v3801 = vld [vmem:[#allocation4 + $0x198] sm:$0xff]
    %v3802 = vld [vmem:[#allocation4 + $0x1a0] sm:$0xff]
    %v3803 = vld [vmem:[#allocation4 + $0x1a8] sm:$0xff]
    %v3804 = vld [vmem:[#allocation4 + $0x1b0] sm:$0xff]
    %v3805 = vld [vmem:[#allocation4 + $0x1b8] sm:$0xff]
    %v3806 = vld [vmem:[#allocation4 + $0x1c0] sm:$0xff]
    %v3807 = vld [vmem:[#allocation4 + $0x1c8] sm:$0xff]
    %v3808 = vld [vmem:[#allocation4 + $0x1d0] sm:$0xff]
    %v3809 = vld [vmem:[#allocation4 + $0x1d8] sm:$0xff]
    %v3810 = vld [vmem:[#allocation4 + $0x1e0] sm:$0xff]
    %v3811 = vld [vmem:[#allocation4 + $0x1e8] sm:$0xff]
    %v3812 = vld [vmem:[#allocation4 + $0x1f0] sm:$0xff]
    %v3813 = vld [vmem:[#allocation4 + $0x1f8] sm:$0xff]
    %v3814 = vld [vmem:[%s8] sm:$0x3]
    %v3816 = vlaneseq
    %v3817 = vshrl.u32 %v3816, 7
    %v3818 = vsub.s32 0, %v3817
    %v3819 = vrot.slane %v3814, %v3818
    %v3820 = vlaneseq
    %v3821 = vshrl.u32 %v3820, 7
    %v3822 = vsub.s32 1, %v3821
    %v3823 = vrot.slane %v3814, %v3822
    %v3890 = vunpack.c.l.b16 %v3750
    %v3891 = vunpack.c.h.b16 %v3750
    %v3892 = vunpack.c.l.b16 %v3751
    %v3893 = vunpack.c.h.b16 %v3751
    %v3894 = vunpack.c.l.b16 %v3752
    %v3895 = vunpack.c.h.b16 %v3752
    %v3896 = vunpack.c.l.b16 %v3753
    %v3897 = vunpack.c.h.b16 %v3753
    %v3898 = vunpack.c.l.b16 %v3754
    %v3899 = vunpack.c.h.b16 %v3754
    %v3900 = vunpack.c.l.b16 %v3755
    %v3901 = vunpack.c.h.b16 %v3755
    %v3902 = vunpack.c.l.b16 %v3756
    %v3903 = vunpack.c.h.b16 %v3756
    %v3904 = vunpack.c.l.b16 %v3757
    %v3905 = vunpack.c.h.b16 %v3757
    %v3906 = vunpack.c.l.b16 %v3758
    %v3907 = vunpack.c.h.b16 %v3758
    %v3908 = vunpack.c.l.b16 %v3759
    %v3909 = vunpack.c.h.b16 %v3759
    %v3910 = vunpack.c.l.b16 %v3760
    %v3911 = vunpack.c.h.b16 %v3760
    %v3912 = vunpack.c.l.b16 %v3761
    %v3913 = vunpack.c.h.b16 %v3761
    %v3914 = vunpack.c.l.b16 %v3762
    %v3915 = vunpack.c.h.b16 %v3762
    %v3916 = vunpack.c.l.b16 %v3763
    %v3917 = vunpack.c.h.b16 %v3763
    %v3918 = vunpack.c.l.b16 %v3764
    %v3919 = vunpack.c.h.b16 %v3764
    %v3920 = vunpack.c.l.b16 %v3765
    %v3921 = vunpack.c.h.b16 %v3765
    %v3922 = vunpack.c.l.b16 %v3766
    %v3923 = vunpack.c.h.b16 %v3766
    %v3924 = vunpack.c.l.b16 %v3767
    %v3925 = vunpack.c.h.b16 %v3767
    %v3926 = vunpack.c.l.b16 %v3768
    %v3927 = vunpack.c.h.b16 %v3768
    %v3928 = vunpack.c.l.b16 %v3769
    %v3929 = vunpack.c.h.b16 %v3769
    %v3930 = vunpack.c.l.b16 %v3770
    %v3931 = vunpack.c.h.b16 %v3770
    %v3932 = vunpack.c.l.b16 %v3771
    %v3933 = vunpack.c.h.b16 %v3771
    %v3934 = vunpack.c.l.b16 %v3772
    %v3935 = vunpack.c.h.b16 %v3772
    %v3936 = vunpack.c.l.b16 %v3773
    %v3937 = vunpack.c.h.b16 %v3773
    %v3938 = vunpack.c.l.b16 %v3774
    %v3939 = vunpack.c.h.b16 %v3774
    %v3940 = vunpack.c.l.b16 %v3775
    %v3941 = vunpack.c.h.b16 %v3775
    %v3942 = vunpack.c.l.b16 %v3776
    %v3943 = vunpack.c.h.b16 %v3776
    %v3944 = vunpack.c.l.b16 %v3777
    %v3945 = vunpack.c.h.b16 %v3777
    %v3946 = vunpack.c.l.b16 %v3778
    %v3947 = vunpack.c.h.b16 %v3778
    %v3948 = vunpack.c.l.b16 %v3779
    %v3949 = vunpack.c.h.b16 %v3779
    %v3950 = vunpack.c.l.b16 %v3780
    %v3951 = vunpack.c.h.b16 %v3780
    %v3952 = vunpack.c.l.b16 %v3781
    %v3953 = vunpack.c.h.b16 %v3781
    %v3954 = vunpack.c.l.b16 %v3782
    %v3955 = vunpack.c.h.b16 %v3782
    %v3956 = vunpack.c.l.b16 %v3783
    %v3957 = vunpack.c.h.b16 %v3783
    %v3958 = vunpack.c.l.b16 %v3784
    %v3959 = vunpack.c.h.b16 %v3784
    %v3960 = vunpack.c.l.b16 %v3785
    %v3961 = vunpack.c.h.b16 %v3785
    %v3962 = vunpack.c.l.b16 %v3786
    %v3963 = vunpack.c.h.b16 %v3786
    %v3964 = vunpack.c.l.b16 %v3787
    %v3965 = vunpack.c.h.b16 %v3787
    %v3966 = vunpack.c.l.b16 %v3788
    %v3967 = vunpack.c.h.b16 %v3788
    %v3968 = vunpack.c.l.b16 %v3789
    %v3969 = vunpack.c.h.b16 %v3789
    %v3970 = vunpack.c.l.b16 %v3790
    %v3971 = vunpack.c.h.b16 %v3790
    %v3972 = vunpack.c.l.b16 %v3791
    %v3973 = vunpack.c.h.b16 %v3791
    %v3974 = vunpack.c.l.b16 %v3792
    %v3975 = vunpack.c.h.b16 %v3792
    %v3976 = vunpack.c.l.b16 %v3793
    %v3977 = vunpack.c.h.b16 %v3793
    %v3978 = vunpack.c.l.b16 %v3794
    %v3979 = vunpack.c.h.b16 %v3794
    %v3980 = vunpack.c.l.b16 %v3795
    %v3981 = vunpack.c.h.b16 %v3795
    %v3982 = vunpack.c.l.b16 %v3796
    %v3983 = vunpack.c.h.b16 %v3796
    %v3984 = vunpack.c.l.b16 %v3797
    %v3985 = vunpack.c.h.b16 %v3797
    %v3986 = vunpack.c.l.b16 %v3798
    %v3987 = vunpack.c.h.b16 %v3798
    %v3988 = vunpack.c.l.b16 %v3799
    %v3989 = vunpack.c.h.b16 %v3799
    %v3990 = vunpack.c.l.b16 %v3800
    %v3991 = vunpack.c.h.b16 %v3800
    %v3992 = vunpack.c.l.b16 %v3801
    %v3993 = vunpack.c.h.b16 %v3801
    %v3994 = vunpack.c.l.b16 %v3802
    %v3995 = vunpack.c.h.b16 %v3802
    %v3996 = vunpack.c.l.b16 %v3803
    %v3997 = vunpack.c.h.b16 %v3803
    %v3998 = vunpack.c.l.b16 %v3804
    %v3999 = vunpack.c.h.b16 %v3804
    %v4000 = vunpack.c.l.b16 %v3805
    %v4001 = vunpack.c.h.b16 %v3805
    %v4002 = vunpack.c.l.b16 %v3806
    %v4003 = vunpack.c.h.b16 %v3806
    %v4004 = vunpack.c.l.b16 %v3807
    %v4005 = vunpack.c.h.b16 %v3807
    %v4006 = vunpack.c.l.b16 %v3808
    %v4007 = vunpack.c.h.b16 %v3808
    %v4008 = vunpack.c.l.b16 %v3809
    %v4009 = vunpack.c.h.b16 %v3809
    %v4010 = vunpack.c.l.b16 %v3810
    %v4011 = vunpack.c.h.b16 %v3810
    %v4012 = vunpack.c.l.b16 %v3811
    %v4013 = vunpack.c.h.b16 %v3811
    %v4014 = vunpack.c.l.b16 %v3812
    %v4015 = vunpack.c.h.b16 %v3812
    %v4016 = vunpack.c.l.b16 %v3813
    %v4017 = vunpack.c.h.b16 %v3813
    %v4018 = vpack.c.b16 %v3892, %v3890
    %v4019 = vpack.c.b16 %v3893, %v3891
    %v4020 = vpack.c.b16 %v3896, %v3894
    %v4021 = vpack.c.b16 %v3897, %v3895
    %v4022 = vpack.c.b16 %v3900, %v3898
    %v4023 = vpack.c.b16 %v3901, %v3899
    %v4024 = vpack.c.b16 %v3904, %v3902
    %v4025 = vpack.c.b16 %v3905, %v3903
    %v4026 = vpack.c.b16 %v3908, %v3906
    %v4027 = vpack.c.b16 %v3909, %v3907
    %v4028 = vpack.c.b16 %v3912, %v3910
    %v4029 = vpack.c.b16 %v3913, %v3911
    %v4030 = vpack.c.b16 %v3916, %v3914
    %v4031 = vpack.c.b16 %v3917, %v3915
    %v4032 = vpack.c.b16 %v3920, %v3918
    %v4033 = vpack.c.b16 %v3921, %v3919
    %v4034 = vpack.c.b16 %v3924, %v3922
    %v4035 = vpack.c.b16 %v3925, %v3923
    %v4036 = vpack.c.b16 %v3928, %v3926
    %v4037 = vpack.c.b16 %v3929, %v3927
    %v4038 = vpack.c.b16 %v3932, %v3930
    %v4039 = vpack.c.b16 %v3933, %v3931
    %v4040 = vpack.c.b16 %v3936, %v3934
    %v4041 = vpack.c.b16 %v3937, %v3935
    %v4042 = vpack.c.b16 %v3940, %v3938
    %v4043 = vpack.c.b16 %v3941, %v3939
    %v4044 = vpack.c.b16 %v3944, %v3942
    %v4045 = vpack.c.b16 %v3945, %v3943
    %v4046 = vpack.c.b16 %v3948, %v3946
    %v4047 = vpack.c.b16 %v3949, %v3947
    %v4048 = vpack.c.b16 %v3952, %v3950
    %v4049 = vpack.c.b16 %v3953, %v3951
    %v4050 = vpack.c.b16 %v3956, %v3954
    %v4051 = vpack.c.b16 %v3957, %v3955
    %v4052 = vpack.c.b16 %v3960, %v3958
    %v4053 = vpack.c.b16 %v3961, %v3959
    %v4054 = vpack.c.b16 %v3964, %v3962
    %v4055 = vpack.c.b16 %v3965, %v3963
    %v4056 = vpack.c.b16 %v3968, %v3966
    %v4057 = vpack.c.b16 %v3969, %v3967
    %v4058 = vpack.c.b16 %v3972, %v3970
    %v4059 = vpack.c.b16 %v3973, %v3971
    %v4060 = vpack.c.b16 %v3976, %v3974
    %v4061 = vpack.c.b16 %v3977, %v3975
    %v4062 = vpack.c.b16 %v3980, %v3978
    %v4063 = vpack.c.b16 %v3981, %v3979
    %v4064 = vpack.c.b16 %v3984, %v3982
    %v4065 = vpack.c.b16 %v3985, %v3983
    %v4066 = vpack.c.b16 %v3988, %v3986
    %v4067 = vpack.c.b16 %v3989, %v3987
    %v4068 = vpack.c.b16 %v3992, %v3990
    %v4069 = vpack.c.b16 %v3993, %v3991
    %v4070 = vpack.c.b16 %v3996, %v3994
    %v4071 = vpack.c.b16 %v3997, %v3995
    %v4072 = vpack.c.b16 %v4000, %v3998
    %v4073 = vpack.c.b16 %v4001, %v3999
    %v4074 = vpack.c.b16 %v4004, %v4002
    %v4075 = vpack.c.b16 %v4005, %v4003
    %v4076 = vpack.c.b16 %v4008, %v4006
    %v4077 = vpack.c.b16 %v4009, %v4007
    %v4078 = vpack.c.b16 %v4012, %v4010
    %v4079 = vpack.c.b16 %v4013, %v4011
    %v4080 = vpack.c.b16 %v4016, %v4014
    %v4081 = vpack.c.b16 %v4017, %v4015
    %4146 = vmatprep.subr.bf16.mxu0 %v4033
    %4147 = vmatpush1.bf16.msra.mxu0 %v4032
    %4148 = vmatprep.subr.bf16.mxu0 %v4031
    %4149 = vmatpush1.bf16.msra.mxu0 %v4030
    %4150 = vmatprep.subr.bf16.mxu0 %v4029
    %4151 = vmatpush1.bf16.msra.mxu0 %v4028
    %4152 = vmatprep.subr.bf16.mxu0 %v4027
    %4153 = vmatpush1.bf16.msra.mxu0 %v4026
    %4154 = vmatprep.subr.bf16.mxu0 %v4025
    %4155 = vmatpush1.bf16.msra.mxu0 %v4024
    %4156 = vmatprep.subr.bf16.mxu0 %v4023
    %4157 = vmatpush1.bf16.msra.mxu0 %v4022
    %4158 = vmatprep.subr.bf16.mxu0 %v4021
    %4159 = vmatpush1.bf16.msra.mxu0 %v4020
    %4160 = vmatprep.subr.bf16.mxu0 %v4019
    %4161 = vmatpush1.bf16.msra.mxu0 %v4018
    %4162 = vmatprep.subr.bf16.mxu0 %v4049
    %4163 = vmatpush2.bf16.msra.mxu0 %v4048
    %4164 = vmatprep.subr.bf16.mxu0 %v4047
    %4165 = vmatpush2.bf16.msra.mxu0 %v4046
    %4166 = vmatprep.subr.bf16.mxu0 %v4045
    %4167 = vmatpush2.bf16.msra.mxu0 %v4044
    %4168 = vmatprep.subr.bf16.mxu0 %v4043
    %4169 = vmatpush2.bf16.msra.mxu0 %v4042
    %4170 = vmatprep.subr.bf16.mxu0 %v4041
    %4171 = vmatpush2.bf16.msra.mxu0 %v4040
    %4172 = vmatprep.subr.bf16.mxu0 %v4039
    %4173 = vmatpush2.bf16.msra.mxu0 %v4038
    %4174 = vmatprep.subr.bf16.mxu0 %v4037
    %4175 = vmatpush2.bf16.msra.mxu0 %v4036
    %4176 = vmatprep.subr.bf16.mxu0 %v4035
    %4177 = vmatpush2.bf16.msra.mxu0 %v4034
    %4178 = vmatprep.mubr.bf16.mxu0 %v3687
    %4179 = vmatmul.mubr.bf16.gmra.mxu0 %v3686
    %v4180 = vpop.f32.mrf.mxu0
    %v4181 = vadd.f32 %v3819, %v4180
    %v4182 = vpop.f32.mrf.mxu0
    %v4183 = vadd.f32 %v3823, %v4182
    %v4184 = vpop.f32.mrf.mxu0
    %v4185 = vadd.f32 %v3819, %v4184
    %v4186 = vpop.f32.mrf.mxu0
    %v4187 = vadd.f32 %v3823, %v4186
    %4188 = vmatprep.mubr.bf16.mxu0 %v3691
    %4189 = vmatmul.mubr.bf16.gmra.mxu0 %v3690
    %v4190 = vpop.f32.mrf.mxu0
    %v4191 = vadd.f32 %v3819, %v4190
    %v4192 = vpop.f32.mrf.mxu0
    %v4193 = vadd.f32 %v3823, %v4192
    %v4194 = vpop.f32.mrf.mxu0
    %v4195 = vadd.f32 %v3819, %v4194
    %v4196 = vpop.f32.mrf.mxu0
    %v4197 = vadd.f32 %v3823, %v4196
    %4198 = vmatprep.mubr.bf16.mxu0 %v3695
    %4199 = vmatmul.mubr.bf16.gmra.mxu0 %v3694
    %v4200 = vpop.f32.mrf.mxu0
    %v4201 = vadd.f32 %v3819, %v4200
    %v4202 = vpop.f32.mrf.mxu0
    %v4203 = vadd.f32 %v3823, %v4202
    %v4204 = vpop.f32.mrf.mxu0
    %v4205 = vadd.f32 %v3819, %v4204
    %v4206 = vpop.f32.mrf.mxu0
    %v4207 = vadd.f32 %v3823, %v4206
    %4208 = vmatprep.mubr.bf16.mxu0 %v3699
    %4209 = vmatmul.mubr.bf16.gmra.mxu0 %v3698
    %v4210 = vpop.f32.mrf.mxu0
    %v4211 = vadd.f32 %v3819, %v4210
    %v4212 = vpop.f32.mrf.mxu0
    %v4213 = vadd.f32 %v3823, %v4212
    %v4214 = vpop.f32.mrf.mxu0
    %v4215 = vadd.f32 %v3819, %v4214
    %v4216 = vpop.f32.mrf.mxu0
    %v4217 = vadd.f32 %v3823, %v4216
    %4218 = vmatprep.mubr.bf16.mxu0 %v3703
    %4219 = vmatmul.mubr.bf16.gmra.mxu0 %v3702
    %v4220 = vpop.f32.mrf.mxu0
    %v4221 = vadd.f32 %v3819, %v4220
    %v4222 = vpop.f32.mrf.mxu0
    %v4223 = vadd.f32 %v3823, %v4222
    %v4224 = vpop.f32.mrf.mxu0
    %v4225 = vadd.f32 %v3819, %v4224
    %v4226 = vpop.f32.mrf.mxu0
    %v4227 = vadd.f32 %v3823, %v4226
    %4228 = vmatprep.mubr.bf16.mxu0 %v3707
    %4229 = vmatmul.mubr.bf16.gmra.mxu0 %v3706
    %v4230 = vpop.f32.mrf.mxu0
    %v4231 = vadd.f32 %v3819, %v4230
    %v4232 = vpop.f32.mrf.mxu0
    %v4233 = vadd.f32 %v3823, %v4232
    %v4234 = vpop.f32.mrf.mxu0
    %v4235 = vadd.f32 %v3819, %v4234
    %v4236 = vpop.f32.mrf.mxu0
    %v4237 = vadd.f32 %v3823, %v4236
    %4238 = vmatprep.mubr.bf16.mxu0 %v3711
    %4239 = vmatmul.mubr.bf16.gmra.mxu0 %v3710
    %v4240 = vpop.f32.mrf.mxu0
    %v4241 = vadd.f32 %v3819, %v4240
    %v4242 = vpop.f32.mrf.mxu0
    %v4243 = vadd.f32 %v3823, %v4242
    %v4244 = vpop.f32.mrf.mxu0
    %v4245 = vadd.f32 %v3819, %v4244
    %v4246 = vpop.f32.mrf.mxu0
    %v4247 = vadd.f32 %v3823, %v4246
    %4248 = vmatprep.mubr.bf16.mxu0 %v3715
    %4249 = vmatmul.mubr.bf16.gmra.mxu0 %v3714
    %v4250 = vpop.f32.mrf.mxu0
    %v4251 = vadd.f32 %v3819, %v4250
    %v4252 = vpop.f32.mrf.mxu0
    %v4253 = vadd.f32 %v3823, %v4252
    %v4254 = vpop.f32.mrf.mxu0
    %v4255 = vadd.f32 %v3819, %v4254
    %v4256 = vpop.f32.mrf.mxu0
    %v4257 = vadd.f32 %v3823, %v4256
    %4258 = vmatprep.mubr.bf16.mxu0 %v3719
    %4259 = vmatmul.mubr.bf16.gmra.mxu0 %v3718
    %v4260 = vpop.f32.mrf.mxu0
    %v4261 = vadd.f32 %v3819, %v4260
    %v4262 = vpop.f32.mrf.mxu0
    %v4263 = vadd.f32 %v3823, %v4262
    %v4264 = vpop.f32.mrf.mxu0
    %v4265 = vadd.f32 %v3819, %v4264
    %v4266 = vpop.f32.mrf.mxu0
    %v4267 = vadd.f32 %v3823, %v4266
    %4268 = vmatprep.mubr.bf16.mxu0 %v3723
    %4269 = vmatmul.mubr.bf16.gmra.mxu0 %v3722
    %v4270 = vpop.f32.mrf.mxu0
    %v4271 = vadd.f32 %v3819, %v4270
    %v4272 = vpop.f32.mrf.mxu0
    %v4273 = vadd.f32 %v3823, %v4272
    %v4274 = vpop.f32.mrf.mxu0
    %v4275 = vadd.f32 %v3819, %v4274
    %v4276 = vpop.f32.mrf.mxu0
    %v4277 = vadd.f32 %v3823, %v4276
    %4278 = vmatprep.mubr.bf16.mxu0 %v3727
    %4279 = vmatmul.mubr.bf16.gmra.mxu0 %v3726
    %v4280 = vpop.f32.mrf.mxu0
    %v4281 = vadd.f32 %v3819, %v4280
    %v4282 = vpop.f32.mrf.mxu0
    %v4283 = vadd.f32 %v3823, %v4282
    %v4284 = vpop.f32.mrf.mxu0
    %v4285 = vadd.f32 %v3819, %v4284
    %v4286 = vpop.f32.mrf.mxu0
    %v4287 = vadd.f32 %v3823, %v4286
    %4288 = vmatprep.mubr.bf16.mxu0 %v3731
    %4289 = vmatmul.mubr.bf16.gmra.mxu0 %v3730
    %v4290 = vpop.f32.mrf.mxu0
    %v4291 = vadd.f32 %v3819, %v4290
    %v4292 = vpop.f32.mrf.mxu0
    %v4293 = vadd.f32 %v3823, %v4292
    %v4294 = vpop.f32.mrf.mxu0
    %v4295 = vadd.f32 %v3819, %v4294
    %v4296 = vpop.f32.mrf.mxu0
    %v4297 = vadd.f32 %v3823, %v4296
    %4298 = vmatprep.mubr.bf16.mxu0 %v3735
    %4299 = vmatmul.mubr.bf16.gmra.mxu0 %v3734
    %v4300 = vpop.f32.mrf.mxu0
    %v4301 = vadd.f32 %v3819, %v4300
    %v4302 = vpop.f32.mrf.mxu0
    %v4303 = vadd.f32 %v3823, %v4302
    %v4304 = vpop.f32.mrf.mxu0
    %v4305 = vadd.f32 %v3819, %v4304
    %v4306 = vpop.f32.mrf.mxu0
    %v4307 = vadd.f32 %v3823, %v4306
    %4308 = vmatprep.mubr.bf16.mxu0 %v3739
    %4309 = vmatmul.mubr.bf16.gmra.mxu0 %v3738
    %v4310 = vpop.f32.mrf.mxu0
    %v4311 = vadd.f32 %v3819, %v4310
    %v4312 = vpop.f32.mrf.mxu0
    %v4313 = vadd.f32 %v3823, %v4312
    %v4314 = vpop.f32.mrf.mxu0
    %v4315 = vadd.f32 %v3819, %v4314
    %v4316 = vpop.f32.mrf.mxu0
    %v4317 = vadd.f32 %v3823, %v4316
    %4318 = vmatprep.mubr.bf16.mxu0 %v3743
    %4319 = vmatmul.mubr.bf16.gmra.mxu0 %v3742
    %v4320 = vpop.f32.mrf.mxu0
    %v4321 = vadd.f32 %v3819, %v4320
    %v4322 = vpop.f32.mrf.mxu0
    %v4323 = vadd.f32 %v3823, %v4322
    %v4324 = vpop.f32.mrf.mxu0
    %v4325 = vadd.f32 %v3819, %v4324
    %v4326 = vpop.f32.mrf.mxu0
    %v4327 = vadd.f32 %v3823, %v4326
    %4328 = vmatprep.mubr.bf16.mxu0 %v3747
    %4329 = vmatmul.mubr.bf16.gmra.mxu0 %v3746
    %v4330 = vpop.f32.mrf.mxu0
    %v4331 = vadd.f32 %v3819, %v4330
    %v4332 = vpop.f32.mrf.mxu0
    %v4333 = vadd.f32 %v3823, %v4332
    %v4334 = vpop.f32.mrf.mxu0
    %v4335 = vadd.f32 %v3819, %v4334
    %v4336 = vpop.f32.mrf.mxu0
    %v4337 = vadd.f32 %v3823, %v4336
    %4338 = vdwg.mxu0
    %4339 = vmatprep.subr.bf16.mxu0 %v4065
    %4340 = vmatpush1.bf16.msra.mxu0 %v4064
    %4341 = vmatprep.subr.bf16.mxu0 %v4063
    %4342 = vmatpush1.bf16.msra.mxu0 %v4062
    %4343 = vmatprep.subr.bf16.mxu0 %v4061
    %4344 = vmatpush1.bf16.msra.mxu0 %v4060
    %4345 = vmatprep.subr.bf16.mxu0 %v4059
    %4346 = vmatpush1.bf16.msra.mxu0 %v4058
    %4347 = vmatprep.subr.bf16.mxu0 %v4057
    %4348 = vmatpush1.bf16.msra.mxu0 %v4056
    %4349 = vmatprep.subr.bf16.mxu0 %v4055
    %4350 = vmatpush1.bf16.msra.mxu0 %v4054
    %4351 = vmatprep.subr.bf16.mxu0 %v4053
    %4352 = vmatpush1.bf16.msra.mxu0 %v4052
    %4353 = vmatprep.subr.bf16.mxu0 %v4051
    %4354 = vmatpush1.bf16.msra.mxu0 %v4050
    %4355 = vmatprep.subr.bf16.mxu0 %v4081
    %4356 = vmatpush2.bf16.msra.mxu0 %v4080
    %4357 = vmatprep.subr.bf16.mxu0 %v4079
    %4358 = vmatpush2.bf16.msra.mxu0 %v4078
    %4359 = vmatprep.subr.bf16.mxu0 %v4077
    %4360 = vmatpush2.bf16.msra.mxu0 %v4076
    %4361 = vmatprep.subr.bf16.mxu0 %v4075
    %4362 = vmatpush2.bf16.msra.mxu0 %v4074
    %4363 = vmatprep.subr.bf16.mxu0 %v4073
    %4364 = vmatpush2.bf16.msra.mxu0 %v4072
    %4365 = vmatprep.subr.bf16.mxu0 %v4071
    %4366 = vmatpush2.bf16.msra.mxu0 %v4070
    %4367 = vmatprep.subr.bf16.mxu0 %v4069
    %4368 = vmatpush2.bf16.msra.mxu0 %v4068
    %4369 = vmatprep.subr.bf16.mxu0 %v4067
    %4370 = vmatpush2.bf16.msra.mxu0 %v4066
    %4371 = vmatprep.mubr.bf16.mxu0 %v3689
    %4372 = vmatmul.mubr.bf16.gmra.mxu0 %v3688
    %v4373 = vpop.f32.mrf.mxu0
    %v4374 = vadd.f32 %v4181, %v4373
    %v4375 = vpop.f32.mrf.mxu0
    %v4376 = vadd.f32 %v4183, %v4375
    %v4377 = vpop.f32.mrf.mxu0
    %v4378 = vadd.f32 %v4185, %v4377
    %v4379 = vpop.f32.mrf.mxu0
    %v4380 = vadd.f32 %v4187, %v4379
    %4381 = vmatprep.mubr.bf16.mxu0 %v3693
    %4382 = vmatmul.mubr.bf16.gmra.mxu0 %v3692
    %v4383 = vpop.f32.mrf.mxu0
    %v4384 = vadd.f32 %v4191, %v4383
    %v4385 = vpop.f32.mrf.mxu0
    %v4386 = vadd.f32 %v4193, %v4385
    %v4387 = vpop.f32.mrf.mxu0
    %v4388 = vadd.f32 %v4195, %v4387
    %v4389 = vpop.f32.mrf.mxu0
    %v4390 = vadd.f32 %v4197, %v4389
    %4391 = vmatprep.mubr.bf16.mxu0 %v3697
    %4392 = vmatmul.mubr.bf16.gmra.mxu0 %v3696
    %v4393 = vpop.f32.mrf.mxu0
    %v4394 = vadd.f32 %v4201, %v4393
    %v4395 = vpop.f32.mrf.mxu0
    %v4396 = vadd.f32 %v4203, %v4395
    %v4397 = vpop.f32.mrf.mxu0
    %v4398 = vadd.f32 %v4205, %v4397
    %v4399 = vpop.f32.mrf.mxu0
    %v4400 = vadd.f32 %v4207, %v4399
    %4401 = vmatprep.mubr.bf16.mxu0 %v3701
    %4402 = vmatmul.mubr.bf16.gmra.mxu0 %v3700
    %v4403 = vpop.f32.mrf.mxu0
    %v4404 = vadd.f32 %v4211, %v4403
    %v4405 = vpop.f32.mrf.mxu0
    %v4406 = vadd.f32 %v4213, %v4405
    %v4407 = vpop.f32.mrf.mxu0
    %v4408 = vadd.f32 %v4215, %v4407
    %v4409 = vpop.f32.mrf.mxu0
    %v4410 = vadd.f32 %v4217, %v4409
    %4411 = vmatprep.mubr.bf16.mxu0 %v3705
    %4412 = vmatmul.mubr.bf16.gmra.mxu0 %v3704
    %v4413 = vpop.f32.mrf.mxu0
    %v4414 = vadd.f32 %v4221, %v4413
    %v4415 = vpop.f32.mrf.mxu0
    %v4416 = vadd.f32 %v4223, %v4415
    %v4417 = vpop.f32.mrf.mxu0
    %v4418 = vadd.f32 %v4225, %v4417
    %v4419 = vpop.f32.mrf.mxu0
    %v4420 = vadd.f32 %v4227, %v4419
    %4421 = vmatprep.mubr.bf16.mxu0 %v3709
    %4422 = vmatmul.mubr.bf16.gmra.mxu0 %v3708
    %v4423 = vpop.f32.mrf.mxu0
    %v4424 = vadd.f32 %v4231, %v4423
    %v4425 = vpop.f32.mrf.mxu0
    %v4426 = vadd.f32 %v4233, %v4425
    %v4427 = vpop.f32.mrf.mxu0
    %v4428 = vadd.f32 %v4235, %v4427
    %v4429 = vpop.f32.mrf.mxu0
    %v4430 = vadd.f32 %v4237, %v4429
    %4431 = vmatprep.mubr.bf16.mxu0 %v3713
    %4432 = vmatmul.mubr.bf16.gmra.mxu0 %v3712
    %v4433 = vpop.f32.mrf.mxu0
    %v4434 = vadd.f32 %v4241, %v4433
    %v4435 = vpop.f32.mrf.mxu0
    %v4436 = vadd.f32 %v4243, %v4435
    %v4437 = vpop.f32.mrf.mxu0
    %v4438 = vadd.f32 %v4245, %v4437
    %v4439 = vpop.f32.mrf.mxu0
    %v4440 = vadd.f32 %v4247, %v4439
    %4441 = vmatprep.mubr.bf16.mxu0 %v3717
    %4442 = vmatmul.mubr.bf16.gmra.mxu0 %v3716
    %v4443 = vpop.f32.mrf.mxu0
    %v4444 = vadd.f32 %v4251, %v4443
    %v4445 = vpop.f32.mrf.mxu0
    %v4446 = vadd.f32 %v4253, %v4445
    %v4447 = vpop.f32.mrf.mxu0
    %v4448 = vadd.f32 %v4255, %v4447
    %v4449 = vpop.f32.mrf.mxu0
    %v4450 = vadd.f32 %v4257, %v4449
    %4451 = vmatprep.mubr.bf16.mxu0 %v3721
    %4452 = vmatmul.mubr.bf16.gmra.mxu0 %v3720
    %v4453 = vpop.f32.mrf.mxu0
    %v4454 = vadd.f32 %v4261, %v4453
    %v4455 = vpop.f32.mrf.mxu0
    %v4456 = vadd.f32 %v4263, %v4455
    %v4457 = vpop.f32.mrf.mxu0
    %v4458 = vadd.f32 %v4265, %v4457
    %v4459 = vpop.f32.mrf.mxu0
    %v4460 = vadd.f32 %v4267, %v4459
    %4461 = vmatprep.mubr.bf16.mxu0 %v3725
    %4462 = vmatmul.mubr.bf16.gmra.mxu0 %v3724
    %v4463 = vpop.f32.mrf.mxu0
    %v4464 = vadd.f32 %v4271, %v4463
    %v4465 = vpop.f32.mrf.mxu0
    %v4466 = vadd.f32 %v4273, %v4465
    %v4467 = vpop.f32.mrf.mxu0
    %v4468 = vadd.f32 %v4275, %v4467
    %v4469 = vpop.f32.mrf.mxu0
    %v4470 = vadd.f32 %v4277, %v4469
    %4471 = vmatprep.mubr.bf16.mxu0 %v3729
    %4472 = vmatmul.mubr.bf16.gmra.mxu0 %v3728
    %v4473 = vpop.f32.mrf.mxu0
    %v4474 = vadd.f32 %v4281, %v4473
    %v4475 = vpop.f32.mrf.mxu0
    %v4476 = vadd.f32 %v4283, %v4475
    %v4477 = vpop.f32.mrf.mxu0
    %v4478 = vadd.f32 %v4285, %v4477
    %v4479 = vpop.f32.mrf.mxu0
    %v4480 = vadd.f32 %v4287, %v4479
    %4481 = vmatprep.mubr.bf16.mxu0 %v3733
    %4482 = vmatmul.mubr.bf16.gmra.mxu0 %v3732
    %v4483 = vpop.f32.mrf.mxu0
    %v4484 = vadd.f32 %v4291, %v4483
    %v4485 = vpop.f32.mrf.mxu0
    %v4486 = vadd.f32 %v4293, %v4485
    %v4487 = vpop.f32.mrf.mxu0
    %v4488 = vadd.f32 %v4295, %v4487
    %v4489 = vpop.f32.mrf.mxu0
    %v4490 = vadd.f32 %v4297, %v4489
    %4491 = vmatprep.mubr.bf16.mxu0 %v3737
    %4492 = vmatmul.mubr.bf16.gmra.mxu0 %v3736
    %v4493 = vpop.f32.mrf.mxu0
    %v4494 = vadd.f32 %v4301, %v4493
    %v4495 = vpop.f32.mrf.mxu0
    %v4496 = vadd.f32 %v4303, %v4495
    %v4497 = vpop.f32.mrf.mxu0
    %v4498 = vadd.f32 %v4305, %v4497
    %v4499 = vpop.f32.mrf.mxu0
    %v4500 = vadd.f32 %v4307, %v4499
    %4501 = vmatprep.mubr.bf16.mxu0 %v3741
    %4502 = vmatmul.mubr.bf16.gmra.mxu0 %v3740
    %v4503 = vpop.f32.mrf.mxu0
    %v4504 = vadd.f32 %v4311, %v4503
    %v4505 = vpop.f32.mrf.mxu0
    %v4506 = vadd.f32 %v4313, %v4505
    %v4507 = vpop.f32.mrf.mxu0
    %v4508 = vadd.f32 %v4315, %v4507
    %v4509 = vpop.f32.mrf.mxu0
    %v4510 = vadd.f32 %v4317, %v4509
    %4511 = vmatprep.mubr.bf16.mxu0 %v3745
    %4512 = vmatmul.mubr.bf16.gmra.mxu0 %v3744
    %v4513 = vpop.f32.mrf.mxu0
    %v4514 = vadd.f32 %v4321, %v4513
    %v4515 = vpop.f32.mrf.mxu0
    %v4516 = vadd.f32 %v4323, %v4515
    %v4517 = vpop.f32.mrf.mxu0
    %v4518 = vadd.f32 %v4325, %v4517
    %v4519 = vpop.f32.mrf.mxu0
    %v4520 = vadd.f32 %v4327, %v4519
    %4521 = vmatprep.mubr.bf16.mxu0 %v3749
    %4522 = vmatmul.mubr.bf16.gmra.mxu0 %v3748
    %v4523 = vpop.f32.mrf.mxu0
    %v4524 = vadd.f32 %v4331, %v4523
    %v4525 = vpop.f32.mrf.mxu0
    %v4526 = vadd.f32 %v4333, %v4525
    %v4527 = vpop.f32.mrf.mxu0
    %v4528 = vadd.f32 %v4335, %v4527
    %v4529 = vpop.f32.mrf.mxu0
    %v4530 = vadd.f32 %v4337, %v4529
    %4531 = vdwg.mxu0
    %v4532 = vtanh.pop %v4374
    %v4533 = vtanh.pop %v4376
    %v4534 = vtanh.pop %v4378
    %v4535 = vtanh.pop %v4380
    %v4536 = vtanh.pop %v4384
    %v4537 = vtanh.pop %v4386
    %v4538 = vtanh.pop %v4388
    %v4539 = vtanh.pop %v4390
    %v4540 = vtanh.pop %v4394
    %v4541 = vtanh.pop %v4396
    %v4542 = vtanh.pop %v4398
    %v4543 = vtanh.pop %v4400
    %v4544 = vtanh.pop %v4404
    %v4545 = vtanh.pop %v4406
    %v4546 = vtanh.pop %v4408
    %v4547 = vtanh.pop %v4410
    %v4548 = vtanh.pop %v4414
    %v4549 = vtanh.pop %v4416
    %v4550 = vtanh.pop %v4418
    %v4551 = vtanh.pop %v4420
    %v4552 = vtanh.pop %v4424
    %v4553 = vtanh.pop %v4426
    %v4554 = vtanh.pop %v4428
    %v4555 = vtanh.pop %v4430
    %v4556 = vtanh.pop %v4434
    %v4557 = vtanh.pop %v4436
    %v4558 = vtanh.pop %v4438
    %v4559 = vtanh.pop %v4440
    %v4560 = vtanh.pop %v4444
    %v4561 = vtanh.pop %v4446
    %v4562 = vtanh.pop %v4448
    %v4563 = vtanh.pop %v4450
    %v4564 = vtanh.pop %v4454
    %v4565 = vtanh.pop %v4456
    %v4566 = vtanh.pop %v4458
    %v4567 = vtanh.pop %v4460
    %v4568 = vtanh.pop %v4464
    %v4569 = vtanh.pop %v4466
    %v4570 = vtanh.pop %v4468
    %v4571 = vtanh.pop %v4470
    %v4572 = vtanh.pop %v4474
    %v4573 = vtanh.pop %v4476
    %v4574 = vtanh.pop %v4478
    %v4575 = vtanh.pop %v4480
    %v4576 = vtanh.pop %v4484
    %v4577 = vtanh.pop %v4486
    %v4578 = vtanh.pop %v4488
    %v4579 = vtanh.pop %v4490
    %v4580 = vtanh.pop %v4494
    %v4581 = vtanh.pop %v4496
    %v4582 = vtanh.pop %v4498
    %v4583 = vtanh.pop %v4500
    %v4584 = vtanh.pop %v4504
    %v4585 = vtanh.pop %v4506
    %v4586 = vtanh.pop %v4508
    %v4587 = vtanh.pop %v4510
    %v4588 = vtanh.pop %v4514
    %v4589 = vtanh.pop %v4516
    %v4590 = vtanh.pop %v4518
    %v4591 = vtanh.pop %v4520
    %v4592 = vtanh.pop %v4524
    %v4593 = vtanh.pop %v4526
    %v4594 = vtanh.pop %v4528
    %v4595 = vtanh.pop %v4530
    %4596 = vst [vmem:[%s9] sm:$0xff] %v4532
    %4597 = vst [vmem:[%s9 + $0x8] sm:$0xff] %v4533
    %4598 = vst [vmem:[%s9 + $0x10] sm:$0xff] %v4534
    %4599 = vst [vmem:[%s9 + $0x18] sm:$0xff] %v4535
    %4600 = vst [vmem:[%s9 + $0x20] sm:$0xff] %v4536
    %4601 = vst [vmem:[%s9 + $0x28] sm:$0xff] %v4537
    %4602 = vst [vmem:[%s9 + $0x30] sm:$0xff] %v4538
    %4603 = vst [vmem:[%s9 + $0x38] sm:$0xff] %v4539
    %4604 = vst [vmem:[%s9 + $0x40] sm:$0xff] %v4540
    %4605 = vst [vmem:[%s9 + $0x48] sm:$0xff] %v4541
    %4606 = vst [vmem:[%s9 + $0x50] sm:$0xff] %v4542
    %4607 = vst [vmem:[%s9 + $0x58] sm:$0xff] %v4543
    %4608 = vst [vmem:[%s9 + $0x60] sm:$0xff] %v4544
    %4609 = vst [vmem:[%s9 + $0x68] sm:$0xff] %v4545
    %4610 = vst [vmem:[%s9 + $0x70] sm:$0xff] %v4546
    %4611 = vst [vmem:[%s9 + $0x78] sm:$0xff] %v4547
    %4612 = vst [vmem:[%s9 + $0x80] sm:$0xff] %v4548
    %4613 = vst [vmem:[%s9 + $0x88] sm:$0xff] %v4549
    %4614 = vst [vmem:[%s9 + $0x90] sm:$0xff] %v4550
    %4615 = vst [vmem:[%s9 + $0x98] sm:$0xff] %v4551
    %4616 = vst [vmem:[%s9 + $0xa0] sm:$0xff] %v4552
    %4617 = vst [vmem:[%s9 + $0xa8] sm:$0xff] %v4553
    %4618 = vst [vmem:[%s9 + $0xb0] sm:$0xff] %v4554
    %4619 = vst [vmem:[%s9 + $0xb8] sm:$0xff] %v4555
    %4620 = vst [vmem:[%s9 + $0xc0] sm:$0xff] %v4556
    %4621 = vst [vmem:[%s9 + $0xc8] sm:$0xff] %v4557
    %4622 = vst [vmem:[%s9 + $0xd0] sm:$0xff] %v4558
    %4623 = vst [vmem:[%s9 + $0xd8] sm:$0xff] %v4559
    %4624 = vst [vmem:[%s9 + $0xe0] sm:$0xff] %v4560
    %4625 = vst [vmem:[%s9 + $0xe8] sm:$0xff] %v4561
    %4626 = vst [vmem:[%s9 + $0xf0] sm:$0xff] %v4562
    %4627 = vst [vmem:[%s9 + $0xf8] sm:$0xff] %v4563
    %4628 = vst [vmem:[%s9 + $0x100] sm:$0xff] %v4564
    %4629 = vst [vmem:[%s9 + $0x108] sm:$0xff] %v4565
    %4630 = vst [vmem:[%s9 + $0x110] sm:$0xff] %v4566
    %4631 = vst [vmem:[%s9 + $0x118] sm:$0xff] %v4567
    %4632 = vst [vmem:[%s9 + $0x120] sm:$0xff] %v4568
    %4633 = vst [vmem:[%s9 + $0x128] sm:$0xff] %v4569
    %4634 = vst [vmem:[%s9 + $0x130] sm:$0xff] %v4570
    %4635 = vst [vmem:[%s9 + $0x138] sm:$0xff] %v4571
    %4636 = vst [vmem:[%s9 + $0x140] sm:$0xff] %v4572
    %4637 = vst [vmem:[%s9 + $0x148] sm:$0xff] %v4573
    %4638 = vst [vmem:[%s9 + $0x150] sm:$0xff] %v4574
    %4639 = vst [vmem:[%s9 + $0x158] sm:$0xff] %v4575
    %4640 = vst [vmem:[%s9 + $0x160] sm:$0xff] %v4576
    %4641 = vst [vmem:[%s9 + $0x168] sm:$0xff] %v4577
    %4642 = vst [vmem:[%s9 + $0x170] sm:$0xff] %v4578
    %4643 = vst [vmem:[%s9 + $0x178] sm:$0xff] %v4579
    %4644 = vst [vmem:[%s9 + $0x180] sm:$0xff] %v4580
    %4645 = vst [vmem:[%s9 + $0x188] sm:$0xff] %v4581
    %4646 = vst [vmem:[%s9 + $0x190] sm:$0xff] %v4582
    %4647 = vst [vmem:[%s9 + $0x198] sm:$0xff] %v4583
    %4648 = vst [vmem:[%s9 + $0x1a0] sm:$0xff] %v4584
    %4649 = vst [vmem:[%s9 + $0x1a8] sm:$0xff] %v4585
    %4650 = vst [vmem:[%s9 + $0x1b0] sm:$0xff] %v4586
    %4651 = vst [vmem:[%s9 + $0x1b8] sm:$0xff] %v4587
    %4652 = vst [vmem:[%s9 + $0x1c0] sm:$0xff] %v4588
    %4653 = vst [vmem:[%s9 + $0x1c8] sm:$0xff] %v4589
    %4654 = vst [vmem:[%s9 + $0x1d0] sm:$0xff] %v4590
    %4655 = vst [vmem:[%s9 + $0x1d8] sm:$0xff] %v4591
    %4656 = vst [vmem:[%s9 + $0x1e0] sm:$0xff] %v4592
    %4657 = vst [vmem:[%s9 + $0x1e8] sm:$0xff] %v4593
    %4658 = vst [vmem:[%s9 + $0x1f0] sm:$0xff] %v4594
    %4659 = vst [vmem:[%s9 + $0x1f8] sm:$0xff] %v4595
    // Predicated region
    $region46: #{_decoder_forward_fused.1} parent=1 // pred_check
      _
    $region47: #{_decoder_forward_fused.1} parent=1 // pred_check_branch
      %4661 = sbr.rel (0) target = $region49
    $region48: #{_decoder_forward_fused.1} parent=1 // pred_region
      _
    $region49: #{_decoder_forward_fused.1} parent=1 // pred_fallthru
      _
    // Predicated region
    $region50: #{_decoder_forward_fused.1} parent=1 // pred_check
      _
    $region51: #{_decoder_forward_fused.1} parent=1 // pred_check_branch
      %4663 = sbr.rel (0) target = $region53
    $region52: #{_decoder_forward_fused.1} parent=1 // pred_region
      _
    $region53: #{_decoder_forward_fused.1} parent=1 // pred_fallthru
      _
    %4664 = vsyncpa [#allocation3], 1
    %4665 = vsyncpa [#allocation5], 1

</llo_original>
